<compile_context>
chip_gen: v7x
topology: tpu7x:2x2x1
jax: 0.10.0
libtpu: 0.0.40
codegen_flags: <defaults>
</compile_context>

<pallas_src>
import functools

import jax
import jax.numpy as jnp
import numpy as np
from jax.experimental import pallas as pl
from jax.experimental.pallas import tpu as pltpu


def _layernorm(z, g, b, eps=1e-5):
    mu = jnp.mean(z, axis=-1, keepdims=True)
    var = jnp.mean((z - mu) ** 2, axis=-1, keepdims=True)
    return (z - mu) * jax.lax.rsqrt(var + eps) * g + b


# Row indices inside the packed per-layer (13, D) vector table.  Key-projection biases are
# intentionally omitted: softmax is invariant to a per-query constant, so dropping bk is exact.
_SA_BQ, _SA_BV, _SA_BO = 0, 1, 2
_CA_BQ, _CA_BV, _CA_BO = 3, 4, 5
_FF_B2 = 6
_LN1_G, _LN1_B, _LN2_G, _LN2_B, _LN3_G, _LN3_B = 7, 8, 9, 10, 11, 12
_NUM_VEC = 13

# Slab indices inside the packed per-layer (8, D, D) attention-weight stack.
_SA_WQ, _SA_WK, _SA_WV, _SA_WO = 0, 1, 2, 3
_CA_WQ, _CA_WK, _CA_WV, _CA_WO = 4, 5, 6, 7


# ---------------------------------------------------------------------------
# Fused Pallas kernel: all decoder layers (+ optional final norm) in one call
# ---------------------------------------------------------------------------
def fused_decoder_kernel(tgt_ref, mem_ref, attn_w_ref, vec_ref,
                         ff1w_ref, ff1b_ref, ff2w_ref, fnorm_ref,
                         out_ref, x_ref, *, nhead, has_final_norm):
    """grid = (batch_tiles [parallel], num_layers [arbitrary]).

    The f32 residual stream lives in the VMEM scratch `x_ref` across the layer axis; the
    output block (same index across layers => accumulator pattern) is written once at the
    last layer.  All matmuls use bf16 operands with f32 accumulation."""
    li = pl.program_id(1)
    n_layers = pl.num_programs(1)

    Bt, T, D = tgt_ref.shape
    S = mem_ref.shape[1]
    hd = D // nhead
    N = Bt * T

    # Layer 0: load this batch tile, folding batch into the matmul M dimension.
    @pl.when(li == 0)
    def _():
        x_ref[...] = tgt_ref[...].reshape(N, D).astype(jnp.float32)

    x = x_ref[...]                                       # (Bt*T, D) f32 residual stream
    mem_bf = mem_ref[...].reshape(Bt * S, D)             # (Bt*S, D) bf16 (cast in wrapper)

    # --- per-layer weights: one static ref load each, hoisted out of all loops ---
    vtab = vec_ref[0]                                    # (13, D) packed f32 vectors

    def vrow(i):                                         # (1, D) row (broadcasts)
        return vtab[i:i + 1]

    sa_wq, sa_wk = attn_w_ref[0, _SA_WQ], attn_w_ref[0, _SA_WK]
    sa_wv, sa_wo = attn_w_ref[0, _SA_WV], attn_w_ref[0, _SA_WO]
    ca_wq, ca_wk = attn_w_ref[0, _CA_WQ], attn_w_ref[0, _CA_WK]
    ca_wv, ca_wo = attn_w_ref[0, _CA_WV], attn_w_ref[0, _CA_WO]
    ff_w1 = ff1w_ref[0]                                  # (D, Dff)   bf16
    ff_b1 = ff1b_ref[0]                                  # (1, Dff)   f32
    ff_w2 = ff2w_ref[0]                                  # (Dff, D)   bf16

    def mha(xq_bf, nq, xkv_bf, nk, wq, wk, wv, bq, bv, wo, bo):
        # Dense QKV projections over the whole (Bt*n, D) slab => fat MXU M dimension,
        # bf16 operands, f32 accumulation.  1/sqrt(hd) is pre-folded into wq / bq by the
        # wrapper; the key bias is dropped (softmax invariant to a per-query constant).
        q = jnp.dot(xq_bf, wq, preferred_element_type=jnp.float32) + bq
        k = jnp.dot(xkv_bf, wk, preferred_element_type=jnp.float32)
        v = jnp.dot(xkv_bf, wv, preferred_element_type=jnp.float32) + bv
        q3 = q.reshape(Bt, nq, D)          # leading-dim reshape only (lane dim untouched)
        k3 = k.reshape(Bt, nk, D)
        v3 = v.reshape(Bt, nk, D)
        heads = []
        # TODO(synk): replace the static head unroll with a single head-batched einsum once
        #             Mosaic supports the required (b,q,h,d)->(b,h,q,d) relayout.
        for h in range(nhead):             # each head batched over Bt; one head live at a time
            lo = h * hd
            qh = q3[:, :, lo:lo + hd].astype(jnp.bfloat16)
            kh = k3[:, :, lo:lo + hd].astype(jnp.bfloat16)
            vh = v3[:, :, lo:lo + hd].astype(jnp.bfloat16)
            s = jnp.einsum("bqd,bkd->bqk", qh, kh,
                           preferred_element_type=jnp.float32)       # (Bt, nq, nk) f32
            s = s - jnp.max(s, axis=-1, keepdims=True)
            p = jnp.exp(s)
            p = p * pl.reciprocal(jnp.sum(p, axis=-1, keepdims=True), approx=True)
            heads.append(jnp.einsum("bqk,bkd->bqd", p.astype(jnp.bfloat16), vh,
                                    preferred_element_type=jnp.float32))
        # concat(heads) then ONE dense (N, D) @ (D, D) bf16 output projection on the MXU.
        attn = jnp.concatenate(heads, axis=-1).reshape(Bt * nq, D).astype(jnp.bfloat16)
        return jnp.dot(attn, wo, preferred_element_type=jnp.float32) + bo

    # --- self-attention block (dropout = identity in eval) ---
    x_bf = x.astype(jnp.bfloat16)
    sa = mha(x_bf, T, x_bf, T, sa_wq, sa_wk, sa_wv,
             vrow(_SA_BQ), vrow(_SA_BV), sa_wo, vrow(_SA_BO))
    x = _layernorm(x + sa, vrow(_LN1_G), vrow(_LN1_B))
    # --- cross-attention block (keys / values from encoder memory) ---
    x_bf = x.astype(jnp.bfloat16)
    ca = mha(x_bf, T, mem_bf, S, ca_wq, ca_wk, ca_wv,
             vrow(_CA_BQ), vrow(_CA_BV), ca_wo, vrow(_CA_BO))
    x = _layernorm(x + ca, vrow(_LN2_G), vrow(_LN2_B))
    # --- feed-forward block: Linear -> ReLU -> Linear (bf16 matmuls, f32 accumulate) ---
    x_bf = x.astype(jnp.bfloat16)
    ffh = jnp.maximum(jnp.dot(x_bf, ff_w1, preferred_element_type=jnp.float32) + ff_b1, 0.0)
    ffo = jnp.dot(ffh.astype(jnp.bfloat16), ff_w2,
                  preferred_element_type=jnp.float32) + vrow(_FF_B2)
    x = _layernorm(x + ffo, vrow(_LN3_G), vrow(_LN3_B))

    @pl.when(li < n_layers - 1)            # carry to next layer (skip the write on the last)
    def _():
        x_ref[...] = x

    @pl.when(li == n_layers - 1)
    def _():
        xo = x
        if has_final_norm:
            xo = _layernorm(xo, fnorm_ref[0:1], fnorm_ref[1:2])
        out_ref[...] = xo.reshape(Bt, T, D).astype(out_ref.dtype)


# ---------------------------------------------------------------------------
# Wrappers
# ---------------------------------------------------------------------------
def _stack_layer_params(layer_params, nhead, d_model):
    """Pack per-layer weights into stacked arrays (matrices bf16, vectors f32)."""
    hd = d_model // nhead
    scale = float(hd) ** -0.5
    attn_w, vecs, ff1w, ff1b, ff2w = [], [], [], [], []
    for p in layer_params:
        attn_w.append(jnp.stack([
            p["sa_wq"] * scale, p["sa_wk"], p["sa_wv"], p["sa_wo"],
            p["ca_wq"] * scale, p["ca_wk"], p["ca_wv"], p["ca_wo"]], axis=0))
        vecs.append(jnp.stack([
            p["sa_bq"].reshape(-1) * scale, p["sa_bv"].reshape(-1), p["sa_bo"].reshape(-1),
            p["ca_bq"].reshape(-1) * scale, p["ca_bv"].reshape(-1), p["ca_bo"].reshape(-1),
            p["ff_b2"].reshape(-1),
            p["ln1_g"].reshape(-1), p["ln1_b"].reshape(-1),
            p["ln2_g"].reshape(-1), p["ln2_b"].reshape(-1),
            p["ln3_g"].reshape(-1), p["ln3_b"].reshape(-1)], axis=0))
        ff1w.append(p["ff_w1"])
        ff1b.append(p["ff_b1"].reshape(1, -1))
        ff2w.append(p["ff_w2"])
    return (jnp.stack(attn_w).astype(jnp.bfloat16),
            jnp.stack(vecs).astype(jnp.float32),
            jnp.stack(ff1w).astype(jnp.bfloat16),
            jnp.stack(ff1b).astype(jnp.float32),
            jnp.stack(ff2w).astype(jnp.bfloat16))


def _working_set_bytes(Bt, T, S, D, dff):
    """Rough VMEM working-set estimate (bytes) for one batch tile at one layer step."""
    bf16, f32 = 2, 4
    smax = max(T, S)
    # per-layer streamed weights (bf16 matrices, f32 vectors), double-buffered across layers
    w = 2 * (bf16 * (8 * D * D + 2 * D * dff) + f32 * (_NUM_VEC * D + dff)) + f32 * 2 * D
    # pipelined activation blocks (tgt/mem bf16, out f32; double-buffered) + f32 residual scratch
    act = 2 * Bt * D * (bf16 * T + bf16 * S + f32 * T) + f32 * Bt * T * D
    # transient intra-layer tensors: q/k/v slabs, one head's scores/probs, ffn hidden, concat
    tmp = ((f32 + bf16) * Bt * (T + 2 * smax) * D
           + 3 * f32 * Bt * T * smax
           + (f32 + bf16) * Bt * T * dff
           + (f32 + bf16) * Bt * T * D)
    return w + act + tmp


def _device_hints():
    """(vmem_capacity_bytes, prefer_multi_tile).  64 MiB-class chips (v7x) have 2 TensorCores,
    so the 'parallel' batch axis should have >= 2 (even) tiles; 128 MiB chips (v5e/v6e) prefer
    the largest tile that fits (fewer weight re-streams)."""
    cap = 64 * 2 ** 20
    try:
        info = pltpu.get_tpu_info()
        cap = int(getattr(info, "vmem_capacity_bytes", cap) or cap)
    except Exception:
        pass
    return cap, cap <= 96 * 2 ** 20


def _pick_batch_tile(B, T, S, D, dff, budget, prefer_multi_tile):
    """Largest divisor of B whose estimated working set fits the VMEM budget."""
    divisors = [d for d in range(1, B + 1) if B % d == 0]
    fitting = [d for d in divisors if _working_set_bytes(d, T, S, D, dff) <= budget]
    if not fitting:
        return 1
    if prefer_multi_tile:
        even = [d for d in fitting if (B // d) >= 2 and (B // d) % 2 == 0]
        if even:
            return max(even)
    return max(fitting)


def transformer_decoder(tgt, memory, layer_params, norm_params, nhead, batch_tile=None):
    """tgt: (T, B, D), memory: (S, B, D) — PyTorch seq-first convention."""
    T, B, D = tgt.shape
    S = memory.shape[0]
    L = len(layer_params)
    dff = layer_params[0]["ff_w1"].shape[1]
    out_dtype = tgt.dtype

    # One transpose + bf16 cast for the whole fused stack (not per layer).
    x = jnp.transpose(tgt, (1, 0, 2)).astype(jnp.bfloat16)        # (B, T, D)
    mem = jnp.transpose(memory, (1, 0, 2)).astype(jnp.bfloat16)   # (B, S, D)

    vmem_cap, prefer_multi_tile = _device_hints()
    if batch_tile is None:
        batch_tile = _pick_batch_tile(B, T, S, D, dff,
                                      budget=int(0.8 * vmem_cap),
                                      prefer_multi_tile=prefer_multi_tile)
    assert B % batch_tile == 0

    attn_w, vec, ff1w, ff1b, ff2w = _stack_layer_params(layer_params, nhead, D)
    has_norm = norm_params is not None
    if has_norm:
        g, b = norm_params
        fnorm = jnp.stack([g.reshape(-1), b.reshape(-1)], axis=0).astype(jnp.float32)
    else:
        fnorm = jnp.zeros((2, D), jnp.float32)                    # unused

    # VMEM budget: actual working set with margin, clamped to ~90% of chip capacity
    # (leaves headroom for compiler-internal scratch on v7x's 64 MiB).
    need = int(1.25 * _working_set_bytes(batch_tile, T, S, D, dff))
    vmem_limit = int(min(max(need, 32 * 2 ** 20), int(0.9 * vmem_cap)))

    kernel = functools.partial(fused_decoder_kernel, nhead=nhead,
                               has_final_norm=has_norm)
    out = pl.pallas_call(
        kernel,
        out_shape=jax.ShapeDtypeStruct((B, T, D), out_dtype),
        grid=(B // batch_tile, L),
        in_specs=[
            pl.BlockSpec((batch_tile, T, D), lambda bi, li: (bi, 0, 0)),
            pl.BlockSpec((batch_tile, S, D), lambda bi, li: (bi, 0, 0)),
            pl.BlockSpec((1, 8, D, D), lambda bi, li: (li, 0, 0, 0)),
            pl.BlockSpec((1, _NUM_VEC, D), lambda bi, li: (li, 0, 0)),
            pl.BlockSpec((1, D, dff), lambda bi, li: (li, 0, 0)),
            pl.BlockSpec((1, 1, dff), lambda bi, li: (li, 0, 0)),
            pl.BlockSpec((1, dff, D), lambda bi, li: (li, 0, 0)),
            pl.BlockSpec((2, D), lambda bi, li: (0, 0)),
        ],
        out_specs=pl.BlockSpec((batch_tile, T, D), lambda bi, li: (bi, 0, 0)),
        scratch_shapes=[pltpu.VMEM((batch_tile * T, D), jnp.float32)],
        compiler_params=pltpu.CompilerParams(
            dimension_semantics=("parallel", "arbitrary"),
            vmem_limit_bytes=vmem_limit),
    )(x, mem, attn_w, vec, ff1w, ff1b, ff2w, fnorm)
    return jnp.transpose(out, (1, 0, 2))     # back to (T, B, D)


# ---------------------------------------------------------------------------
# Deterministic parameter init (weights stored as (in, out): y = x @ W + b)
# ---------------------------------------------------------------------------
def init_layer_params(key, d_model, dim_ff):
    ks = jax.random.split(key, 10)

    def w(k, shape):
        return jax.random.normal(k, shape, jnp.float32) * (1.0 / np.sqrt(shape[0]))

    zD = jnp.zeros((1, d_model), jnp.float32)
    oD = jnp.ones((1, d_model), jnp.float32)
    return dict(
        sa_wq=w(ks[0], (d_model, d_model)), sa_wk=w(ks[1], (d_model, d_model)),
        sa_wv=w(ks[2], (d_model, d_model)), sa_wo=w(ks[3], (d_model, d_model)),
        sa_bq=zD, sa_bk=zD, sa_bv=zD, sa_bo=zD,
        ca_wq=w(ks[4], (d_model, d_model)), ca_wk=w(ks[5], (d_model, d_model)),
        ca_wv=w(ks[6], (d_model, d_model)), ca_wo=w(ks[7], (d_model, d_model)),
        ca_bq=zD, ca_bk=zD, ca_bv=zD, ca_bo=zD,
        ff_w1=w(ks[8], (d_model, dim_ff)), ff_b1=jnp.zeros((1, dim_ff), jnp.float32),
        ff_w2=w(ks[9], (dim_ff, d_model)), ff_b2=zD,
        ln1_g=oD, ln1_b=zD, ln2_g=oD, ln2_b=zD, ln3_g=oD, ln3_b=zD,
    )


# ---------------------------------------------------------------------------
# Pure-JAX f32 reference (for correctness check; includes the key biases)
# ---------------------------------------------------------------------------
def _ref_mha(xq, xkv, wq, wk, wv, bq, bk, bv, wo, bo, nhead):
    B, T, D = xq.shape
    S = xkv.shape[1]
    hd = D // nhead
    q = (xq @ wq + bq).reshape(B, T, nhead, hd).transpose(0, 2, 1, 3) * (hd ** -0.5)
    k = (xkv @ wk + bk).reshape(B, S, nhead, hd).transpose(0, 2, 1, 3)
    v = (xkv @ wv + bv).reshape(B, S, nhead, hd).transpose(0, 2, 1, 3)
    s = jnp.einsum("bhtd,bhsd->bhts", q, k)
    p = jax.nn.softmax(s, axis=-1)
    o = jnp.einsum("bhts,bhsd->bhtd", p, v).transpose(0, 2, 1, 3).reshape(B, T, D)
    return o @ wo + bo


def ref_decoder(tgt, memory, layer_params, norm_params, nhead):
    x = jnp.transpose(tgt, (1, 0, 2))
    mem = jnp.transpose(memory, (1, 0, 2))
    for p in layer_params:
        sa = _ref_mha(x, x, p["sa_wq"], p["sa_wk"], p["sa_wv"], p["sa_bq"], p["sa_bk"],
                      p["sa_bv"], p["sa_wo"], p["sa_bo"], nhead)
        x = _layernorm(x + sa, p["ln1_g"], p["ln1_b"])
        ca = _ref_mha(x, mem, p["ca_wq"], p["ca_wk"], p["ca_wv"], p["ca_bq"], p["ca_bk"],
                      p["ca_bv"], p["ca_wo"], p["ca_bo"], nhead)
        x = _layernorm(x + ca, p["ln2_g"], p["ln2_b"])
        h = jnp.maximum(x @ p["ff_w1"] + p["ff_b1"], 0.0)
        x = _layernorm(x + h @ p["ff_w2"] + p["ff_b2"], p["ln3_g"], p["ln3_b"])
    if norm_params is not None:
        g, b = norm_params
        x = _layernorm(x, g, b)
    return jnp.transpose(x, (1, 0, 2))


# ---------------------------------------------------------------------------
if __name__ == "__main__":
    B, T, S, D, NHEAD, DIM_FF, NUM_LAYERS = 2, 8, 8, 32, 4, 64, 2

    key = jax.random.PRNGKey(0)
    k_tgt, k_mem, k_params = jax.random.split(key, 3)
    tgt = jax.random.normal(k_tgt, (T, B, D), jnp.float32)      # (seq, batch, d_model)
    memory = jax.random.normal(k_mem, (S, B, D), jnp.float32)   # (src, batch, d_model)

    layer_keys = jax.random.split(k_params, NUM_LAYERS)
    layer_params = [init_layer_params(k, D, DIM_FF) for k in layer_keys]
    norm_params = (jnp.ones((1, D), jnp.float32), jnp.zeros((1, D), jnp.float32))

    out = transformer_decoder(tgt, memory, layer_params, norm_params, NHEAD)
    out = jax.block_until_ready(out)

    # bf16 matmul operands (f32 accumulation / LN / softmax) => looser tolerance vs f32 ref.
    ref = ref_decoder(tgt, memory, layer_params, norm_params, NHEAD)
    np.testing.assert_allclose(np.asarray(out), np.asarray(ref), rtol=5e-2, atol=5e-2)
    assert out.shape == (T, B, D)

    print("KERNEL_OK")
</pallas_src>

<mosaic_0001>
module attributes {stable_mosaic.version = 11 : i64} {
  func.func @fused_decoder_kernel(%arg0: i32, %arg1: i32, %arg2: memref<1x8x32xbf16, #tpu.memory_space<vmem>>, %arg3: memref<1x8x32xbf16, #tpu.memory_space<vmem>>, %arg4: memref<1x8x32x32xbf16, #tpu.memory_space<vmem>>, %arg5: memref<1x13x32xf32, #tpu.memory_space<vmem>>, %arg6: memref<1x32x64xbf16, #tpu.memory_space<vmem>>, %arg7: memref<1x1x64xf32, #tpu.memory_space<vmem>>, %arg8: memref<1x64x32xbf16, #tpu.memory_space<vmem>>, %arg9: memref<2x32xf32, #tpu.memory_space<vmem>>, %arg10: memref<1x8x32xf32, #tpu.memory_space<vmem>>, %arg11: memref<8x32xf32, #tpu.memory_space<vmem>>) attributes {dimension_semantics = [#tpu.dimension_semantics<parallel>, #tpu.dimension_semantics<arbitrary>], iteration_bounds = array<i64: 2, 2>, scalar_prefetch = 0 : i64, scratch_operands = 1 : i64, tpu.core_type = #tpu.core_type<tc>, window_params = [{transform_indices = @transform_0, window_bounds = array<i64: 1, 8, 32>}, {transform_indices = @transform_1, window_bounds = array<i64: 1, 8, 32>}, {transform_indices = @transform_2, window_bounds = array<i64: 1, 8, 32, 32>}, {transform_indices = @transform_3, window_bounds = array<i64: 1, 13, 32>}, {transform_indices = @transform_4, window_bounds = array<i64: 1, 32, 64>}, {transform_indices = @transform_5, window_bounds = array<i64: 1, 1, 64>}, {transform_indices = @transform_6, window_bounds = array<i64: 1, 64, 32>}, {pipeline_mode = #tpu.pipeline_mode<synchronous>, transform_indices = @transform_7, window_bounds = array<i64: 2, 32>}, {transform_indices = @transform_8, window_bounds = array<i64: 1, 8, 32>}]} {
    %c0_i32 = arith.constant 0 : i32
    %0 = arith.cmpi eq, %arg1, %c0_i32 : i32
    %1 = arith.extui %0 : i1 to i32
    %c0_i32_0 = arith.constant 0 : i32
    %2 = arith.cmpi ne, %1, %c0_i32_0 : i32
    scf.if %2 {
      %c0_102 = arith.constant 0 : index
      %c0_103 = arith.constant 0 : index
      %c0_104 = arith.constant 0 : index
      %314 = vector.load %arg2[%c0_102, %c0_103, %c0_104] : memref<1x8x32xbf16, #tpu.memory_space<vmem>>, vector<1x8x32xbf16>
      %315 = vector.shape_cast %314 : vector<1x8x32xbf16> to vector<8x32xbf16>
      %316 = arith.extf %315 : vector<8x32xbf16> to vector<8x32xf32>
      %c0_105 = arith.constant 0 : index
      %c0_106 = arith.constant 0 : index
      %317 = vector.load %arg11[%c0_105, %c0_106] : memref<8x32xf32, #tpu.memory_space<vmem>>, vector<8x32xf32>
      tpu.vector_store %arg11[%c0_105, %c0_106], %316 {strides = array<i32>} : memref<8x32xf32, #tpu.memory_space<vmem>>, vector<8x32xf32>,
    } else {
    }
    %c0 = arith.constant 0 : index
    %c0_1 = arith.constant 0 : index
    %3 = vector.load %arg11[%c0, %c0_1] : memref<8x32xf32, #tpu.memory_space<vmem>>, vector<8x32xf32>
    %c0_2 = arith.constant 0 : index
    %c0_3 = arith.constant 0 : index
    %c0_4 = arith.constant 0 : index
    %4 = vector.load %arg3[%c0_2, %c0_3, %c0_4] : memref<1x8x32xbf16, #tpu.memory_space<vmem>>, vector<1x8x32xbf16>
    %5 = vector.shape_cast %4 : vector<1x8x32xbf16> to vector<8x32xbf16>
    %c0_5 = arith.constant 0 : index
    %c0_6 = arith.constant 0 : index
    %c0_7 = arith.constant 0 : index
    %6 = vector.load %arg5[%c0_5, %c0_6, %c0_7] : memref<1x13x32xf32, #tpu.memory_space<vmem>>, vector<1x13x32xf32>
    %7 = vector.shape_cast %6 : vector<1x13x32xf32> to vector<13x32xf32>
    %c0_8 = arith.constant 0 : index
    %c0_9 = arith.constant 0 : index
    %c0_10 = arith.constant 0 : index
    %c0_11 = arith.constant 0 : index
    %8 = vector.load %arg4[%c0_8, %c0_9, %c0_10, %c0_11] : memref<1x8x32x32xbf16, #tpu.memory_space<vmem>>, vector<1x1x32x32xbf16>
    %9 = vector.shape_cast %8 : vector<1x1x32x32xbf16> to vector<32x32xbf16>
    %c0_12 = arith.constant 0 : index
    %c1 = arith.constant 1 : index
    %c0_13 = arith.constant 0 : index
    %c0_14 = arith.constant 0 : index
    %10 = vector.load %arg4[%c0_12, %c1, %c0_13, %c0_14] : memref<1x8x32x32xbf16, #tpu.memory_space<vmem>>, vector<1x1x32x32xbf16>
    %11 = vector.shape_cast %10 : vector<1x1x32x32xbf16> to vector<32x32xbf16>
    %c0_15 = arith.constant 0 : index
    %c2 = arith.constant 2 : index
    %c0_16 = arith.constant 0 : index
    %c0_17 = arith.constant 0 : index
    %12 = vector.load %arg4[%c0_15, %c2, %c0_16, %c0_17] : memref<1x8x32x32xbf16, #tpu.memory_space<vmem>>, vector<1x1x32x32xbf16>
    %13 = vector.shape_cast %12 : vector<1x1x32x32xbf16> to vector<32x32xbf16>
    %c0_18 = arith.constant 0 : index
    %c3 = arith.constant 3 : index
    %c0_19 = arith.constant 0 : index
    %c0_20 = arith.constant 0 : index
    %14 = vector.load %arg4[%c0_18, %c3, %c0_19, %c0_20] : memref<1x8x32x32xbf16, #tpu.memory_space<vmem>>, vector<1x1x32x32xbf16>
    %15 = vector.shape_cast %14 : vector<1x1x32x32xbf16> to vector<32x32xbf16>
    %c0_21 = arith.constant 0 : index
    %c4 = arith.constant 4 : index
    %c0_22 = arith.constant 0 : index
    %c0_23 = arith.constant 0 : index
    %16 = vector.load %arg4[%c0_21, %c4, %c0_22, %c0_23] : memref<1x8x32x32xbf16, #tpu.memory_space<vmem>>, vector<1x1x32x32xbf16>
    %17 = vector.shape_cast %16 : vector<1x1x32x32xbf16> to vector<32x32xbf16>
    %c0_24 = arith.constant 0 : index
    %c5 = arith.constant 5 : index
    %c0_25 = arith.constant 0 : index
    %c0_26 = arith.constant 0 : index
    %18 = vector.load %arg4[%c0_24, %c5, %c0_25, %c0_26] : memref<1x8x32x32xbf16, #tpu.memory_space<vmem>>, vector<1x1x32x32xbf16>
    %19 = vector.shape_cast %18 : vector<1x1x32x32xbf16> to vector<32x32xbf16>
    %c0_27 = arith.constant 0 : index
    %c6 = arith.constant 6 : index
    %c0_28 = arith.constant 0 : index
    %c0_29 = arith.constant 0 : index
    %20 = vector.load %arg4[%c0_27, %c6, %c0_28, %c0_29] : memref<1x8x32x32xbf16, #tpu.memory_space<vmem>>, vector<1x1x32x32xbf16>
    %21 = vector.shape_cast %20 : vector<1x1x32x32xbf16> to vector<32x32xbf16>
    %c0_30 = arith.constant 0 : index
    %c7 = arith.constant 7 : index
    %c0_31 = arith.constant 0 : index
    %c0_32 = arith.constant 0 : index
    %22 = vector.load %arg4[%c0_30, %c7, %c0_31, %c0_32] : memref<1x8x32x32xbf16, #tpu.memory_space<vmem>>, vector<1x1x32x32xbf16>
    %23 = vector.shape_cast %22 : vector<1x1x32x32xbf16> to vector<32x32xbf16>
    %c0_33 = arith.constant 0 : index
    %c0_34 = arith.constant 0 : index
    %c0_35 = arith.constant 0 : index
    %24 = vector.load %arg6[%c0_33, %c0_34, %c0_35] : memref<1x32x64xbf16, #tpu.memory_space<vmem>>, vector<1x32x64xbf16>
    %25 = vector.shape_cast %24 : vector<1x32x64xbf16> to vector<32x64xbf16>
    %c0_36 = arith.constant 0 : index
    %c0_37 = arith.constant 0 : index
    %c0_38 = arith.constant 0 : index
    %26 = vector.load %arg7[%c0_36, %c0_37, %c0_38] : memref<1x1x64xf32, #tpu.memory_space<vmem>>, vector<1x1x64xf32>
    %27 = vector.shape_cast %26 : vector<1x1x64xf32> to vector<1x64xf32>
    %c0_39 = arith.constant 0 : index
    %c0_40 = arith.constant 0 : index
    %c0_41 = arith.constant 0 : index
    %28 = vector.load %arg8[%c0_39, %c0_40, %c0_41] : memref<1x64x32xbf16, #tpu.memory_space<vmem>>, vector<1x64x32xbf16>
    %29 = vector.shape_cast %28 : vector<1x64x32xbf16> to vector<64x32xbf16>
    %30 = arith.truncf %3 : vector<8x32xf32> to vector<8x32xbf16>
    %31 = vector.extract_strided_slice %7 {offsets = [0, 0], sizes = [1, 32], strides = [1, 1]} : vector<13x32xf32> to vector<1x32xf32>
    %32 = vector.extract_strided_slice %7 {offsets = [1, 0], sizes = [1, 32], strides = [1, 1]} : vector<13x32xf32> to vector<1x32xf32>
    %33 = vector.extract_strided_slice %7 {offsets = [2, 0], sizes = [1, 32], strides = [1, 1]} : vector<13x32xf32> to vector<1x32xf32>
    %cst = arith.constant dense<0.000000e+00> : vector<8x32xf32>
    %34 = tpu.matmul %30, %9, %cst {dimension_numbers = #tpu.dot_dimension_numbers<[1], [0], [0], [1], [0, 0, 1, 1], [], []>} : vector<8x32xbf16>, vector<32x32xbf16>, vector<8x32xf32> -> vector<8x32xf32>
    %35 = vector.broadcast %31 : vector<1x32xf32> to vector<8x32xf32>
    %36 = arith.addf %34, %35 : vector<8x32xf32>
    %cst_42 = arith.constant dense<0.000000e+00> : vector<8x32xf32>
    %37 = tpu.matmul %30, %11, %cst_42 {dimension_numbers = #tpu.dot_dimension_numbers<[1], [0], [0], [1], [0, 0, 1, 1], [], []>} : vector<8x32xbf16>, vector<32x32xbf16>, vector<8x32xf32> -> vector<8x32xf32>
    %cst_43 = arith.constant dense<0.000000e+00> : vector<8x32xf32>
    %38 = tpu.matmul %30, %13, %cst_43 {dimension_numbers = #tpu.dot_dimension_numbers<[1], [0], [0], [1], [0, 0, 1, 1], [], []>} : vector<8x32xbf16>, vector<32x32xbf16>, vector<8x32xf32> -> vector<8x32xf32>
    %39 = vector.broadcast %32 : vector<1x32xf32> to vector<8x32xf32>
    %40 = arith.addf %38, %39 : vector<8x32xf32>
    %41 = vector.shape_cast %36 : vector<8x32xf32> to vector<1x8x32xf32>
    %42 = vector.shape_cast %37 : vector<8x32xf32> to vector<1x8x32xf32>
    %43 = vector.shape_cast %40 : vector<8x32xf32> to vector<1x8x32xf32>
    %44 = vector.extract_strided_slice %41 {offsets = [0, 0, 0], sizes = [1, 8, 8], strides = [1, 1, 1]} : vector<1x8x32xf32> to vector<1x8x8xf32>
    %45 = arith.truncf %44 : vector<1x8x8xf32> to vector<1x8x8xbf16>
    %46 = vector.extract_strided_slice %42 {offsets = [0, 0, 0], sizes = [1, 8, 8], strides = [1, 1, 1]} : vector<1x8x32xf32> to vector<1x8x8xf32>
    %47 = arith.truncf %46 : vector<1x8x8xf32> to vector<1x8x8xbf16>
    %48 = vector.extract_strided_slice %43 {offsets = [0, 0, 0], sizes = [1, 8, 8], strides = [1, 1, 1]} : vector<1x8x32xf32> to vector<1x8x8xf32>
    %49 = arith.truncf %48 : vector<1x8x8xf32> to vector<1x8x8xbf16>
    "tpu.trace_start"() <{level = 10 : i32, message = "bqd,bkd->bqk"}> : () -> ()
    %cst_44 = arith.constant dense<0.000000e+00> : vector<1x8x8xf32>
    %50 = tpu.matmul %45, %47, %cst_44 {dimension_numbers = #tpu.dot_dimension_numbers<[2], [2], [1], [1], [0, 0, 0, 1, 1, 1], [0], [0]>} : vector<1x8x8xbf16>, vector<1x8x8xbf16>, vector<1x8x8xf32> -> vector<1x8x8xf32>
    "tpu.trace_stop"() : () -> ()
    %cst_45 = arith.constant dense<0xFF800000> : vector<1x8xf32>
    %51 = vector.multi_reduction <maximumf>, %50, %cst_45 [2] : vector<1x8x8xf32> to vector<1x8xf32>
    %52 = vector.shape_cast %51 : vector<1x8xf32> to vector<1x8x1xf32>
    %53 = vector.broadcast %52 : vector<1x8x1xf32> to vector<1x8x8xf32>
    %54 = arith.subf %50, %53 : vector<1x8x8xf32>
    %55 = math.exp %54 : vector<1x8x8xf32>
    %cst_46 = arith.constant dense<0.000000e+00> : vector<1x8xf32>
    %56 = vector.multi_reduction <add>, %55, %cst_46 [2] : vector<1x8x8xf32> to vector<1x8xf32>
    %57 = vector.shape_cast %56 : vector<1x8xf32> to vector<1x8x1xf32>
    %58 = tpu.reciprocal %57 {approx = true} : vector<1x8x1xf32> -> vector<1x8x1xf32>
    %59 = vector.broadcast %58 : vector<1x8x1xf32> to vector<1x8x8xf32>
    %60 = arith.mulf %55, %59 : vector<1x8x8xf32>
    %61 = arith.truncf %60 : vector<1x8x8xf32> to vector<1x8x8xbf16>
    "tpu.trace_start"() <{level = 10 : i32, message = "bqk,bkd->bqd"}> : () -> ()
    %cst_47 = arith.constant dense<0.000000e+00> : vector<1x8x8xf32>
    %62 = tpu.matmul %61, %49, %cst_47 {dimension_numbers = #tpu.dot_dimension_numbers<[2], [1], [1], [2], [0, 0, 0, 1, 1, 2], [0], [0]>} : vector<1x8x8xbf16>, vector<1x8x8xbf16>, vector<1x8x8xf32> -> vector<1x8x8xf32>
    "tpu.trace_stop"() : () -> ()
    %63 = vector.extract_strided_slice %41 {offsets = [0, 0, 8], sizes = [1, 8, 8], strides = [1, 1, 1]} : vector<1x8x32xf32> to vector<1x8x8xf32>
    %64 = arith.truncf %63 : vector<1x8x8xf32> to vector<1x8x8xbf16>
    %65 = vector.extract_strided_slice %42 {offsets = [0, 0, 8], sizes = [1, 8, 8], strides = [1, 1, 1]} : vector<1x8x32xf32> to vector<1x8x8xf32>
    %66 = arith.truncf %65 : vector<1x8x8xf32> to vector<1x8x8xbf16>
    %67 = vector.extract_strided_slice %43 {offsets = [0, 0, 8], sizes = [1, 8, 8], strides = [1, 1, 1]} : vector<1x8x32xf32> to vector<1x8x8xf32>
    %68 = arith.truncf %67 : vector<1x8x8xf32> to vector<1x8x8xbf16>
    "tpu.trace_start"() <{level = 10 : i32, message = "bqd,bkd->bqk"}> : () -> ()
    %cst_48 = arith.constant dense<0.000000e+00> : vector<1x8x8xf32>
    %69 = tpu.matmul %64, %66, %cst_48 {dimension_numbers = #tpu.dot_dimension_numbers<[2], [2], [1], [1], [0, 0, 0, 1, 1, 1], [0], [0]>} : vector<1x8x8xbf16>, vector<1x8x8xbf16>, vector<1x8x8xf32> -> vector<1x8x8xf32>
    "tpu.trace_stop"() : () -> ()
    %cst_49 = arith.constant dense<0xFF800000> : vector<1x8xf32>
    %70 = vector.multi_reduction <maximumf>, %69, %cst_49 [2] : vector<1x8x8xf32> to vector<1x8xf32>
    %71 = vector.shape_cast %70 : vector<1x8xf32> to vector<1x8x1xf32>
    %72 = vector.broadcast %71 : vector<1x8x1xf32> to vector<1x8x8xf32>
    %73 = arith.subf %69, %72 : vector<1x8x8xf32>
    %74 = math.exp %73 : vector<1x8x8xf32>
    %cst_50 = arith.constant dense<0.000000e+00> : vector<1x8xf32>
    %75 = vector.multi_reduction <add>, %74, %cst_50 [2] : vector<1x8x8xf32> to vector<1x8xf32>
    %76 = vector.shape_cast %75 : vector<1x8xf32> to vector<1x8x1xf32>
    %77 = tpu.reciprocal %76 {approx = true} : vector<1x8x1xf32> -> vector<1x8x1xf32>
    %78 = vector.broadcast %77 : vector<1x8x1xf32> to vector<1x8x8xf32>
    %79 = arith.mulf %74, %78 : vector<1x8x8xf32>
    %80 = arith.truncf %79 : vector<1x8x8xf32> to vector<1x8x8xbf16>
    "tpu.trace_start"() <{level = 10 : i32, message = "bqk,bkd->bqd"}> : () -> ()
    %cst_51 = arith.constant dense<0.000000e+00> : vector<1x8x8xf32>
    %81 = tpu.matmul %80, %68, %cst_51 {dimension_numbers = #tpu.dot_dimension_numbers<[2], [1], [1], [2], [0, 0, 0, 1, 1, 2], [0], [0]>} : vector<1x8x8xbf16>, vector<1x8x8xbf16>, vector<1x8x8xf32> -> vector<1x8x8xf32>
    "tpu.trace_stop"() : () -> ()
    %82 = vector.extract_strided_slice %41 {offsets = [0, 0, 16], sizes = [1, 8, 8], strides = [1, 1, 1]} : vector<1x8x32xf32> to vector<1x8x8xf32>
    %83 = arith.truncf %82 : vector<1x8x8xf32> to vector<1x8x8xbf16>
    %84 = vector.extract_strided_slice %42 {offsets = [0, 0, 16], sizes = [1, 8, 8], strides = [1, 1, 1]} : vector<1x8x32xf32> to vector<1x8x8xf32>
    %85 = arith.truncf %84 : vector<1x8x8xf32> to vector<1x8x8xbf16>
    %86 = vector.extract_strided_slice %43 {offsets = [0, 0, 16], sizes = [1, 8, 8], strides = [1, 1, 1]} : vector<1x8x32xf32> to vector<1x8x8xf32>
    %87 = arith.truncf %86 : vector<1x8x8xf32> to vector<1x8x8xbf16>
    "tpu.trace_start"() <{level = 10 : i32, message = "bqd,bkd->bqk"}> : () -> ()
    %cst_52 = arith.constant dense<0.000000e+00> : vector<1x8x8xf32>
    %88 = tpu.matmul %83, %85, %cst_52 {dimension_numbers = #tpu.dot_dimension_numbers<[2], [2], [1], [1], [0, 0, 0, 1, 1, 1], [0], [0]>} : vector<1x8x8xbf16>, vector<1x8x8xbf16>, vector<1x8x8xf32> -> vector<1x8x8xf32>
    "tpu.trace_stop"() : () -> ()
    %cst_53 = arith.constant dense<0xFF800000> : vector<1x8xf32>
    %89 = vector.multi_reduction <maximumf>, %88, %cst_53 [2] : vector<1x8x8xf32> to vector<1x8xf32>
    %90 = vector.shape_cast %89 : vector<1x8xf32> to vector<1x8x1xf32>
    %91 = vector.broadcast %90 : vector<1x8x1xf32> to vector<1x8x8xf32>
    %92 = arith.subf %88, %91 : vector<1x8x8xf32>
    %93 = math.exp %92 : vector<1x8x8xf32>
    %cst_54 = arith.constant dense<0.000000e+00> : vector<1x8xf32>
    %94 = vector.multi_reduction <add>, %93, %cst_54 [2] : vector<1x8x8xf32> to vector<1x8xf32>
    %95 = vector.shape_cast %94 : vector<1x8xf32> to vector<1x8x1xf32>
    %96 = tpu.reciprocal %95 {approx = true} : vector<1x8x1xf32> -> vector<1x8x1xf32>
    %97 = vector.broadcast %96 : vector<1x8x1xf32> to vector<1x8x8xf32>
    %98 = arith.mulf %93, %97 : vector<1x8x8xf32>
    %99 = arith.truncf %98 : vector<1x8x8xf32> to vector<1x8x8xbf16>
    "tpu.trace_start"() <{level = 10 : i32, message = "bqk,bkd->bqd"}> : () -> ()
    %cst_55 = arith.constant dense<0.000000e+00> : vector<1x8x8xf32>
    %100 = tpu.matmul %99, %87, %cst_55 {dimension_numbers = #tpu.dot_dimension_numbers<[2], [1], [1], [2], [0, 0, 0, 1, 1, 2], [0], [0]>} : vector<1x8x8xbf16>, vector<1x8x8xbf16>, vector<1x8x8xf32> -> vector<1x8x8xf32>
    "tpu.trace_stop"() : () -> ()
    %101 = vector.extract_strided_slice %41 {offsets = [0, 0, 24], sizes = [1, 8, 8], strides = [1, 1, 1]} : vector<1x8x32xf32> to vector<1x8x8xf32>
    %102 = arith.truncf %101 : vector<1x8x8xf32> to vector<1x8x8xbf16>
    %103 = vector.extract_strided_slice %42 {offsets = [0, 0, 24], sizes = [1, 8, 8], strides = [1, 1, 1]} : vector<1x8x32xf32> to vector<1x8x8xf32>
    %104 = arith.truncf %103 : vector<1x8x8xf32> to vector<1x8x8xbf16>
    %105 = vector.extract_strided_slice %43 {offsets = [0, 0, 24], sizes = [1, 8, 8], strides = [1, 1, 1]} : vector<1x8x32xf32> to vector<1x8x8xf32>
    %106 = arith.truncf %105 : vector<1x8x8xf32> to vector<1x8x8xbf16>
    "tpu.trace_start"() <{level = 10 : i32, message = "bqd,bkd->bqk"}> : () -> ()
    %cst_56 = arith.constant dense<0.000000e+00> : vector<1x8x8xf32>
    %107 = tpu.matmul %102, %104, %cst_56 {dimension_numbers = #tpu.dot_dimension_numbers<[2], [2], [1], [1], [0, 0, 0, 1, 1, 1], [0], [0]>} : vector<1x8x8xbf16>, vector<1x8x8xbf16>, vector<1x8x8xf32> -> vector<1x8x8xf32>
    "tpu.trace_stop"() : () -> ()
    %cst_57 = arith.constant dense<0xFF800000> : vector<1x8xf32>
    %108 = vector.multi_reduction <maximumf>, %107, %cst_57 [2] : vector<1x8x8xf32> to vector<1x8xf32>
    %109 = vector.shape_cast %108 : vector<1x8xf32> to vector<1x8x1xf32>
    %110 = vector.broadcast %109 : vector<1x8x1xf32> to vector<1x8x8xf32>
    %111 = arith.subf %107, %110 : vector<1x8x8xf32>
    %112 = math.exp %111 : vector<1x8x8xf32>
    %cst_58 = arith.constant dense<0.000000e+00> : vector<1x8xf32>
    %113 = vector.multi_reduction <add>, %112, %cst_58 [2] : vector<1x8x8xf32> to vector<1x8xf32>
    %114 = vector.shape_cast %113 : vector<1x8xf32> to vector<1x8x1xf32>
    %115 = tpu.reciprocal %114 {approx = true} : vector<1x8x1xf32> -> vector<1x8x1xf32>
    %116 = vector.broadcast %115 : vector<1x8x1xf32> to vector<1x8x8xf32>
    %117 = arith.mulf %112, %116 : vector<1x8x8xf32>
    %118 = arith.truncf %117 : vector<1x8x8xf32> to vector<1x8x8xbf16>
    "tpu.trace_start"() <{level = 10 : i32, message = "bqk,bkd->bqd"}> : () -> ()
    %cst_59 = arith.constant dense<0.000000e+00> : vector<1x8x8xf32>
    %119 = tpu.matmul %118, %106, %cst_59 {dimension_numbers = #tpu.dot_dimension_numbers<[2], [1], [1], [2], [0, 0, 0, 1, 1, 2], [0], [0]>} : vector<1x8x8xbf16>, vector<1x8x8xbf16>, vector<1x8x8xf32> -> vector<1x8x8xf32>
    "tpu.trace_stop"() : () -> ()
    %120 = tpu.concatenate %62, %81, %100, %119 in 2 : vector<1x8x8xf32>, vector<1x8x8xf32>, vector<1x8x8xf32>, vector<1x8x8xf32> -> vector<1x8x32xf32>
    %121 = vector.shape_cast %120 : vector<1x8x32xf32> to vector<8x32xf32>
    %122 = arith.truncf %121 : vector<8x32xf32> to vector<8x32xbf16>
    %cst_60 = arith.constant dense<0.000000e+00> : vector<8x32xf32>
    %123 = tpu.matmul %122, %15, %cst_60 {dimension_numbers = #tpu.dot_dimension_numbers<[1], [0], [0], [1], [0, 0, 1, 1], [], []>} : vector<8x32xbf16>, vector<32x32xbf16>, vector<8x32xf32> -> vector<8x32xf32>
    %124 = vector.broadcast %33 : vector<1x32xf32> to vector<8x32xf32>
    %125 = arith.addf %123, %124 : vector<8x32xf32>
    %126 = arith.addf %3, %125 : vector<8x32xf32>
    %127 = vector.extract_strided_slice %7 {offsets = [7, 0], sizes = [1, 32], strides = [1, 1]} : vector<13x32xf32> to vector<1x32xf32>
    %128 = vector.extract_strided_slice %7 {offsets = [8, 0], sizes = [1, 32], strides = [1, 1]} : vector<13x32xf32> to vector<1x32xf32>
    %cst_61 = arith.constant dense<0.000000e+00> : vector<8xf32>
    %129 = vector.multi_reduction <add>, %126, %cst_61 [1] : vector<8x32xf32> to vector<8xf32>
    %130 = vector.shape_cast %129 : vector<8xf32> to vector<8x1xf32>
    %cst_62 = arith.constant 3.200000e+01 : f32
    %131 = vector.broadcast %cst_62 : f32 to vector<8x1xf32>
    %132 = arith.divf %130, %131 : vector<8x1xf32>
    %133 = vector.broadcast %132 : vector<8x1xf32> to vector<8x32xf32>
    %134 = arith.subf %126, %133 : vector<8x32xf32>
    %135 = arith.mulf %134, %134 : vector<8x32xf32>
    %cst_63 = arith.constant dense<0.000000e+00> : vector<8xf32>
    %136 = vector.multi_reduction <add>, %135, %cst_63 [1] : vector<8x32xf32> to vector<8xf32>
    %137 = vector.shape_cast %136 : vector<8xf32> to vector<8x1xf32>
    %cst_64 = arith.constant 3.200000e+01 : f32
    %138 = vector.broadcast %cst_64 : f32 to vector<8x1xf32>
    %139 = arith.divf %137, %138 : vector<8x1xf32>
    %140 = vector.broadcast %132 : vector<8x1xf32> to vector<8x32xf32>
    %141 = arith.subf %126, %140 : vector<8x32xf32>
    %cst_65 = arith.constant 9.99999974E-6 : f32
    %142 = vector.broadcast %cst_65 : f32 to vector<8x1xf32>
    %143 = arith.addf %139, %142 : vector<8x1xf32>
    %144 = math.rsqrt %143 : vector<8x1xf32>
    %145 = vector.broadcast %144 : vector<8x1xf32> to vector<8x32xf32>
    %146 = arith.mulf %141, %145 : vector<8x32xf32>
    %147 = vector.broadcast %127 : vector<1x32xf32> to vector<8x32xf32>
    %148 = arith.mulf %146, %147 : vector<8x32xf32>
    %149 = vector.broadcast %128 : vector<1x32xf32> to vector<8x32xf32>
    %150 = arith.addf %148, %149 : vector<8x32xf32>
    %151 = arith.truncf %150 : vector<8x32xf32> to vector<8x32xbf16>
    %152 = vector.extract_strided_slice %7 {offsets = [3, 0], sizes = [1, 32], strides = [1, 1]} : vector<13x32xf32> to vector<1x32xf32>
    %153 = vector.extract_strided_slice %7 {offsets = [4, 0], sizes = [1, 32], strides = [1, 1]} : vector<13x32xf32> to vector<1x32xf32>
    %154 = vector.extract_strided_slice %7 {offsets = [5, 0], sizes = [1, 32], strides = [1, 1]} : vector<13x32xf32> to vector<1x32xf32>
    %cst_66 = arith.constant dense<0.000000e+00> : vector<8x32xf32>
    %155 = tpu.matmul %151, %17, %cst_66 {dimension_numbers = #tpu.dot_dimension_numbers<[1], [0], [0], [1], [0, 0, 1, 1], [], []>} : vector<8x32xbf16>, vector<32x32xbf16>, vector<8x32xf32> -> vector<8x32xf32>
    %156 = vector.broadcast %152 : vector<1x32xf32> to vector<8x32xf32>
    %157 = arith.addf %155, %156 : vector<8x32xf32>
    %cst_67 = arith.constant dense<0.000000e+00> : vector<8x32xf32>
    %158 = tpu.matmul %5, %19, %cst_67 {dimension_numbers = #tpu.dot_dimension_numbers<[1], [0], [0], [1], [0, 0, 1, 1], [], []>} : vector<8x32xbf16>, vector<32x32xbf16>, vector<8x32xf32> -> vector<8x32xf32>
    %cst_68 = arith.constant dense<0.000000e+00> : vector<8x32xf32>
    %159 = tpu.matmul %5, %21, %cst_68 {dimension_numbers = #tpu.dot_dimension_numbers<[1], [0], [0], [1], [0, 0, 1, 1], [], []>} : vector<8x32xbf16>, vector<32x32xbf16>, vector<8x32xf32> -> vector<8x32xf32>
    %160 = vector.broadcast %153 : vector<1x32xf32> to vector<8x32xf32>
    %161 = arith.addf %159, %160 : vector<8x32xf32>
    %162 = vector.shape_cast %157 : vector<8x32xf32> to vector<1x8x32xf32>
    %163 = vector.shape_cast %158 : vector<8x32xf32> to vector<1x8x32xf32>
    %164 = vector.shape_cast %161 : vector<8x32xf32> to vector<1x8x32xf32>
    %165 = vector.extract_strided_slice %162 {offsets = [0, 0, 0], sizes = [1, 8, 8], strides = [1, 1, 1]} : vector<1x8x32xf32> to vector<1x8x8xf32>
    %166 = arith.truncf %165 : vector<1x8x8xf32> to vector<1x8x8xbf16>
    %167 = vector.extract_strided_slice %163 {offsets = [0, 0, 0], sizes = [1, 8, 8], strides = [1, 1, 1]} : vector<1x8x32xf32> to vector<1x8x8xf32>
    %168 = arith.truncf %167 : vector<1x8x8xf32> to vector<1x8x8xbf16>
    %169 = vector.extract_strided_slice %164 {offsets = [0, 0, 0], sizes = [1, 8, 8], strides = [1, 1, 1]} : vector<1x8x32xf32> to vector<1x8x8xf32>
    %170 = arith.truncf %169 : vector<1x8x8xf32> to vector<1x8x8xbf16>
    "tpu.trace_start"() <{level = 10 : i32, message = "bqd,bkd->bqk"}> : () -> ()
    %cst_69 = arith.constant dense<0.000000e+00> : vector<1x8x8xf32>
    %171 = tpu.matmul %166, %168, %cst_69 {dimension_numbers = #tpu.dot_dimension_numbers<[2], [2], [1], [1], [0, 0, 0, 1, 1, 1], [0], [0]>} : vector<1x8x8xbf16>, vector<1x8x8xbf16>, vector<1x8x8xf32> -> vector<1x8x8xf32>
    "tpu.trace_stop"() : () -> ()
    %cst_70 = arith.constant dense<0xFF800000> : vector<1x8xf32>
    %172 = vector.multi_reduction <maximumf>, %171, %cst_70 [2] : vector<1x8x8xf32> to vector<1x8xf32>
    %173 = vector.shape_cast %172 : vector<1x8xf32> to vector<1x8x1xf32>
    %174 = vector.broadcast %173 : vector<1x8x1xf32> to vector<1x8x8xf32>
    %175 = arith.subf %171, %174 : vector<1x8x8xf32>
    %176 = math.exp %175 : vector<1x8x8xf32>
    %cst_71 = arith.constant dense<0.000000e+00> : vector<1x8xf32>
    %177 = vector.multi_reduction <add>, %176, %cst_71 [2] : vector<1x8x8xf32> to vector<1x8xf32>
    %178 = vector.shape_cast %177 : vector<1x8xf32> to vector<1x8x1xf32>
    %179 = tpu.reciprocal %178 {approx = true} : vector<1x8x1xf32> -> vector<1x8x1xf32>
    %180 = vector.broadcast %179 : vector<1x8x1xf32> to vector<1x8x8xf32>
    %181 = arith.mulf %176, %180 : vector<1x8x8xf32>
    %182 = arith.truncf %181 : vector<1x8x8xf32> to vector<1x8x8xbf16>
    "tpu.trace_start"() <{level = 10 : i32, message = "bqk,bkd->bqd"}> : () -> ()
    %cst_72 = arith.constant dense<0.000000e+00> : vector<1x8x8xf32>
    %183 = tpu.matmul %182, %170, %cst_72 {dimension_numbers = #tpu.dot_dimension_numbers<[2], [1], [1], [2], [0, 0, 0, 1, 1, 2], [0], [0]>} : vector<1x8x8xbf16>, vector<1x8x8xbf16>, vector<1x8x8xf32> -> vector<1x8x8xf32>
    "tpu.trace_stop"() : () -> ()
    %184 = vector.extract_strided_slice %162 {offsets = [0, 0, 8], sizes = [1, 8, 8], strides = [1, 1, 1]} : vector<1x8x32xf32> to vector<1x8x8xf32>
    %185 = arith.truncf %184 : vector<1x8x8xf32> to vector<1x8x8xbf16>
    %186 = vector.extract_strided_slice %163 {offsets = [0, 0, 8], sizes = [1, 8, 8], strides = [1, 1, 1]} : vector<1x8x32xf32> to vector<1x8x8xf32>
    %187 = arith.truncf %186 : vector<1x8x8xf32> to vector<1x8x8xbf16>
    %188 = vector.extract_strided_slice %164 {offsets = [0, 0, 8], sizes = [1, 8, 8], strides = [1, 1, 1]} : vector<1x8x32xf32> to vector<1x8x8xf32>
    %189 = arith.truncf %188 : vector<1x8x8xf32> to vector<1x8x8xbf16>
    "tpu.trace_start"() <{level = 10 : i32, message = "bqd,bkd->bqk"}> : () -> ()
    %cst_73 = arith.constant dense<0.000000e+00> : vector<1x8x8xf32>
    %190 = tpu.matmul %185, %187, %cst_73 {dimension_numbers = #tpu.dot_dimension_numbers<[2], [2], [1], [1], [0, 0, 0, 1, 1, 1], [0], [0]>} : vector<1x8x8xbf16>, vector<1x8x8xbf16>, vector<1x8x8xf32> -> vector<1x8x8xf32>
    "tpu.trace_stop"() : () -> ()
    %cst_74 = arith.constant dense<0xFF800000> : vector<1x8xf32>
    %191 = vector.multi_reduction <maximumf>, %190, %cst_74 [2] : vector<1x8x8xf32> to vector<1x8xf32>
    %192 = vector.shape_cast %191 : vector<1x8xf32> to vector<1x8x1xf32>
    %193 = vector.broadcast %192 : vector<1x8x1xf32> to vector<1x8x8xf32>
    %194 = arith.subf %190, %193 : vector<1x8x8xf32>
    %195 = math.exp %194 : vector<1x8x8xf32>
    %cst_75 = arith.constant dense<0.000000e+00> : vector<1x8xf32>
    %196 = vector.multi_reduction <add>, %195, %cst_75 [2] : vector<1x8x8xf32> to vector<1x8xf32>
    %197 = vector.shape_cast %196 : vector<1x8xf32> to vector<1x8x1xf32>
    %198 = tpu.reciprocal %197 {approx = true} : vector<1x8x1xf32> -> vector<1x8x1xf32>
    %199 = vector.broadcast %198 : vector<1x8x1xf32> to vector<1x8x8xf32>
    %200 = arith.mulf %195, %199 : vector<1x8x8xf32>
    %201 = arith.truncf %200 : vector<1x8x8xf32> to vector<1x8x8xbf16>
    "tpu.trace_start"() <{level = 10 : i32, message = "bqk,bkd->bqd"}> : () -> ()
    %cst_76 = arith.constant dense<0.000000e+00> : vector<1x8x8xf32>
    %202 = tpu.matmul %201, %189, %cst_76 {dimension_numbers = #tpu.dot_dimension_numbers<[2], [1], [1], [2], [0, 0, 0, 1, 1, 2], [0], [0]>} : vector<1x8x8xbf16>, vector<1x8x8xbf16>, vector<1x8x8xf32> -> vector<1x8x8xf32>
    "tpu.trace_stop"() : () -> ()
    %203 = vector.extract_strided_slice %162 {offsets = [0, 0, 16], sizes = [1, 8, 8], strides = [1, 1, 1]} : vector<1x8x32xf32> to vector<1x8x8xf32>
    %204 = arith.truncf %203 : vector<1x8x8xf32> to vector<1x8x8xbf16>
    %205 = vector.extract_strided_slice %163 {offsets = [0, 0, 16], sizes = [1, 8, 8], strides = [1, 1, 1]} : vector<1x8x32xf32> to vector<1x8x8xf32>
    %206 = arith.truncf %205 : vector<1x8x8xf32> to vector<1x8x8xbf16>
    %207 = vector.extract_strided_slice %164 {offsets = [0, 0, 16], sizes = [1, 8, 8], strides = [1, 1, 1]} : vector<1x8x32xf32> to vector<1x8x8xf32>
    %208 = arith.truncf %207 : vector<1x8x8xf32> to vector<1x8x8xbf16>
    "tpu.trace_start"() <{level = 10 : i32, message = "bqd,bkd->bqk"}> : () -> ()
    %cst_77 = arith.constant dense<0.000000e+00> : vector<1x8x8xf32>
    %209 = tpu.matmul %204, %206, %cst_77 {dimension_numbers = #tpu.dot_dimension_numbers<[2], [2], [1], [1], [0, 0, 0, 1, 1, 1], [0], [0]>} : vector<1x8x8xbf16>, vector<1x8x8xbf16>, vector<1x8x8xf32> -> vector<1x8x8xf32>
    "tpu.trace_stop"() : () -> ()
    %cst_78 = arith.constant dense<0xFF800000> : vector<1x8xf32>
    %210 = vector.multi_reduction <maximumf>, %209, %cst_78 [2] : vector<1x8x8xf32> to vector<1x8xf32>
    %211 = vector.shape_cast %210 : vector<1x8xf32> to vector<1x8x1xf32>
    %212 = vector.broadcast %211 : vector<1x8x1xf32> to vector<1x8x8xf32>
    %213 = arith.subf %209, %212 : vector<1x8x8xf32>
    %214 = math.exp %213 : vector<1x8x8xf32>
    %cst_79 = arith.constant dense<0.000000e+00> : vector<1x8xf32>
    %215 = vector.multi_reduction <add>, %214, %cst_79 [2] : vector<1x8x8xf32> to vector<1x8xf32>
    %216 = vector.shape_cast %215 : vector<1x8xf32> to vector<1x8x1xf32>
    %217 = tpu.reciprocal %216 {approx = true} : vector<1x8x1xf32> -> vector<1x8x1xf32>
    %218 = vector.broadcast %217 : vector<1x8x1xf32> to vector<1x8x8xf32>
    %219 = arith.mulf %214, %218 : vector<1x8x8xf32>
    %220 = arith.truncf %219 : vector<1x8x8xf32> to vector<1x8x8xbf16>
    "tpu.trace_start"() <{level = 10 : i32, message = "bqk,bkd->bqd"}> : () -> ()
    %cst_80 = arith.constant dense<0.000000e+00> : vector<1x8x8xf32>
    %221 = tpu.matmul %220, %208, %cst_80 {dimension_numbers = #tpu.dot_dimension_numbers<[2], [1], [1], [2], [0, 0, 0, 1, 1, 2], [0], [0]>} : vector<1x8x8xbf16>, vector<1x8x8xbf16>, vector<1x8x8xf32> -> vector<1x8x8xf32>
    "tpu.trace_stop"() : () -> ()
    %222 = vector.extract_strided_slice %162 {offsets = [0, 0, 24], sizes = [1, 8, 8], strides = [1, 1, 1]} : vector<1x8x32xf32> to vector<1x8x8xf32>
    %223 = arith.truncf %222 : vector<1x8x8xf32> to vector<1x8x8xbf16>
    %224 = vector.extract_strided_slice %163 {offsets = [0, 0, 24], sizes = [1, 8, 8], strides = [1, 1, 1]} : vector<1x8x32xf32> to vector<1x8x8xf32>
    %225 = arith.truncf %224 : vector<1x8x8xf32> to vector<1x8x8xbf16>
    %226 = vector.extract_strided_slice %164 {offsets = [0, 0, 24], sizes = [1, 8, 8], strides = [1, 1, 1]} : vector<1x8x32xf32> to vector<1x8x8xf32>
    %227 = arith.truncf %226 : vector<1x8x8xf32> to vector<1x8x8xbf16>
    "tpu.trace_start"() <{level = 10 : i32, message = "bqd,bkd->bqk"}> : () -> ()
    %cst_81 = arith.constant dense<0.000000e+00> : vector<1x8x8xf32>
    %228 = tpu.matmul %223, %225, %cst_81 {dimension_numbers = #tpu.dot_dimension_numbers<[2], [2], [1], [1], [0, 0, 0, 1, 1, 1], [0], [0]>} : vector<1x8x8xbf16>, vector<1x8x8xbf16>, vector<1x8x8xf32> -> vector<1x8x8xf32>
    "tpu.trace_stop"() : () -> ()
    %cst_82 = arith.constant dense<0xFF800000> : vector<1x8xf32>
    %229 = vector.multi_reduction <maximumf>, %228, %cst_82 [2] : vector<1x8x8xf32> to vector<1x8xf32>
    %230 = vector.shape_cast %229 : vector<1x8xf32> to vector<1x8x1xf32>
    %231 = vector.broadcast %230 : vector<1x8x1xf32> to vector<1x8x8xf32>
    %232 = arith.subf %228, %231 : vector<1x8x8xf32>
    %233 = math.exp %232 : vector<1x8x8xf32>
    %cst_83 = arith.constant dense<0.000000e+00> : vector<1x8xf32>
    %234 = vector.multi_reduction <add>, %233, %cst_83 [2] : vector<1x8x8xf32> to vector<1x8xf32>
    %235 = vector.shape_cast %234 : vector<1x8xf32> to vector<1x8x1xf32>
    %236 = tpu.reciprocal %235 {approx = true} : vector<1x8x1xf32> -> vector<1x8x1xf32>
    %237 = vector.broadcast %236 : vector<1x8x1xf32> to vector<1x8x8xf32>
    %238 = arith.mulf %233, %237 : vector<1x8x8xf32>
    %239 = arith.truncf %238 : vector<1x8x8xf32> to vector<1x8x8xbf16>
    "tpu.trace_start"() <{level = 10 : i32, message = "bqk,bkd->bqd"}> : () -> ()
    %cst_84 = arith.constant dense<0.000000e+00> : vector<1x8x8xf32>
    %240 = tpu.matmul %239, %227, %cst_84 {dimension_numbers = #tpu.dot_dimension_numbers<[2], [1], [1], [2], [0, 0, 0, 1, 1, 2], [0], [0]>} : vector<1x8x8xbf16>, vector<1x8x8xbf16>, vector<1x8x8xf32> -> vector<1x8x8xf32>
    "tpu.trace_stop"() : () -> ()
    %241 = tpu.concatenate %183, %202, %221, %240 in 2 : vector<1x8x8xf32>, vector<1x8x8xf32>, vector<1x8x8xf32>, vector<1x8x8xf32> -> vector<1x8x32xf32>
    %242 = vector.shape_cast %241 : vector<1x8x32xf32> to vector<8x32xf32>
    %243 = arith.truncf %242 : vector<8x32xf32> to vector<8x32xbf16>
    %cst_85 = arith.constant dense<0.000000e+00> : vector<8x32xf32>
    %244 = tpu.matmul %243, %23, %cst_85 {dimension_numbers = #tpu.dot_dimension_numbers<[1], [0], [0], [1], [0, 0, 1, 1], [], []>} : vector<8x32xbf16>, vector<32x32xbf16>, vector<8x32xf32> -> vector<8x32xf32>
    %245 = vector.broadcast %154 : vector<1x32xf32> to vector<8x32xf32>
    %246 = arith.addf %244, %245 : vector<8x32xf32>
    %247 = arith.addf %150, %246 : vector<8x32xf32>
    %248 = vector.extract_strided_slice %7 {offsets = [9, 0], sizes = [1, 32], strides = [1, 1]} : vector<13x32xf32> to vector<1x32xf32>
    %249 = vector.extract_strided_slice %7 {offsets = [10, 0], sizes = [1, 32], strides = [1, 1]} : vector<13x32xf32> to vector<1x32xf32>
    %cst_86 = arith.constant dense<0.000000e+00> : vector<8xf32>
    %250 = vector.multi_reduction <add>, %247, %cst_86 [1] : vector<8x32xf32> to vector<8xf32>
    %251 = vector.shape_cast %250 : vector<8xf32> to vector<8x1xf32>
    %cst_87 = arith.constant 3.200000e+01 : f32
    %252 = vector.broadcast %cst_87 : f32 to vector<8x1xf32>
    %253 = arith.divf %251, %252 : vector<8x1xf32>
    %254 = vector.broadcast %253 : vector<8x1xf32> to vector<8x32xf32>
    %255 = arith.subf %247, %254 : vector<8x32xf32>
    %256 = arith.mulf %255, %255 : vector<8x32xf32>
    %cst_88 = arith.constant dense<0.000000e+00> : vector<8xf32>
    %257 = vector.multi_reduction <add>, %256, %cst_88 [1] : vector<8x32xf32> to vector<8xf32>
    %258 = vector.shape_cast %257 : vector<8xf32> to vector<8x1xf32>
    %cst_89 = arith.constant 3.200000e+01 : f32
    %259 = vector.broadcast %cst_89 : f32 to vector<8x1xf32>
    %260 = arith.divf %258, %259 : vector<8x1xf32>
    %261 = vector.broadcast %253 : vector<8x1xf32> to vector<8x32xf32>
    %262 = arith.subf %247, %261 : vector<8x32xf32>
    %cst_90 = arith.constant 9.99999974E-6 : f32
    %263 = vector.broadcast %cst_90 : f32 to vector<8x1xf32>
    %264 = arith.addf %260, %263 : vector<8x1xf32>
    %265 = math.rsqrt %264 : vector<8x1xf32>
    %266 = vector.broadcast %265 : vector<8x1xf32> to vector<8x32xf32>
    %267 = arith.mulf %262, %266 : vector<8x32xf32>
    %268 = vector.broadcast %248 : vector<1x32xf32> to vector<8x32xf32>
    %269 = arith.mulf %267, %268 : vector<8x32xf32>
    %270 = vector.broadcast %249 : vector<1x32xf32> to vector<8x32xf32>
    %271 = arith.addf %269, %270 : vector<8x32xf32>
    %272 = arith.truncf %271 : vector<8x32xf32> to vector<8x32xbf16>
    %cst_91 = arith.constant dense<0.000000e+00> : vector<8x64xf32>
    %273 = tpu.matmul %272, %25, %cst_91 {dimension_numbers = #tpu.dot_dimension_numbers<[1], [0], [0], [1], [0, 0, 1, 1], [], []>} : vector<8x32xbf16>, vector<32x64xbf16>, vector<8x64xf32> -> vector<8x64xf32>
    %274 = vector.broadcast %27 : vector<1x64xf32> to vector<8x64xf32>
    %275 = arith.addf %273, %274 : vector<8x64xf32>
    %cst_92 = arith.constant 0.000000e+00 : f32
    %276 = vector.broadcast %cst_92 : f32 to vector<8x64xf32>
    %277 = arith.maximumf %275, %276 : vector<8x64xf32>
    %278 = arith.truncf %277 : vector<8x64xf32> to vector<8x64xbf16>
    %cst_93 = arith.constant dense<0.000000e+00> : vector<8x32xf32>
    %279 = tpu.matmul %278, %29, %cst_93 {dimension_numbers = #tpu.dot_dimension_numbers<[1], [0], [0], [1], [0, 0, 1, 1], [], []>} : vector<8x64xbf16>, vector<64x32xbf16>, vector<8x32xf32> -> vector<8x32xf32>
    %280 = vector.extract_strided_slice %7 {offsets = [6, 0], sizes = [1, 32], strides = [1, 1]} : vector<13x32xf32> to vector<1x32xf32>
    %281 = vector.broadcast %280 : vector<1x32xf32> to vector<8x32xf32>
    %282 = arith.addf %279, %281 : vector<8x32xf32>
    %283 = arith.addf %271, %282 : vector<8x32xf32>
    %284 = vector.extract_strided_slice %7 {offsets = [11, 0], sizes = [1, 32], strides = [1, 1]} : vector<13x32xf32> to vector<1x32xf32>
    %285 = vector.extract_strided_slice %7 {offsets = [12, 0], sizes = [1, 32], strides = [1, 1]} : vector<13x32xf32> to vector<1x32xf32>
    %cst_94 = arith.constant dense<0.000000e+00> : vector<8xf32>
    %286 = vector.multi_reduction <add>, %283, %cst_94 [1] : vector<8x32xf32> to vector<8xf32>
    %287 = vector.shape_cast %286 : vector<8xf32> to vector<8x1xf32>
    %cst_95 = arith.constant 3.200000e+01 : f32
    %288 = vector.broadcast %cst_95 : f32 to vector<8x1xf32>
    %289 = arith.divf %287, %288 : vector<8x1xf32>
    %290 = vector.broadcast %289 : vector<8x1xf32> to vector<8x32xf32>
    %291 = arith.subf %283, %290 : vector<8x32xf32>
    %292 = arith.mulf %291, %291 : vector<8x32xf32>
    %cst_96 = arith.constant dense<0.000000e+00> : vector<8xf32>
    %293 = vector.multi_reduction <add>, %292, %cst_96 [1] : vector<8x32xf32> to vector<8xf32>
    %294 = vector.shape_cast %293 : vector<8xf32> to vector<8x1xf32>
    %cst_97 = arith.constant 3.200000e+01 : f32
    %295 = vector.broadcast %cst_97 : f32 to vector<8x1xf32>
    %296 = arith.divf %294, %295 : vector<8x1xf32>
    %297 = vector.broadcast %289 : vector<8x1xf32> to vector<8x32xf32>
    %298 = arith.subf %283, %297 : vector<8x32xf32>
    %cst_98 = arith.constant 9.99999974E-6 : f32
    %299 = vector.broadcast %cst_98 : f32 to vector<8x1xf32>
    %300 = arith.addf %296, %299 : vector<8x1xf32>
    %301 = math.rsqrt %300 : vector<8x1xf32>
    %302 = vector.broadcast %301 : vector<8x1xf32> to vector<8x32xf32>
    %303 = arith.mulf %298, %302 : vector<8x32xf32>
    %304 = vector.broadcast %284 : vector<1x32xf32> to vector<8x32xf32>
    %305 = arith.mulf %303, %304 : vector<8x32xf32>
    %306 = vector.broadcast %285 : vector<1x32xf32> to vector<8x32xf32>
    %307 = arith.addf %305, %306 : vector<8x32xf32>
    %c1_i32 = arith.constant 1 : i32
    %308 = arith.cmpi slt, %arg1, %c1_i32 : i32
    %309 = arith.extui %308 : i1 to i32
    %c0_i32_99 = arith.constant 0 : i32
    %310 = arith.cmpi ne, %309, %c0_i32_99 : i32
    scf.if %310 {
      %c0_102 = arith.constant 0 : index
      %c0_103 = arith.constant 0 : index
      %314 = vector.load %arg11[%c0_102, %c0_103] : memref<8x32xf32, #tpu.memory_space<vmem>>, vector<8x32xf32>
      tpu.vector_store %arg11[%c0_102, %c0_103], %307 {strides = array<i32>} : memref<8x32xf32, #tpu.memory_space<vmem>>, vector<8x32xf32>,
    } else {
    }
    %c1_i32_100 = arith.constant 1 : i32
    %311 = arith.cmpi eq, %arg1, %c1_i32_100 : i32
    %312 = arith.extui %311 : i1 to i32
    %c0_i32_101 = arith.constant 0 : i32
    %313 = arith.cmpi ne, %312, %c0_i32_101 : i32
    scf.if %313 {
      %c0_102 = arith.constant 0 : index
      %c0_103 = arith.constant 0 : index
      %314 = vector.load %arg9[%c0_102, %c0_103] : memref<2x32xf32, #tpu.memory_space<vmem>>, vector<1x32xf32>
      %c1_104 = arith.constant 1 : index
      %c0_105 = arith.constant 0 : index
      %315 = vector.load %arg9[%c1_104, %c0_105] : memref<2x32xf32, #tpu.memory_space<vmem>>, vector<1x32xf32>
      %cst_106 = arith.constant dense<0.000000e+00> : vector<8xf32>
      %316 = vector.multi_reduction <add>, %307, %cst_106 [1] : vector<8x32xf32> to vector<8xf32>
      %317 = vector.shape_cast %316 : vector<8xf32> to vector<8x1xf32>
      %cst_107 = arith.constant 3.200000e+01 : f32
      %318 = vector.broadcast %cst_107 : f32 to vector<8x1xf32>
      %319 = arith.divf %317, %318 : vector<8x1xf32>
      %320 = vector.broadcast %319 : vector<8x1xf32> to vector<8x32xf32>
      %321 = arith.subf %307, %320 : vector<8x32xf32>
      %322 = arith.mulf %321, %321 : vector<8x32xf32>
      %cst_108 = arith.constant dense<0.000000e+00> : vector<8xf32>
      %323 = vector.multi_reduction <add>, %322, %cst_108 [1] : vector<8x32xf32> to vector<8xf32>
      %324 = vector.shape_cast %323 : vector<8xf32> to vector<8x1xf32>
      %cst_109 = arith.constant 3.200000e+01 : f32
      %325 = vector.broadcast %cst_109 : f32 to vector<8x1xf32>
      %326 = arith.divf %324, %325 : vector<8x1xf32>
      %327 = vector.broadcast %319 : vector<8x1xf32> to vector<8x32xf32>
      %328 = arith.subf %307, %327 : vector<8x32xf32>
      %cst_110 = arith.constant 9.99999974E-6 : f32
      %329 = vector.broadcast %cst_110 : f32 to vector<8x1xf32>
      %330 = arith.addf %326, %329 : vector<8x1xf32>
      %331 = math.rsqrt %330 : vector<8x1xf32>
      %332 = vector.broadcast %331 : vector<8x1xf32> to vector<8x32xf32>
      %333 = arith.mulf %328, %332 : vector<8x32xf32>
      %334 = vector.broadcast %314 : vector<1x32xf32> to vector<8x32xf32>
      %335 = arith.mulf %333, %334 : vector<8x32xf32>
      %336 = vector.broadcast %315 : vector<1x32xf32> to vector<8x32xf32>
      %337 = arith.addf %335, %336 : vector<8x32xf32>
      %338 = vector.shape_cast %337 : vector<8x32xf32> to vector<1x8x32xf32>
      %c0_111 = arith.constant 0 : index
      %c0_112 = arith.constant 0 : index
      %c0_113 = arith.constant 0 : index
      %339 = vector.load %arg10[%c0_111, %c0_112, %c0_113] : memref<1x8x32xf32, #tpu.memory_space<vmem>>, vector<1x8x32xf32>
      tpu.vector_store %arg10[%c0_111, %c0_112, %c0_113], %338 {strides = array<i32>} : memref<1x8x32xf32, #tpu.memory_space<vmem>>, vector<1x8x32xf32>,
    } else {
    }
    return
  }
  func.func @transform_0(%arg0: i32, %arg1: i32) -> (i32, i32, i32) {
    %c0_i32 = arith.constant 0 : i32
    %c0_i32_0 = arith.constant 0 : i32
    %c0_i32_1 = arith.constant 0 : i32
    return %arg0, %c0_i32, %c0_i32_0 : i32, i32, i32
  }
  func.func @transform_1(%arg0: i32, %arg1: i32) -> (i32, i32, i32) {
    %c0_i32 = arith.constant 0 : i32
    %c0_i32_0 = arith.constant 0 : i32
    %c0_i32_1 = arith.constant 0 : i32
    return %arg0, %c0_i32, %c0_i32_0 : i32, i32, i32
  }
  func.func @transform_2(%arg0: i32, %arg1: i32) -> (i32, i32, i32, i32) {
    %c0_i32 = arith.constant 0 : i32
    %c0_i32_0 = arith.constant 0 : i32
    %c0_i32_1 = arith.constant 0 : i32
    %c0_i32_2 = arith.constant 0 : i32
    return %arg1, %c0_i32, %c0_i32_0, %c0_i32_1 : i32, i32, i32, i32
  }
  func.func @transform_3(%arg0: i32, %arg1: i32) -> (i32, i32, i32) {
    %c0_i32 = arith.constant 0 : i32
    %c0_i32_0 = arith.constant 0 : i32
    %c0_i32_1 = arith.constant 0 : i32
    return %arg1, %c0_i32, %c0_i32_0 : i32, i32, i32
  }
  func.func @transform_4(%arg0: i32, %arg1: i32) -> (i32, i32, i32) {
    %c0_i32 = arith.constant 0 : i32
    %c0_i32_0 = arith.constant 0 : i32
    %c0_i32_1 = arith.constant 0 : i32
    return %arg1, %c0_i32, %c0_i32_0 : i32, i32, i32
  }
  func.func @transform_5(%arg0: i32, %arg1: i32) -> (i32, i32, i32) {
    %c0_i32 = arith.constant 0 : i32
    %c0_i32_0 = arith.constant 0 : i32
    %c0_i32_1 = arith.constant 0 : i32
    return %arg1, %c0_i32, %c0_i32_0 : i32, i32, i32
  }
  func.func @transform_6(%arg0: i32, %arg1: i32) -> (i32, i32, i32) {
    %c0_i32 = arith.constant 0 : i32
    %c0_i32_0 = arith.constant 0 : i32
    %c0_i32_1 = arith.constant 0 : i32
    return %arg1, %c0_i32, %c0_i32_0 : i32, i32, i32
  }
  func.func @transform_7(%arg0: i32, %arg1: i32) -> (i32, i32) {
    %c0_i32 = arith.constant 0 : i32
    %c0_i32_0 = arith.constant 0 : i32
    %c0_i32_1 = arith.constant 0 : i32
    return %c0_i32, %c0_i32_0 : i32, i32
  }
  func.func @transform_8(%arg0: i32, %arg1: i32) -> (i32, i32, i32) {
    %c0_i32 = arith.constant 0 : i32
    %c0_i32_0 = arith.constant 0 : i32
    %c0_i32_1 = arith.constant 0 : i32
    return %arg0, %c0_i32, %c0_i32_0 : i32, i32, i32
  }
}

</mosaic_0001>

<llo_original>
// kernel: tpu_custom_call.1
$region0: #{tpu_custom_call.1}
  #allocation0 [shape = 'u32[]', space=smem, size = 0x4, offset = 0x4, fixed_abs, tag = 'smem constant byte address 0x4 - core index']
  #allocation1 [shape = 'u32[144,128]{1,0:T(1,128)}', space=vmem, size = 0x12000, scoped, tag = 'internal scratch']
  #allocation2 [shape = 'f32[8,32]{1,0:T(8,128)}', space=vmem, size = 0x1000, scoped, tag = 'scratch operand']
  %s0 = inlined_call_operand.vmem [shape: bf16[2,8,32], index: 0, kind: input, shape index: {}]
  %s1 = inlined_call_operand.vmem [shape: bf16[2,8,32], index: 1, kind: input, shape index: {}]
  %s2 = inlined_call_operand.hbm [shape: bf16[2,8,32,32], index: 2, kind: input, shape index: {}]
  %s3 = inlined_call_operand.vmem [shape: f32[2,13,32], index: 3, kind: input, shape index: {}]
  %s4 = inlined_call_operand.vmem [shape: bf16[2,32,64], index: 4, kind: input, shape index: {}]
  %s5 = inlined_call_operand.vmem [shape: f32[2,1,64], index: 5, kind: input, shape index: {}]
  %s6 = inlined_call_operand.vmem [shape: bf16[2,64,32], index: 6, kind: input, shape index: {}]
  %s7 = inlined_call_operand.vmem [shape: f32[2,32], index: 7, kind: input, shape index: {}]
  %s8 = inlined_call_operand.hbm [shape: f32[2,8,32], index: 8, kind: output, shape index: {}]
  %s9 = sld [smem:[#allocation0]]
  $region81: #{tpu_custom_call.1} parent=0
    _
  %s11 = ssub.s32 1, %s9
  %s12 = scalar_select 0, %s11, %s9
  $region1: #{tpu_custom_call.1} parent=0
    #allocation3 [shape = 'u8[131072]{0}', space=vmem, size = 0x20000, scoped, tag = 'input window, operand 2']
    #allocation4 [shape = 's32[2]{0}', space=sflag, size = 0x8, scoped, tag = 'scoped memory for tpu_custom_call.1']
    #allocation5 [shape = 's32[2]{0}', space=sflag, size = 0x8, scoped, tag = 'scoped memory for tpu_custom_call.1']
    #allocation6 [shape = 'u8[8192]{0}', space=vmem, size = 0x2000, scoped, tag = 'output window, operand 0']
    %13 = vsyncpa [#allocation4], 0
    %s14 = scalar_lea.sflag [#allocation4], 1
    %15 = vsyncpa %s14, 0
    %16 = vsyncpa [#allocation5], 0
    %s17 = scalar_lea.sflag [#allocation5], 1
    %18 = vsyncpa %s17, 0
    loop: start=0, step=1, limit=6
    $region2: #{tpu_custom_call.1} parent=1 // loop_pre_header
      _
    $region3: #{tpu_custom_call.1} parent=1 // loop_header
      %s20 = sphi 0, %s24
      %p21 = scmp.ge.s32.totalorder %s20, 6
      %s27 = sphi 0, %s39
      %s28 = sphi 0, %s35
      %s29 = sphi 0, %s27
      %s30 = sphi 0, %s28
      %s31 = sphi 0, %s29
      %s32 = sphi 0, %s30
      %s42 = sphi 0, %s44
      %s45 = sphi 0, %s42
      %s46 = sphi 0, %s45
      %s62 = sphi 0, %s46
      %s68 = sphi 0, %s70
      %s71 = sphi 0, %s68
      %s72 = sphi 0, %s71
      %s88 = sphi 0, %s72
      %s94 = sphi 0, %s96
      %s97 = sphi 0, %s94
      %s98 = sphi 0, %s97
      %s114 = sphi 0, %s98
      %s120 = sphi 0, %s122
      %s123 = sphi 0, %s120
      %s124 = sphi 0, %s123
      %s140 = sphi 0, %s124
      %s146 = sphi 0, %s148
      %s149 = sphi 0, %s146
      %s150 = sphi 0, %s149
      %s166 = sphi 0, %s150
      %s172 = sphi 0, %s174
      %s175 = sphi 0, %s172
      %s176 = sphi 0, %s175
      %s192 = sphi 0, %s176
      %s198 = sphi 0, %s200
      %s201 = sphi 0, %s198
      %s202 = sphi 0, %s201
      %s218 = sphi 0, %s202
      %s222 = sphi 0, %s222
      %s224 = sphi 0, %s222
      %s225 = sphi 0, %s224
      %s239 = sphi 0, %s225
      %s245 = sphi 0, %s247
      %s248 = sphi 0, %s245
      %s249 = sphi 0, %s248
      %s265 = sphi 0, %s249
    $region4: #{tpu_custom_call.1} parent=1 // loop_header_branch
      %23 = sbr.rel (%p21) target = $region8
    $region5: #{tpu_custom_call.1} parent=1 // loop_body
      %s25 = ssub.s32 %s20, 1
      %s26 = ssub.s32 %s20, 2
      %s33 = sadd.s32 1, %s28
      %p34 = scmp.ge.s32.totalorder %s33, 2
      %s35 = scalar_select %p34, 0, %s33
      %s36 = sadd.s32 1, %s27
      %s37 = scalar_select %p34, %s36, %s27
      %p38 = scmp.ge.s32.totalorder %s37, 2
      %s39 = scalar_select %p38, 0, %s37
      %s40 = ssub.s32 %s27, %s39
      %p41 = scmp.eq.s32.totalorder %s40, 0
      %s43 = sadd.s32 %s42, 1
      %s44 = scalar_select %p41, %s42, %s43
      %p47 = pneg %p41
      %p48 = scmp.eq.s32.totalorder %s20, 3
      %p49 = por %p47, %p48
      %p50 = scmp.ne.s32.totalorder %s42, %s45
      %p51 = scmp.eq.s32.totalorder %s20, 0
      %p52 = por %p50, %p51
      %p53 = scmp.ne.s32.totalorder %s42, %s45
      %p54 = scmp.eq.s32.totalorder %s25, 3
      %p55 = por %p53, %p54
      %p56 = scmp.ne.s32.totalorder %s45, %s46
      %p57 = scmp.eq.s32.totalorder %s25, 0
      %p58 = por %p56, %p57
      %p59 = scmp.ne.s32.totalorder %s45, %s46
      %p60 = scmp.eq.s32.totalorder %s26, 3
      %p61 = por %p59, %p60
      %p63 = scmp.ne.s32.totalorder %s46, %s62
      %p64 = scmp.eq.s32.totalorder %s26, 0
      %p65 = por %p63, %p64
      %s66 = ssub.s32 %s27, %s39
      %p67 = scmp.eq.s32.totalorder %s66, 0
      %s69 = sadd.s32 %s68, 1
      %s70 = scalar_select %p67, %s68, %s69
      %p73 = pneg %p67
      %p74 = scmp.eq.s32.totalorder %s20, 3
      %p75 = por %p73, %p74
      %p76 = scmp.ne.s32.totalorder %s68, %s71
      %p77 = scmp.eq.s32.totalorder %s20, 0
      %p78 = por %p76, %p77
      %p79 = scmp.ne.s32.totalorder %s68, %s71
      %p80 = scmp.eq.s32.totalorder %s25, 3
      %p81 = por %p79, %p80
      %p82 = scmp.ne.s32.totalorder %s71, %s72
      %p83 = scmp.eq.s32.totalorder %s25, 0
      %p84 = por %p82, %p83
      %p85 = scmp.ne.s32.totalorder %s71, %s72
      %p86 = scmp.eq.s32.totalorder %s26, 3
      %p87 = por %p85, %p86
      %p89 = scmp.ne.s32.totalorder %s72, %s88
      %p90 = scmp.eq.s32.totalorder %s26, 0
      %p91 = por %p89, %p90
      %s92 = ssub.s32 %s28, %s35
      %p93 = scmp.eq.s32.totalorder %s92, 0
      %s95 = sadd.s32 %s94, 1
      %s96 = scalar_select %p93, %s94, %s95
      %p99 = pneg %p93
      %p100 = scmp.eq.s32.totalorder %s20, 3
      %p101 = por %p99, %p100
      %p102 = scmp.ne.s32.totalorder %s94, %s97
      %p103 = scmp.eq.s32.totalorder %s20, 0
      %p104 = por %p102, %p103
      %p105 = scmp.ne.s32.totalorder %s94, %s97
      %p106 = scmp.eq.s32.totalorder %s25, 3
      %p107 = por %p105, %p106
      %p108 = scmp.ne.s32.totalorder %s97, %s98
      %p109 = scmp.eq.s32.totalorder %s25, 0
      %p110 = por %p108, %p109
      %p111 = scmp.ne.s32.totalorder %s97, %s98
      %p112 = scmp.eq.s32.totalorder %s26, 3
      %p113 = por %p111, %p112
      %p115 = scmp.ne.s32.totalorder %s98, %s114
      %p116 = scmp.eq.s32.totalorder %s26, 0
      %p117 = por %p115, %p116
      %s118 = ssub.s32 %s28, %s35
      %p119 = scmp.eq.s32.totalorder %s118, 0
      %s121 = sadd.s32 %s120, 1
      %s122 = scalar_select %p119, %s120, %s121
      %p125 = pneg %p119
      %p126 = scmp.eq.s32.totalorder %s20, 3
      %p127 = por %p125, %p126
      %p128 = scmp.ne.s32.totalorder %s120, %s123
      %p129 = scmp.eq.s32.totalorder %s20, 0
      %p130 = por %p128, %p129
      %p131 = scmp.ne.s32.totalorder %s120, %s123
      %p132 = scmp.eq.s32.totalorder %s25, 3
      %p133 = por %p131, %p132
      %p134 = scmp.ne.s32.totalorder %s123, %s124
      %p135 = scmp.eq.s32.totalorder %s25, 0
      %p136 = por %p134, %p135
      %p137 = scmp.ne.s32.totalorder %s123, %s124
      %p138 = scmp.eq.s32.totalorder %s26, 3
      %p139 = por %p137, %p138
      %p141 = scmp.ne.s32.totalorder %s124, %s140
      %p142 = scmp.eq.s32.totalorder %s26, 0
      %p143 = por %p141, %p142
      %s144 = ssub.s32 %s28, %s35
      %p145 = scmp.eq.s32.totalorder %s144, 0
      %s147 = sadd.s32 %s146, 1
      %s148 = scalar_select %p145, %s146, %s147
      %p151 = pneg %p145
      %p152 = scmp.eq.s32.totalorder %s20, 3
      %p153 = por %p151, %p152
      %p154 = scmp.ne.s32.totalorder %s146, %s149
      %p155 = scmp.eq.s32.totalorder %s20, 0
      %p156 = por %p154, %p155
      %p157 = scmp.ne.s32.totalorder %s146, %s149
      %p158 = scmp.eq.s32.totalorder %s25, 3
      %p159 = por %p157, %p158
      %p160 = scmp.ne.s32.totalorder %s149, %s150
      %p161 = scmp.eq.s32.totalorder %s25, 0
      %p162 = por %p160, %p161
      %p163 = scmp.ne.s32.totalorder %s149, %s150
      %p164 = scmp.eq.s32.totalorder %s26, 3
      %p165 = por %p163, %p164
      %p167 = scmp.ne.s32.totalorder %s150, %s166
      %p168 = scmp.eq.s32.totalorder %s26, 0
      %p169 = por %p167, %p168
      %s170 = ssub.s32 %s28, %s35
      %p171 = scmp.eq.s32.totalorder %s170, 0
      %s173 = sadd.s32 %s172, 1
      %s174 = scalar_select %p171, %s172, %s173
      %p177 = pneg %p171
      %p178 = scmp.eq.s32.totalorder %s20, 3
      %p179 = por %p177, %p178
      %p180 = scmp.ne.s32.totalorder %s172, %s175
      %p181 = scmp.eq.s32.totalorder %s20, 0
      %p182 = por %p180, %p181
      %p183 = scmp.ne.s32.totalorder %s172, %s175
      %p184 = scmp.eq.s32.totalorder %s25, 3
      %p185 = por %p183, %p184
      %p186 = scmp.ne.s32.totalorder %s175, %s176
      %p187 = scmp.eq.s32.totalorder %s25, 0
      %p188 = por %p186, %p187
      %p189 = scmp.ne.s32.totalorder %s175, %s176
      %p190 = scmp.eq.s32.totalorder %s26, 3
      %p191 = por %p189, %p190
      %p193 = scmp.ne.s32.totalorder %s176, %s192
      %p194 = scmp.eq.s32.totalorder %s26, 0
      %p195 = por %p193, %p194
      %s196 = ssub.s32 %s28, %s35
      %p197 = scmp.eq.s32.totalorder %s196, 0
      %s199 = sadd.s32 %s198, 1
      %s200 = scalar_select %p197, %s198, %s199
      %p203 = pneg %p197
      %p204 = scmp.eq.s32.totalorder %s20, 3
      %p205 = por %p203, %p204
      %p206 = scmp.ne.s32.totalorder %s198, %s201
      %p207 = scmp.eq.s32.totalorder %s20, 0
      %p208 = por %p206, %p207
      %p209 = scmp.ne.s32.totalorder %s198, %s201
      %p210 = scmp.eq.s32.totalorder %s25, 3
      %p211 = por %p209, %p210
      %p212 = scmp.ne.s32.totalorder %s201, %s202
      %p213 = scmp.eq.s32.totalorder %s25, 0
      %p214 = por %p212, %p213
      %p215 = scmp.ne.s32.totalorder %s201, %s202
      %p216 = scmp.eq.s32.totalorder %s26, 3
      %p217 = por %p215, %p216
      %p219 = scmp.ne.s32.totalorder %s202, %s218
      %p220 = scmp.eq.s32.totalorder %s26, 0
      %p221 = por %p219, %p220
      %s223 = sadd.s32 %s222, 1
      %p226 = scmp.eq.s32.totalorder %s20, 3
      %p227 = scmp.ne.s32.totalorder %s222, %s224
      %p228 = scmp.eq.s32.totalorder %s20, 0
      %p229 = por %p227, %p228
      %p230 = scmp.ne.s32.totalorder %s222, %s224
      %p231 = scmp.eq.s32.totalorder %s25, 3
      %p232 = por %p230, %p231
      %p233 = scmp.ne.s32.totalorder %s224, %s225
      %p234 = scmp.eq.s32.totalorder %s25, 0
      %p235 = por %p233, %p234
      %p236 = scmp.ne.s32.totalorder %s224, %s225
      %p237 = scmp.eq.s32.totalorder %s26, 3
      %p238 = por %p236, %p237
      %p240 = scmp.ne.s32.totalorder %s225, %s239
      %p241 = scmp.eq.s32.totalorder %s26, 0
      %p242 = por %p240, %p241
      %s243 = ssub.s32 %s27, %s39
      %p244 = scmp.eq.s32.totalorder %s243, 0
      %s246 = sadd.s32 %s245, 1
      %s247 = scalar_select %p244, %s245, %s246
      %p250 = pneg %p244
      %p251 = scmp.eq.s32.totalorder %s20, 3
      %p252 = por %p250, %p251
      %p253 = scmp.ne.s32.totalorder %s245, %s248
      %p254 = scmp.eq.s32.totalorder %s20, 0
      %p255 = por %p253, %p254
      %p256 = scmp.ne.s32.totalorder %s245, %s248
      %p257 = scmp.eq.s32.totalorder %s25, 3
      %p258 = por %p256, %p257
      %p259 = scmp.ne.s32.totalorder %s248, %s249
      %p260 = scmp.eq.s32.totalorder %s25, 0
      %p261 = por %p259, %p260
      %p262 = scmp.ne.s32.totalorder %s248, %s249
      %p263 = scmp.eq.s32.totalorder %s26, 3
      %p264 = por %p262, %p263
      %p266 = scmp.ne.s32.totalorder %s249, %s265
      %p267 = scmp.eq.s32.totalorder %s26, 0
      %p268 = por %p266, %p267
      %p269 = scmp.le.s32.totalorder 1, %s20
      %p270 = scmp.lt.s32.totalorder %s20, 5
      %p271 = pnand %p269, %p270
      %p272 = pneg %p271
      // Predicated region
      $region9: #{tpu_custom_call.1} parent=5 // pred_check
        _
      $region10: #{tpu_custom_call.1} parent=5 // pred_check_branch
        %274 = sbr.rel (%p271) target = $region12
      $region11: #{tpu_custom_call.1} parent=5 // pred_region
        %s275 = ssub.s32 %s20, 1
        // Predicated region
        $region13: #{tpu_custom_call.1} parent=11 // pred_check
          %p276 = pneg %p235
        $region14: #{tpu_custom_call.1} parent=11 // pred_check_branch
          %278 = sbr.rel (%p276) target = $region16
        $region15: #{tpu_custom_call.1} parent=11 // pred_region
          _
        $region16: #{tpu_custom_call.1} parent=11 // pred_fallthru
          _
      $region12: #{tpu_custom_call.1} parent=5 // pred_fallthru
        _
      %p279 = scmp.lt.s32.totalorder %s20, 4
      // Predicated region
      $region17: #{tpu_custom_call.1} parent=5 // pred_check
        %p280 = pneg %p279
      $region18: #{tpu_custom_call.1} parent=5 // pred_check_branch
        %282 = sbr.rel (%p280) target = $region20
      $region19: #{tpu_custom_call.1} parent=5 // pred_region
        // Predicated region
        $region21: #{tpu_custom_call.1} parent=19 // pred_check
          %p283 = pneg %p52
        $region22: #{tpu_custom_call.1} parent=19 // pred_check_branch
          %285 = sbr.rel (%p283) target = $region24
        $region23: #{tpu_custom_call.1} parent=19 // pred_region
          %p286 = scmp.lt.s32.totalorder %s27, 1
          %s287 = scalar_select %p286, %s27, 1
          %s288 = smul.addr %s287, 4
          %s289 = scalar_lea.vmem %s0, %s288
        $region24: #{tpu_custom_call.1} parent=19 // pred_fallthru
          _
        // Predicated region
        $region25: #{tpu_custom_call.1} parent=19 // pred_check
          %p290 = pneg %p78
        $region26: #{tpu_custom_call.1} parent=19 // pred_check_branch
          %292 = sbr.rel (%p290) target = $region28
        $region27: #{tpu_custom_call.1} parent=19 // pred_region
          %p293 = scmp.lt.s32.totalorder %s27, 1
          %s294 = scalar_select %p293, %s27, 1
          %s295 = smul.addr %s294, 4
          %s296 = scalar_lea.vmem %s1, %s295
        $region28: #{tpu_custom_call.1} parent=19 // pred_fallthru
          _
        // Predicated region
        $region29: #{tpu_custom_call.1} parent=19 // pred_check
          %p297 = pneg %p104
        $region30: #{tpu_custom_call.1} parent=19 // pred_check_branch
          %299 = sbr.rel (%p297) target = $region32
        $region31: #{tpu_custom_call.1} parent=19 // pred_region
          %s300 = sand.u32 %s94, 1
          %s301 = scalar_lea.sflag [#allocation4], %s300
          %s302 = sand.u32 %s94, 1
          %s303 = smul.addr %s302, 128
          %s304 = scalar_lea.vmem [#allocation3], %s303
          %s306 = ssub.s32 2048, 2048
          %307 = vsyncadd %s301, %s306
          %s308 = smul.addr %s28, 32
          %s309 = smul.addr %s308, 64
          %s310 = scalar_lea.hbm %s2, %s309
          %s311 = sshll.u32 %s304, 4
          %s312 = int_to_ptr.vmem [resolvable:$true] %s311
          %317 = dma.hbm_to_vmem [thread:$0]  %s310, 2048, %s312, %s301, 64, 64, 4
        $region32: #{tpu_custom_call.1} parent=19 // pred_fallthru
          _
        // Predicated region
        $region33: #{tpu_custom_call.1} parent=19 // pred_check
          %p318 = pneg %p130
        $region34: #{tpu_custom_call.1} parent=19 // pred_check_branch
          %320 = sbr.rel (%p318) target = $region36
        $region35: #{tpu_custom_call.1} parent=19 // pred_region
          %p321 = scmp.lt.s32.totalorder %s28, 1
          %s322 = scalar_select %p321, %s28, 1
          %s323 = smul.addr %s322, 2
          %s324 = smul.addr %s323, 8
          %s325 = scalar_lea.vmem %s3, %s324
        $region36: #{tpu_custom_call.1} parent=19 // pred_fallthru
          _
        // Predicated region
        $region37: #{tpu_custom_call.1} parent=19 // pred_check
          %p326 = pneg %p156
        $region38: #{tpu_custom_call.1} parent=19 // pred_check_branch
          %328 = sbr.rel (%p326) target = $region40
        $region39: #{tpu_custom_call.1} parent=19 // pred_region
          %p329 = scmp.lt.s32.totalorder %s28, 1
          %s330 = scalar_select %p329, %s28, 1
          %s331 = smul.addr %s330, 4
          %s332 = smul.addr %s331, 4
          %s333 = scalar_lea.vmem %s4, %s332
        $region40: #{tpu_custom_call.1} parent=19 // pred_fallthru
          _
        // Predicated region
        $region41: #{tpu_custom_call.1} parent=19 // pred_check
          %p334 = pneg %p182
        $region42: #{tpu_custom_call.1} parent=19 // pred_check_branch
          %336 = sbr.rel (%p334) target = $region44
        $region43: #{tpu_custom_call.1} parent=19 // pred_region
          %p337 = scmp.lt.s32.totalorder %s28, 1
          %s338 = scalar_select %p337, %s28, 1
          %s339 = scalar_lea.vmem %s5, %s338
        $region44: #{tpu_custom_call.1} parent=19 // pred_fallthru
          _
        // Predicated region
        $region45: #{tpu_custom_call.1} parent=19 // pred_check
          %p340 = pneg %p208
        $region46: #{tpu_custom_call.1} parent=19 // pred_check_branch
          %342 = sbr.rel (%p340) target = $region48
        $region47: #{tpu_custom_call.1} parent=19 // pred_region
          %p343 = scmp.lt.s32.totalorder %s28, 1
          %s344 = scalar_select %p343, %s28, 1
          %s345 = smul.addr %s344, 8
          %s346 = smul.addr %s345, 4
          %s347 = scalar_lea.vmem %s6, %s346
        $region48: #{tpu_custom_call.1} parent=19 // pred_fallthru
          _
      $region20: #{tpu_custom_call.1} parent=5 // pred_fallthru
        _
      %p348 = scmp.le.s32.totalorder 1, %s20
      %p349 = scmp.lt.s32.totalorder %s20, 5
      %p350 = pnand %p348, %p349
      %p351 = pneg %p350
      // Predicated region
      $region49: #{tpu_custom_call.1} parent=5 // pred_check
        _
      $region50: #{tpu_custom_call.1} parent=5 // pred_check_branch
        %353 = sbr.rel (%p350) target = $region52
      $region51: #{tpu_custom_call.1} parent=5 // pred_region
        %s354 = ssub.s32 %s20, 1
        %s355 = sand.u32 %s97, 1
        %s356 = scalar_lea.sflag [#allocation4], %s355
        %s357 = sand.u32 %s97, 1
        %s358 = smul.addr %s357, 128
        %s359 = scalar_lea.vmem [#allocation3], %s358
        // Predicated region
        $region53: #{tpu_custom_call.1} parent=51 // pred_check
          %p360 = pneg %p110
        $region54: #{tpu_custom_call.1} parent=51 // pred_check_branch
          %362 = sbr.rel (%p360) target = $region56
        $region55: #{tpu_custom_call.1} parent=51 // pred_region
          %363 = dma.done %s356, 2048
        $region56: #{tpu_custom_call.1} parent=51 // pred_fallthru
          _
        %p364 = scmp.lt.s32.totalorder %s29, 1
        %s365 = scalar_select %p364, %s29, 1
        %s366 = smul.addr %s365, 4
        %s367 = scalar_lea.vmem %s0, %s366
        %p368 = pneg %p58
        %p369 = pneg %p55
        %p370 = scmp.lt.s32.totalorder %s29, 1
        %s371 = scalar_select %p370, %s29, 1
        %s372 = smul.addr %s371, 4
        %s373 = scalar_lea.vmem %s1, %s372
        %p374 = pneg %p84
        %p375 = pneg %p81
        %s376 = sand.u32 %s97, 1
        %s377 = scalar_lea.sflag [#allocation4], %s376
        %s378 = sand.u32 %s97, 1
        %s379 = smul.addr %s378, 128
        %s380 = scalar_lea.vmem [#allocation3], %s379
        %p381 = pneg %p110
        %p382 = pneg %p107
        %p383 = scmp.lt.s32.totalorder %s30, 1
        %s384 = scalar_select %p383, %s30, 1
        %s385 = smul.addr %s384, 2
        %s386 = smul.addr %s385, 8
        %s387 = scalar_lea.vmem %s3, %s386
        %p388 = pneg %p136
        %p389 = pneg %p133
        %p390 = scmp.lt.s32.totalorder %s30, 1
        %s391 = scalar_select %p390, %s30, 1
        %s392 = smul.addr %s391, 4
        %s393 = smul.addr %s392, 4
        %s394 = scalar_lea.vmem %s4, %s393
        %p395 = pneg %p162
        %p396 = pneg %p159
        %p397 = scmp.lt.s32.totalorder %s30, 1
        %s398 = scalar_select %p397, %s30, 1
        %s399 = scalar_lea.vmem %s5, %s398
        %p400 = pneg %p188
        %p401 = pneg %p185
        %p402 = scmp.lt.s32.totalorder %s30, 1
        %s403 = scalar_select %p402, %s30, 1
        %s404 = smul.addr %s403, 8
        %s405 = smul.addr %s404, 4
        %s406 = scalar_lea.vmem %s6, %s405
        %p407 = pneg %p214
        %p408 = pneg %p211
        %p409 = pneg %p235
        %p410 = pneg %p232
        %p411 = pneg %p261
        %p412 = pneg %p258
        %s413 = sand.u32 %s248, 1
        %s414 = scalar_lea.sflag [#allocation5], %s413
        %s415 = sand.u32 %s248, 1
        %s416 = smul.addr %s415, 8
        %s417 = scalar_lea.vmem [#allocation6], %s416
        %p418 = scmp.lt.s32.totalorder %s29, 1
        %s419 = scalar_select %p418, %s29, 1
        %s420 = smul.addr %s419, 4
        %s421 = scalar_lea.vmem %s0, %s420
        %p422 = scmp.lt.s32.totalorder %s29, 1
        %s423 = scalar_select %p422, %s29, 1
        %s424 = smul.addr %s423, 4
        %s425 = scalar_lea.vmem %s1, %s424
        %p426 = scmp.lt.s32.totalorder %s30, 1
        %s427 = scalar_select %p426, %s30, 1
        %s428 = smul.addr %s427, 2
        %s429 = smul.addr %s428, 8
        %s430 = scalar_lea.vmem %s3, %s429
        %p431 = scmp.lt.s32.totalorder %s30, 1
        %s432 = scalar_select %p431, %s30, 1
        %s433 = smul.addr %s432, 4
        %s434 = smul.addr %s433, 4
        %s435 = scalar_lea.vmem %s4, %s434
        %p436 = scmp.lt.s32.totalorder %s30, 1
        %s437 = scalar_select %p436, %s30, 1
        %s438 = scalar_lea.vmem %s5, %s437
        %p439 = scmp.lt.s32.totalorder %s30, 1
        %s440 = scalar_select %p439, %s30, 1
        %s441 = smul.addr %s440, 8
        %s442 = smul.addr %s441, 4
        %s443 = scalar_lea.vmem %s6, %s442
        %p445 = scmp.eq.s32.totalorder %s30, 0
        // Predicated region
        $region57: #{tpu_custom_call.1} parent=51 // pred_check
          %p446 = pneg %p445
        $region58: #{tpu_custom_call.1} parent=51 // pred_check_branch
          %448 = sbr.rel (%p446) target = $region60
        $region59: #{tpu_custom_call.1} parent=51 // pred_region
          %v449 = vld [vmem:[%s421] sm:$0xf]
          %v450 = vunpack.c.l.bf16 %v449
          %vm451 = vcmask 261120
          %452 = vst.msk [vmem:[#allocation2] sm:$0xff] %vm451, %v450
        $region60: #{tpu_custom_call.1} parent=51 // pred_fallthru
          _
        %v453 = vld [vmem:[#allocation2] sm:$0xff]
        %v454 = vld [vmem:[%s425] sm:$0xf]
        %v455 = vld [vmem:[%s430] sm:$0xff]
        %v456 = vld [vmem:[%s430 + $0x8] sm:$0x1f]
        %v457 = vld [vmem:[%s359] sm:$0xf]
        %v458 = vld [vmem:[%s359 + $0x4] sm:$0xf]
        %v459 = vld [vmem:[%s359 + $0x8] sm:$0xf]
        %v460 = vld [vmem:[%s359 + $0xc] sm:$0xf]
        %s461 = scalar_lea.vmem %s359, 16 [#allocation3]
        %v462 = vld [vmem:[%s461] sm:$0xf]
        %v463 = vld [vmem:[%s461 + $0x4] sm:$0xf]
        %v464 = vld [vmem:[%s461 + $0x8] sm:$0xf]
        %v465 = vld [vmem:[%s461 + $0xc] sm:$0xf]
        %s466 = scalar_lea.vmem %s359, 32 [#allocation3]
        %v467 = vld [vmem:[%s466] sm:$0xf]
        %v468 = vld [vmem:[%s466 + $0x4] sm:$0xf]
        %v469 = vld [vmem:[%s466 + $0x8] sm:$0xf]
        %v470 = vld [vmem:[%s466 + $0xc] sm:$0xf]
        %s471 = scalar_lea.vmem %s359, 48 [#allocation3]
        %v472 = vld [vmem:[%s471] sm:$0xf]
        %v473 = vld [vmem:[%s471 + $0x4] sm:$0xf]
        %v474 = vld [vmem:[%s471 + $0x8] sm:$0xf]
        %v475 = vld [vmem:[%s471 + $0xc] sm:$0xf]
        %s476 = scalar_lea.vmem %s359, 64 [#allocation3]
        %v477 = vld [vmem:[%s476] sm:$0xf]
        %v478 = vld [vmem:[%s476 + $0x4] sm:$0xf]
        %v479 = vld [vmem:[%s476 + $0x8] sm:$0xf]
        %v480 = vld [vmem:[%s476 + $0xc] sm:$0xf]
        %s481 = scalar_lea.vmem %s359, 80 [#allocation3]
        %v482 = vld [vmem:[%s481] sm:$0xf]
        %v483 = vld [vmem:[%s481 + $0x4] sm:$0xf]
        %v484 = vld [vmem:[%s481 + $0x8] sm:$0xf]
        %v485 = vld [vmem:[%s481 + $0xc] sm:$0xf]
        %s486 = scalar_lea.vmem %s359, 96 [#allocation3]
        %v487 = vld [vmem:[%s486] sm:$0xf]
        %v488 = vld [vmem:[%s486 + $0x4] sm:$0xf]
        %v489 = vld [vmem:[%s486 + $0x8] sm:$0xf]
        %v490 = vld [vmem:[%s486 + $0xc] sm:$0xf]
        %s491 = scalar_lea.vmem %s359, 112 [#allocation3]
        %v492 = vld [vmem:[%s491] sm:$0xf]
        %v493 = vld [vmem:[%s491 + $0x4] sm:$0xf]
        %v494 = vld [vmem:[%s491 + $0x8] sm:$0xf]
        %v495 = vld [vmem:[%s491 + $0xc] sm:$0xf]
        %v496 = vld [vmem:[%s435] sm:$0xf]
        %v497 = vld [vmem:[%s435 + $0x4] sm:$0xf]
        %v498 = vld [vmem:[%s435 + $0x8] sm:$0xf]
        %v499 = vld [vmem:[%s435 + $0xc] sm:$0xf]
        %v500 = vld [vmem:[%s438] sm:$0x1]
        %v501 = vld [vmem:[%s443] sm:$0xf]
        %v502 = vld [vmem:[%s443 + $0x4] sm:$0xf]
        %v503 = vld [vmem:[%s443 + $0x8] sm:$0xf]
        %v504 = vld [vmem:[%s443 + $0xc] sm:$0xf]
        %v505 = vld [vmem:[%s443 + $0x10] sm:$0xf]
        %v506 = vld [vmem:[%s443 + $0x14] sm:$0xf]
        %v507 = vld [vmem:[%s443 + $0x18] sm:$0xf]
        %v508 = vld [vmem:[%s443 + $0x1c] sm:$0xf]
        %v509 = vpack.c.bf16 %v453, %v453
        %v510 = vlaneseq
        %v511 = vshrl.u32 %v510, 7
        %v512 = vsub.s32 0, %v511
        %v513 = vrot.slane %v455, %v512
        %v518 = vunpack.c.l.b16 %v457
        %v519 = vunpack.c.l.b16 %v458
        %v520 = vunpack.c.l.b16 %v459
        %v521 = vunpack.c.l.b16 %v460
        %v522 = vpack.c.b16 %v519, %v518
        %v523 = vpack.c.b16 %v521, %v520
        %vm526 = vcmask 261120
        %v528 = vsel %vm526, %v509, 0
        %530 = vmatprep.subr.bf16.mxu0 0
        %531 = vmatpush1.bf16.msra.mxu0 %v522
        %532 = vmatprep.subr.bf16.mxu0 0
        %533 = vmatpush1.bf16.msra.mxu0 %v523
        %534 = vmatprep.subr.bf16.mxu0 0
        %535 = vmatpush1.bf16.msra.mxu0 0
        %536 = vmatprep.subr.bf16.mxu0 0
        %537 = vmatpush1.bf16.msra.mxu0 0
        %538 = vmatprep.subr.bf16.mxu0 0
        %539 = vmatpush1.bf16.msra.mxu0 0
        %540 = vmatprep.subr.bf16.mxu0 0
        %541 = vmatpush1.bf16.msra.mxu0 0
        %542 = vmatprep.subr.bf16.mxu0 0
        %543 = vmatpush1.bf16.msra.mxu0 0
        %544 = vmatprep.subr.bf16.mxu0 0
        %545 = vmatpush1.bf16.msra.mxu0 0
        %546 = vmatprep.subr.bf16.mxu0 0
        %547 = vmatpush1.bf16.msra.mxu0 0
        %548 = vmatprep.subr.bf16.mxu0 0
        %549 = vmatpush1.bf16.msra.mxu0 0
        %550 = vmatprep.subr.bf16.mxu0 0
        %551 = vmatpush1.bf16.msra.mxu0 0
        %552 = vmatprep.subr.bf16.mxu0 0
        %553 = vmatpush1.bf16.msra.mxu0 0
        %554 = vmatprep.subr.bf16.mxu0 0
        %555 = vmatpush1.bf16.msra.mxu0 0
        %556 = vmatprep.subr.bf16.mxu0 0
        %557 = vmatpush1.bf16.msra.mxu0 0
        %558 = vmatprep.subr.bf16.mxu0 0
        %559 = vmatpush1.bf16.msra.mxu0 0
        %560 = vmatprep.subr.bf16.mxu0 0
        %561 = vmatpush1.bf16.msra.mxu0 0
        %562 = vmatprep.mubr.bf16.mxu0 0
        %563 = vmatmul.mubr.bf16.gmra.mrb[0].mxu0 %v528
        %v564 = vpop.f32.mrb[0].mxu0
        %v565 = vadd.f32 %v513, %v564
        %v566 = vpop.f32.mrb[0].mxu0
        %v567 = vpop.f32.mrb[0].mxu0
        %v568 = vpop.f32.mrb[0].mxu0
        %569 = vdwg.mxu0
        %v574 = vunpack.c.l.b16 %v462
        %v575 = vunpack.c.l.b16 %v463
        %v576 = vunpack.c.l.b16 %v464
        %v577 = vunpack.c.l.b16 %v465
        %v578 = vpack.c.b16 %v575, %v574
        %v579 = vpack.c.b16 %v577, %v576
        %582 = vmatprep.subr.bf16.mxu0 0
        %583 = vmatpush1.bf16.msra.mxu0 %v578
        %584 = vmatprep.subr.bf16.mxu0 0
        %585 = vmatpush1.bf16.msra.mxu0 %v579
        %586 = vmatprep.subr.bf16.mxu0 0
        %587 = vmatpush1.bf16.msra.mxu0 0
        %588 = vmatprep.subr.bf16.mxu0 0
        %589 = vmatpush1.bf16.msra.mxu0 0
        %590 = vmatprep.subr.bf16.mxu0 0
        %591 = vmatpush1.bf16.msra.mxu0 0
        %592 = vmatprep.subr.bf16.mxu0 0
        %593 = vmatpush1.bf16.msra.mxu0 0
        %594 = vmatprep.subr.bf16.mxu0 0
        %595 = vmatpush1.bf16.msra.mxu0 0
        %596 = vmatprep.subr.bf16.mxu0 0
        %597 = vmatpush1.bf16.msra.mxu0 0
        %598 = vmatprep.subr.bf16.mxu0 0
        %599 = vmatpush1.bf16.msra.mxu0 0
        %600 = vmatprep.subr.bf16.mxu0 0
        %601 = vmatpush1.bf16.msra.mxu0 0
        %602 = vmatprep.subr.bf16.mxu0 0
        %603 = vmatpush1.bf16.msra.mxu0 0
        %604 = vmatprep.subr.bf16.mxu0 0
        %605 = vmatpush1.bf16.msra.mxu0 0
        %606 = vmatprep.subr.bf16.mxu0 0
        %607 = vmatpush1.bf16.msra.mxu0 0
        %608 = vmatprep.subr.bf16.mxu0 0
        %609 = vmatpush1.bf16.msra.mxu0 0
        %610 = vmatprep.subr.bf16.mxu0 0
        %611 = vmatpush1.bf16.msra.mxu0 0
        %612 = vmatprep.subr.bf16.mxu0 0
        %613 = vmatpush1.bf16.msra.mxu0 0
        %614 = vmatprep.mubr.bf16.mxu0 0
        %615 = vmatmul.mubr.bf16.gmra.mrb[0].mxu0 %v528
        %v616 = vpop.f32.mrb[0].mxu0
        %v617 = vadd.f32 0.0, %v616
        %v618 = vpop.f32.mrb[0].mxu0
        %v619 = vpop.f32.mrb[0].mxu0
        %v620 = vpop.f32.mrb[0].mxu0
        %621 = vdwg.mxu0
        %v622 = vlaneseq
        %v623 = vshrl.u32 %v622, 7
        %v624 = vsub.s32 1, %v623
        %v625 = vrot.slane %v455, %v624
        %v630 = vunpack.c.l.b16 %v467
        %v631 = vunpack.c.l.b16 %v468
        %v632 = vunpack.c.l.b16 %v469
        %v633 = vunpack.c.l.b16 %v470
        %v634 = vpack.c.b16 %v631, %v630
        %v635 = vpack.c.b16 %v633, %v632
        %638 = vmatprep.subr.bf16.mxu0 0
        %639 = vmatpush1.bf16.msra.mxu0 %v634
        %640 = vmatprep.subr.bf16.mxu0 0
        %641 = vmatpush1.bf16.msra.mxu0 %v635
        %642 = vmatprep.subr.bf16.mxu0 0
        %643 = vmatpush1.bf16.msra.mxu0 0
        %644 = vmatprep.subr.bf16.mxu0 0
        %645 = vmatpush1.bf16.msra.mxu0 0
        %646 = vmatprep.subr.bf16.mxu0 0
        %647 = vmatpush1.bf16.msra.mxu0 0
        %648 = vmatprep.subr.bf16.mxu0 0
        %649 = vmatpush1.bf16.msra.mxu0 0
        %650 = vmatprep.subr.bf16.mxu0 0
        %651 = vmatpush1.bf16.msra.mxu0 0
        %652 = vmatprep.subr.bf16.mxu0 0
        %653 = vmatpush1.bf16.msra.mxu0 0
        %654 = vmatprep.subr.bf16.mxu0 0
        %655 = vmatpush1.bf16.msra.mxu0 0
        %656 = vmatprep.subr.bf16.mxu0 0
        %657 = vmatpush1.bf16.msra.mxu0 0
        %658 = vmatprep.subr.bf16.mxu0 0
        %659 = vmatpush1.bf16.msra.mxu0 0
        %660 = vmatprep.subr.bf16.mxu0 0
        %661 = vmatpush1.bf16.msra.mxu0 0
        %662 = vmatprep.subr.bf16.mxu0 0
        %663 = vmatpush1.bf16.msra.mxu0 0
        %664 = vmatprep.subr.bf16.mxu0 0
        %665 = vmatpush1.bf16.msra.mxu0 0
        %666 = vmatprep.subr.bf16.mxu0 0
        %667 = vmatpush1.bf16.msra.mxu0 0
        %668 = vmatprep.subr.bf16.mxu0 0
        %669 = vmatpush1.bf16.msra.mxu0 0
        %670 = vmatprep.mubr.bf16.mxu0 0
        %671 = vmatmul.mubr.bf16.gmra.mrb[0].mxu0 %v528
        %v672 = vpop.f32.mrb[0].mxu0
        %v673 = vadd.f32 %v625, %v672
        %v674 = vpop.f32.mrb[0].mxu0
        %v675 = vpop.f32.mrb[0].mxu0
        %v676 = vpop.f32.mrb[0].mxu0
        %677 = vdwg.mxu0
        %v678 = vpack.c.bf16 %v565, %v565
        %v679 = vpack.c.bf16 %v617, %v617
        %v680 = vpack.c.bf16 %v673, %v673
        %vm681 = vcmask 64512
        %v683 = vsel %vm681, %v678, 0
        %v686 = vsel %vm681, %v679, 0
        %688 = vmatprep.subr.bf16.mxu0 0
        %689 = vmatpush1.bf16.xpose.msra.mxu0 %v686
        %690 = vmatprep.subr.bf16.mxu0 0
        %691 = vmatpush1.bf16.xpose.msra.mxu0 0
        %692 = vmatprep.subr.bf16.mxu0 0
        %693 = vmatpush1.bf16.xpose.msra.mxu0 0
        %694 = vmatprep.subr.bf16.mxu0 0
        %695 = vmatpush1.bf16.xpose.msra.mxu0 0
        %696 = vmatprep.subr.bf16.mxu0 0
        %697 = vmatpush1.bf16.xpose.msra.mxu0 0
        %698 = vmatprep.subr.bf16.mxu0 0
        %699 = vmatpush1.bf16.xpose.msra.mxu0 0
        %700 = vmatprep.subr.bf16.mxu0 0
        %701 = vmatpush1.bf16.xpose.msra.mxu0 0
        %702 = vmatprep.subr.bf16.mxu0 0
        %703 = vmatpush1.bf16.xpose.msra.mxu0 0
        %704 = vmatprep.subr.bf16.mxu0 0
        %705 = vmatpush1.bf16.xpose.msra.mxu0 0
        %706 = vmatprep.subr.bf16.mxu0 0
        %707 = vmatpush1.bf16.xpose.msra.mxu0 0
        %708 = vmatprep.subr.bf16.mxu0 0
        %709 = vmatpush1.bf16.xpose.msra.mxu0 0
        %710 = vmatprep.subr.bf16.mxu0 0
        %711 = vmatpush1.bf16.xpose.msra.mxu0 0
        %712 = vmatprep.subr.bf16.mxu0 0
        %713 = vmatpush1.bf16.xpose.msra.mxu0 0
        %714 = vmatprep.subr.bf16.mxu0 0
        %715 = vmatpush1.bf16.xpose.msra.mxu0 0
        %716 = vmatprep.subr.bf16.mxu0 0
        %717 = vmatpush1.bf16.xpose.msra.mxu0 0
        %718 = vmatprep.subr.bf16.mxu0 0
        %719 = vmatpush1.bf16.xpose.msra.mxu0 0
        %720 = vmatprep.mubr.bf16.mxu0 0
        %721 = vmatmul.mubr.bf16.gmra.mrb[0].mxu0 %v683
        %v722 = vpop.f32.mrb[0].mxu0
        %v723 = vadd.f32 0.0, %v722
        %v724 = vpop.f32.mrb[0].mxu0
        %v725 = vpop.f32.mrb[0].mxu0
        %v726 = vpop.f32.mrb[0].mxu0
        %727 = vdwg.mxu0
        %v728 = vsel %vm681, %v723, -inf
        %729 = vmax.xlane.f32.xlu0 %v728
        %v730 = vpop.xlane.xlu0 %729
        %v731 = vsub.f32 %v723, %v730
        %v732 = vmul.f32 %v731, 1.442695
        %v733 = vpow.pop %v732
        %v734 = vsel %vm681, %v733, 0.0
        %735 = vadd.xlane.f32.xlu0 %v734
        %v736 = vpop.xlane.xlu0 %735
        %v737 = vrcp.pop %v736
        %v738 = vmul.f32 %v733, %v737
        %v739 = vpack.c.bf16 %v738, %v738
        %v741 = vsel %vm681, %v739, 0
        %vm743 = vcmask 1043456
        %v745 = vsel %vm743, %v680, 0
        %747 = vmatprep.subr.bf16.mxu0 0
        %748 = vmatpush1.bf16.msra.mxu0 %v745
        %749 = vmatprep.subr.bf16.mxu0 0
        %750 = vmatpush1.bf16.msra.mxu0 0
        %751 = vmatprep.subr.bf16.mxu0 0
        %752 = vmatpush1.bf16.msra.mxu0 0
        %753 = vmatprep.subr.bf16.mxu0 0
        %754 = vmatpush1.bf16.msra.mxu0 0
        %755 = vmatprep.subr.bf16.mxu0 0
        %756 = vmatpush1.bf16.msra.mxu0 0
        %757 = vmatprep.subr.bf16.mxu0 0
        %758 = vmatpush1.bf16.msra.mxu0 0
        %759 = vmatprep.subr.bf16.mxu0 0
        %760 = vmatpush1.bf16.msra.mxu0 0
        %761 = vmatprep.subr.bf16.mxu0 0
        %762 = vmatpush1.bf16.msra.mxu0 0
        %763 = vmatprep.subr.bf16.mxu0 0
        %764 = vmatpush1.bf16.msra.mxu0 0
        %765 = vmatprep.subr.bf16.mxu0 0
        %766 = vmatpush1.bf16.msra.mxu0 0
        %767 = vmatprep.subr.bf16.mxu0 0
        %768 = vmatpush1.bf16.msra.mxu0 0
        %769 = vmatprep.subr.bf16.mxu0 0
        %770 = vmatpush1.bf16.msra.mxu0 0
        %771 = vmatprep.subr.bf16.mxu0 0
        %772 = vmatpush1.bf16.msra.mxu0 0
        %773 = vmatprep.subr.bf16.mxu0 0
        %774 = vmatpush1.bf16.msra.mxu0 0
        %775 = vmatprep.subr.bf16.mxu0 0
        %776 = vmatpush1.bf16.msra.mxu0 0
        %777 = vmatprep.subr.bf16.mxu0 0
        %778 = vmatpush1.bf16.msra.mxu0 0
        %779 = vmatprep.mubr.bf16.mxu0 0
        %780 = vmatmul.mubr.bf16.gmra.mrb[0].mxu0 %v741
        %v781 = vpop.f32.mrb[0].mxu0
        %v782 = vadd.f32 0.0, %v781
        %v783 = vpop.f32.mrb[0].mxu0
        %v784 = vpop.f32.mrb[0].mxu0
        %v785 = vpop.f32.mrb[0].mxu0
        %786 = vdwg.mxu0
        %788 = vrot.lane.b32.xlu0 %v678, 120
        %v789 = vpop.permute.xlu0 %788
        %791 = vrot.lane.b32.xlu0 %v679, 120
        %v792 = vpop.permute.xlu0 %791
        %v794 = vsel %vm681, %v789, 0
        %v797 = vsel %vm681, %v792, 0
        %799 = vmatprep.subr.bf16.mxu0 0
        %800 = vmatpush1.bf16.xpose.msra.mxu0 %v797
        %801 = vmatprep.subr.bf16.mxu0 0
        %802 = vmatpush1.bf16.xpose.msra.mxu0 0
        %803 = vmatprep.subr.bf16.mxu0 0
        %804 = vmatpush1.bf16.xpose.msra.mxu0 0
        %805 = vmatprep.subr.bf16.mxu0 0
        %806 = vmatpush1.bf16.xpose.msra.mxu0 0
        %807 = vmatprep.subr.bf16.mxu0 0
        %808 = vmatpush1.bf16.xpose.msra.mxu0 0
        %809 = vmatprep.subr.bf16.mxu0 0
        %810 = vmatpush1.bf16.xpose.msra.mxu0 0
        %811 = vmatprep.subr.bf16.mxu0 0
        %812 = vmatpush1.bf16.xpose.msra.mxu0 0
        %813 = vmatprep.subr.bf16.mxu0 0
        %814 = vmatpush1.bf16.xpose.msra.mxu0 0
        %815 = vmatprep.subr.bf16.mxu0 0
        %816 = vmatpush1.bf16.xpose.msra.mxu0 0
        %817 = vmatprep.subr.bf16.mxu0 0
        %818 = vmatpush1.bf16.xpose.msra.mxu0 0
        %819 = vmatprep.subr.bf16.mxu0 0
        %820 = vmatpush1.bf16.xpose.msra.mxu0 0
        %821 = vmatprep.subr.bf16.mxu0 0
        %822 = vmatpush1.bf16.xpose.msra.mxu0 0
        %823 = vmatprep.subr.bf16.mxu0 0
        %824 = vmatpush1.bf16.xpose.msra.mxu0 0
        %825 = vmatprep.subr.bf16.mxu0 0
        %826 = vmatpush1.bf16.xpose.msra.mxu0 0
        %827 = vmatprep.subr.bf16.mxu0 0
        %828 = vmatpush1.bf16.xpose.msra.mxu0 0
        %829 = vmatprep.subr.bf16.mxu0 0
        %830 = vmatpush1.bf16.xpose.msra.mxu0 0
        %831 = vmatprep.mubr.bf16.mxu0 0
        %832 = vmatmul.mubr.bf16.gmra.mrb[0].mxu0 %v794
        %v833 = vpop.f32.mrb[0].mxu0
        %v834 = vadd.f32 0.0, %v833
        %v835 = vpop.f32.mrb[0].mxu0
        %v836 = vpop.f32.mrb[0].mxu0
        %v837 = vpop.f32.mrb[0].mxu0
        %838 = vdwg.mxu0
        %v839 = vsel %vm681, %v834, -inf
        %840 = vmax.xlane.f32.xlu0 %v839
        %v841 = vpop.xlane.xlu0 %840
        %v842 = vsub.f32 %v834, %v841
        %v843 = vmul.f32 %v842, 1.442695
        %v844 = vpow.pop %v843
        %v845 = vsel %vm681, %v844, 0.0
        %846 = vadd.xlane.f32.xlu0 %v845
        %v847 = vpop.xlane.xlu0 %846
        %v848 = vrcp.pop %v847
        %v849 = vmul.f32 %v844, %v848
        %v850 = vpack.c.bf16 %v849, %v849
        %852 = vrot.lane.b32.xlu0 %v680, 120
        %v853 = vpop.permute.xlu0 %852
        %v855 = vsel %vm681, %v850, 0
        %v858 = vsel %vm743, %v853, 0
        %860 = vmatprep.subr.bf16.mxu0 0
        %861 = vmatpush1.bf16.msra.mxu0 %v858
        %862 = vmatprep.subr.bf16.mxu0 0
        %863 = vmatpush1.bf16.msra.mxu0 0
        %864 = vmatprep.subr.bf16.mxu0 0
        %865 = vmatpush1.bf16.msra.mxu0 0
        %866 = vmatprep.subr.bf16.mxu0 0
        %867 = vmatpush1.bf16.msra.mxu0 0
        %868 = vmatprep.subr.bf16.mxu0 0
        %869 = vmatpush1.bf16.msra.mxu0 0
        %870 = vmatprep.subr.bf16.mxu0 0
        %871 = vmatpush1.bf16.msra.mxu0 0
        %872 = vmatprep.subr.bf16.mxu0 0
        %873 = vmatpush1.bf16.msra.mxu0 0
        %874 = vmatprep.subr.bf16.mxu0 0
        %875 = vmatpush1.bf16.msra.mxu0 0
        %876 = vmatprep.subr.bf16.mxu0 0
        %877 = vmatpush1.bf16.msra.mxu0 0
        %878 = vmatprep.subr.bf16.mxu0 0
        %879 = vmatpush1.bf16.msra.mxu0 0
        %880 = vmatprep.subr.bf16.mxu0 0
        %881 = vmatpush1.bf16.msra.mxu0 0
        %882 = vmatprep.subr.bf16.mxu0 0
        %883 = vmatpush1.bf16.msra.mxu0 0
        %884 = vmatprep.subr.bf16.mxu0 0
        %885 = vmatpush1.bf16.msra.mxu0 0
        %886 = vmatprep.subr.bf16.mxu0 0
        %887 = vmatpush1.bf16.msra.mxu0 0
        %888 = vmatprep.subr.bf16.mxu0 0
        %889 = vmatpush1.bf16.msra.mxu0 0
        %890 = vmatprep.subr.bf16.mxu0 0
        %891 = vmatpush1.bf16.msra.mxu0 0
        %892 = vmatprep.mubr.bf16.mxu0 0
        %893 = vmatmul.mubr.bf16.gmra.mrb[0].mxu0 %v855
        %v894 = vpop.f32.mrb[0].mxu0
        %v895 = vadd.f32 0.0, %v894
        %v896 = vpop.f32.mrb[0].mxu0
        %v897 = vpop.f32.mrb[0].mxu0
        %v898 = vpop.f32.mrb[0].mxu0
        %899 = vdwg.mxu0
        %900 = vrot.lane.b32.xlu0 %v678, 112
        %v901 = vpop.permute.xlu0 %900
        %902 = vrot.lane.b32.xlu0 %v679, 112
        %v903 = vpop.permute.xlu0 %902
        %v905 = vsel %vm681, %v901, 0
        %v908 = vsel %vm681, %v903, 0
        %910 = vmatprep.subr.bf16.mxu0 0
        %911 = vmatpush1.bf16.xpose.msra.mxu0 %v908
        %912 = vmatprep.subr.bf16.mxu0 0
        %913 = vmatpush1.bf16.xpose.msra.mxu0 0
        %914 = vmatprep.subr.bf16.mxu0 0
        %915 = vmatpush1.bf16.xpose.msra.mxu0 0
        %916 = vmatprep.subr.bf16.mxu0 0
        %917 = vmatpush1.bf16.xpose.msra.mxu0 0
        %918 = vmatprep.subr.bf16.mxu0 0
        %919 = vmatpush1.bf16.xpose.msra.mxu0 0
        %920 = vmatprep.subr.bf16.mxu0 0
        %921 = vmatpush1.bf16.xpose.msra.mxu0 0
        %922 = vmatprep.subr.bf16.mxu0 0
        %923 = vmatpush1.bf16.xpose.msra.mxu0 0
        %924 = vmatprep.subr.bf16.mxu0 0
        %925 = vmatpush1.bf16.xpose.msra.mxu0 0
        %926 = vmatprep.subr.bf16.mxu0 0
        %927 = vmatpush1.bf16.xpose.msra.mxu0 0
        %928 = vmatprep.subr.bf16.mxu0 0
        %929 = vmatpush1.bf16.xpose.msra.mxu0 0
        %930 = vmatprep.subr.bf16.mxu0 0
        %931 = vmatpush1.bf16.xpose.msra.mxu0 0
        %932 = vmatprep.subr.bf16.mxu0 0
        %933 = vmatpush1.bf16.xpose.msra.mxu0 0
        %934 = vmatprep.subr.bf16.mxu0 0
        %935 = vmatpush1.bf16.xpose.msra.mxu0 0
        %936 = vmatprep.subr.bf16.mxu0 0
        %937 = vmatpush1.bf16.xpose.msra.mxu0 0
        %938 = vmatprep.subr.bf16.mxu0 0
        %939 = vmatpush1.bf16.xpose.msra.mxu0 0
        %940 = vmatprep.subr.bf16.mxu0 0
        %941 = vmatpush1.bf16.xpose.msra.mxu0 0
        %942 = vmatprep.mubr.bf16.mxu0 0
        %943 = vmatmul.mubr.bf16.gmra.mrb[0].mxu0 %v905
        %v944 = vpop.f32.mrb[0].mxu0
        %v945 = vadd.f32 0.0, %v944
        %v946 = vpop.f32.mrb[0].mxu0
        %v947 = vpop.f32.mrb[0].mxu0
        %v948 = vpop.f32.mrb[0].mxu0
        %949 = vdwg.mxu0
        %v950 = vsel %vm681, %v945, -inf
        %951 = vmax.xlane.f32.xlu0 %v950
        %v952 = vpop.xlane.xlu0 %951
        %v953 = vsub.f32 %v945, %v952
        %v954 = vmul.f32 %v953, 1.442695
        %v955 = vpow.pop %v954
        %v956 = vsel %vm681, %v955, 0.0
        %957 = vadd.xlane.f32.xlu0 %v956
        %v958 = vpop.xlane.xlu0 %957
        %v959 = vrcp.pop %v958
        %v960 = vmul.f32 %v955, %v959
        %v961 = vpack.c.bf16 %v960, %v960
        %962 = vrot.lane.b32.xlu0 %v680, 112
        %v963 = vpop.permute.xlu0 %962
        %v965 = vsel %vm681, %v961, 0
        %v968 = vsel %vm743, %v963, 0
        %970 = vmatprep.subr.bf16.mxu0 0
        %971 = vmatpush1.bf16.msra.mxu0 %v968
        %972 = vmatprep.subr.bf16.mxu0 0
        %973 = vmatpush1.bf16.msra.mxu0 0
        %974 = vmatprep.subr.bf16.mxu0 0
        %975 = vmatpush1.bf16.msra.mxu0 0
        %976 = vmatprep.subr.bf16.mxu0 0
        %977 = vmatpush1.bf16.msra.mxu0 0
        %978 = vmatprep.subr.bf16.mxu0 0
        %979 = vmatpush1.bf16.msra.mxu0 0
        %980 = vmatprep.subr.bf16.mxu0 0
        %981 = vmatpush1.bf16.msra.mxu0 0
        %982 = vmatprep.subr.bf16.mxu0 0
        %983 = vmatpush1.bf16.msra.mxu0 0
        %984 = vmatprep.subr.bf16.mxu0 0
        %985 = vmatpush1.bf16.msra.mxu0 0
        %986 = vmatprep.subr.bf16.mxu0 0
        %987 = vmatpush1.bf16.msra.mxu0 0
        %988 = vmatprep.subr.bf16.mxu0 0
        %989 = vmatpush1.bf16.msra.mxu0 0
        %990 = vmatprep.subr.bf16.mxu0 0
        %991 = vmatpush1.bf16.msra.mxu0 0
        %992 = vmatprep.subr.bf16.mxu0 0
        %993 = vmatpush1.bf16.msra.mxu0 0
        %994 = vmatprep.subr.bf16.mxu0 0
        %995 = vmatpush1.bf16.msra.mxu0 0
        %996 = vmatprep.subr.bf16.mxu0 0
        %997 = vmatpush1.bf16.msra.mxu0 0
        %998 = vmatprep.subr.bf16.mxu0 0
        %999 = vmatpush1.bf16.msra.mxu0 0
        %1000 = vmatprep.subr.bf16.mxu0 0
        %1001 = vmatpush1.bf16.msra.mxu0 0
        %1002 = vmatprep.mubr.bf16.mxu0 0
        %1003 = vmatmul.mubr.bf16.gmra.mrb[0].mxu0 %v965
        %v1004 = vpop.f32.mrb[0].mxu0
        %v1005 = vadd.f32 0.0, %v1004
        %v1006 = vpop.f32.mrb[0].mxu0
        %v1007 = vpop.f32.mrb[0].mxu0
        %v1008 = vpop.f32.mrb[0].mxu0
        %1009 = vdwg.mxu0
        %1010 = vrot.lane.b32.xlu0 %v678, 104
        %v1011 = vpop.permute.xlu0 %1010
        %1012 = vrot.lane.b32.xlu0 %v679, 104
        %v1013 = vpop.permute.xlu0 %1012
        %v1015 = vsel %vm681, %v1011, 0
        %v1018 = vsel %vm681, %v1013, 0
        %1020 = vmatprep.subr.bf16.mxu0 0
        %1021 = vmatpush1.bf16.xpose.msra.mxu0 %v1018
        %1022 = vmatprep.subr.bf16.mxu0 0
        %1023 = vmatpush1.bf16.xpose.msra.mxu0 0
        %1024 = vmatprep.subr.bf16.mxu0 0
        %1025 = vmatpush1.bf16.xpose.msra.mxu0 0
        %1026 = vmatprep.subr.bf16.mxu0 0
        %1027 = vmatpush1.bf16.xpose.msra.mxu0 0
        %1028 = vmatprep.subr.bf16.mxu0 0
        %1029 = vmatpush1.bf16.xpose.msra.mxu0 0
        %1030 = vmatprep.subr.bf16.mxu0 0
        %1031 = vmatpush1.bf16.xpose.msra.mxu0 0
        %1032 = vmatprep.subr.bf16.mxu0 0
        %1033 = vmatpush1.bf16.xpose.msra.mxu0 0
        %1034 = vmatprep.subr.bf16.mxu0 0
        %1035 = vmatpush1.bf16.xpose.msra.mxu0 0
        %1036 = vmatprep.subr.bf16.mxu0 0
        %1037 = vmatpush1.bf16.xpose.msra.mxu0 0
        %1038 = vmatprep.subr.bf16.mxu0 0
        %1039 = vmatpush1.bf16.xpose.msra.mxu0 0
        %1040 = vmatprep.subr.bf16.mxu0 0
        %1041 = vmatpush1.bf16.xpose.msra.mxu0 0
        %1042 = vmatprep.subr.bf16.mxu0 0
        %1043 = vmatpush1.bf16.xpose.msra.mxu0 0
        %1044 = vmatprep.subr.bf16.mxu0 0
        %1045 = vmatpush1.bf16.xpose.msra.mxu0 0
        %1046 = vmatprep.subr.bf16.mxu0 0
        %1047 = vmatpush1.bf16.xpose.msra.mxu0 0
        %1048 = vmatprep.subr.bf16.mxu0 0
        %1049 = vmatpush1.bf16.xpose.msra.mxu0 0
        %1050 = vmatprep.subr.bf16.mxu0 0
        %1051 = vmatpush1.bf16.xpose.msra.mxu0 0
        %1052 = vmatprep.mubr.bf16.mxu0 0
        %1053 = vmatmul.mubr.bf16.gmra.mrb[0].mxu0 %v1015
        %v1054 = vpop.f32.mrb[0].mxu0
        %v1055 = vadd.f32 0.0, %v1054
        %v1056 = vpop.f32.mrb[0].mxu0
        %v1057 = vpop.f32.mrb[0].mxu0
        %v1058 = vpop.f32.mrb[0].mxu0
        %1059 = vdwg.mxu0
        %v1060 = vsel %vm681, %v1055, -inf
        %1061 = vmax.xlane.f32.xlu0 %v1060
        %v1062 = vpop.xlane.xlu0 %1061
        %v1063 = vsub.f32 %v1055, %v1062
        %v1064 = vmul.f32 %v1063, 1.442695
        %v1065 = vpow.pop %v1064
        %v1066 = vsel %vm681, %v1065, 0.0
        %1067 = vadd.xlane.f32.xlu0 %v1066
        %v1068 = vpop.xlane.xlu0 %1067
        %v1069 = vrcp.pop %v1068
        %v1070 = vmul.f32 %v1065, %v1069
        %v1071 = vpack.c.bf16 %v1070, %v1070
        %1072 = vrot.lane.b32.xlu0 %v680, 104
        %v1073 = vpop.permute.xlu0 %1072
        %v1075 = vsel %vm681, %v1071, 0
        %v1078 = vsel %vm743, %v1073, 0
        %1080 = vmatprep.subr.bf16.mxu0 0
        %1081 = vmatpush1.bf16.msra.mxu0 %v1078
        %1082 = vmatprep.subr.bf16.mxu0 0
        %1083 = vmatpush1.bf16.msra.mxu0 0
        %1084 = vmatprep.subr.bf16.mxu0 0
        %1085 = vmatpush1.bf16.msra.mxu0 0
        %1086 = vmatprep.subr.bf16.mxu0 0
        %1087 = vmatpush1.bf16.msra.mxu0 0
        %1088 = vmatprep.subr.bf16.mxu0 0
        %1089 = vmatpush1.bf16.msra.mxu0 0
        %1090 = vmatprep.subr.bf16.mxu0 0
        %1091 = vmatpush1.bf16.msra.mxu0 0
        %1092 = vmatprep.subr.bf16.mxu0 0
        %1093 = vmatpush1.bf16.msra.mxu0 0
        %1094 = vmatprep.subr.bf16.mxu0 0
        %1095 = vmatpush1.bf16.msra.mxu0 0
        %1096 = vmatprep.subr.bf16.mxu0 0
        %1097 = vmatpush1.bf16.msra.mxu0 0
        %1098 = vmatprep.subr.bf16.mxu0 0
        %1099 = vmatpush1.bf16.msra.mxu0 0
        %1100 = vmatprep.subr.bf16.mxu0 0
        %1101 = vmatpush1.bf16.msra.mxu0 0
        %1102 = vmatprep.subr.bf16.mxu0 0
        %1103 = vmatpush1.bf16.msra.mxu0 0
        %1104 = vmatprep.subr.bf16.mxu0 0
        %1105 = vmatpush1.bf16.msra.mxu0 0
        %1106 = vmatprep.subr.bf16.mxu0 0
        %1107 = vmatpush1.bf16.msra.mxu0 0
        %1108 = vmatprep.subr.bf16.mxu0 0
        %1109 = vmatpush1.bf16.msra.mxu0 0
        %1110 = vmatprep.subr.bf16.mxu0 0
        %1111 = vmatpush1.bf16.msra.mxu0 0
        %1112 = vmatprep.mubr.bf16.mxu0 0
        %1113 = vmatmul.mubr.bf16.gmra.mrb[0].mxu0 %v1075
        %v1114 = vpop.f32.mrb[0].mxu0
        %v1115 = vadd.f32 0.0, %v1114
        %v1116 = vpop.f32.mrb[0].mxu0
        %v1117 = vpop.f32.mrb[0].mxu0
        %v1118 = vpop.f32.mrb[0].mxu0
        %1119 = vdwg.mxu0
        %1121 = vrot.lane.b32.xlu0 %v895, 8
        %v1122 = vpop.permute.xlu0 %1121
        %1125 = vrot.lane.b32.xlu0 %v1005, 16
        %v1126 = vpop.permute.xlu0 %1125
        %1129 = vrot.lane.b32.xlu0 %v1115, 24
        %v1130 = vpop.permute.xlu0 %1129
        %v1132 = vsel %vm681, %v782, %v1122
        %vm1133 = vcmask 130048
        %v1134 = vsel %vm1133, %v1132, %v1126
        %vm1135 = vcmask 195584
        %v1136 = vsel %vm1135, %v1134, %v1130
        %v1137 = vpack.c.bf16 %v1136, %v1136
        %v1138 = vlaneseq
        %v1139 = vshrl.u32 %v1138, 7
        %v1140 = vsub.s32 2, %v1139
        %v1141 = vrot.slane %v455, %v1140
        %v1146 = vunpack.c.l.b16 %v472
        %v1147 = vunpack.c.l.b16 %v473
        %v1148 = vunpack.c.l.b16 %v474
        %v1149 = vunpack.c.l.b16 %v475
        %v1150 = vpack.c.b16 %v1147, %v1146
        %v1151 = vpack.c.b16 %v1149, %v1148
        %v1155 = vsel %vm526, %v1137, 0
        %1157 = vmatprep.subr.bf16.mxu0 0
        %1158 = vmatpush1.bf16.msra.mxu0 %v1150
        %1159 = vmatprep.subr.bf16.mxu0 0
        %1160 = vmatpush1.bf16.msra.mxu0 %v1151
        %1161 = vmatprep.subr.bf16.mxu0 0
        %1162 = vmatpush1.bf16.msra.mxu0 0
        %1163 = vmatprep.subr.bf16.mxu0 0
        %1164 = vmatpush1.bf16.msra.mxu0 0
        %1165 = vmatprep.subr.bf16.mxu0 0
        %1166 = vmatpush1.bf16.msra.mxu0 0
        %1167 = vmatprep.subr.bf16.mxu0 0
        %1168 = vmatpush1.bf16.msra.mxu0 0
        %1169 = vmatprep.subr.bf16.mxu0 0
        %1170 = vmatpush1.bf16.msra.mxu0 0
        %1171 = vmatprep.subr.bf16.mxu0 0
        %1172 = vmatpush1.bf16.msra.mxu0 0
        %1173 = vmatprep.subr.bf16.mxu0 0
        %1174 = vmatpush1.bf16.msra.mxu0 0
        %1175 = vmatprep.subr.bf16.mxu0 0
        %1176 = vmatpush1.bf16.msra.mxu0 0
        %1177 = vmatprep.subr.bf16.mxu0 0
        %1178 = vmatpush1.bf16.msra.mxu0 0
        %1179 = vmatprep.subr.bf16.mxu0 0
        %1180 = vmatpush1.bf16.msra.mxu0 0
        %1181 = vmatprep.subr.bf16.mxu0 0
        %1182 = vmatpush1.bf16.msra.mxu0 0
        %1183 = vmatprep.subr.bf16.mxu0 0
        %1184 = vmatpush1.bf16.msra.mxu0 0
        %1185 = vmatprep.subr.bf16.mxu0 0
        %1186 = vmatpush1.bf16.msra.mxu0 0
        %1187 = vmatprep.subr.bf16.mxu0 0
        %1188 = vmatpush1.bf16.msra.mxu0 0
        %1189 = vmatprep.mubr.bf16.mxu0 0
        %1190 = vmatmul.mubr.bf16.gmra.mrb[0].mxu0 %v1155
        %v1191 = vpop.f32.mrb[0].mxu0
        %v1192 = vadd.f32 %v1141, %v1191
        %v1193 = vpop.f32.mrb[0].mxu0
        %v1194 = vpop.f32.mrb[0].mxu0
        %v1195 = vpop.f32.mrb[0].mxu0
        %1196 = vdwg.mxu0
        %v1197 = vadd.f32 %v453, %v1192
        %v1198 = vsel %vm526, %v1197, 0.0
        %1199 = vadd.xlane.f32.xlu0 %v1198
        %v1200 = vpop.xlane.xlu0 %1199
        %v1201 = vrcp.pop 32.0
        %v1202 = vmul.f32 %v1200, %v1201
        %v1203 = vsub.f32 %v1197, %v1202
        %v1204 = vmul.f32 %v1203, %v1203
        %v1205 = vsel %vm526, %v1204, 0.0
        %1206 = vadd.xlane.f32.xlu0 %v1205
        %v1207 = vpop.xlane.xlu0 %1206
        %v1208 = vmul.f32 %v1207, %v1201
        %v1209 = vadd.f32 %v1208, 1e-05
        %v1210 = vrsqrt.pop %v1209
        %v1211 = vmul.f32 %v1203, %v1210
        %v1212 = vlaneseq
        %v1213 = vshrl.u32 %v1212, 7
        %v1214 = vsub.s32 7, %v1213
        %v1215 = vrot.slane %v455, %v1214
        %v1216 = vmul.f32 %v1211, %v1215
        %v1217 = vlaneseq
        %v1218 = vshrl.u32 %v1217, 7
        %v1219 = vsub.s32 0, %v1218
        %v1220 = vrot.slane %v456, %v1219
        %v1221 = vadd.f32 %v1216, %v1220
        %v1222 = vpack.c.bf16 %v1221, %v1221
        %v1223 = vlaneseq
        %v1224 = vshrl.u32 %v1223, 7
        %v1225 = vsub.s32 3, %v1224
        %v1226 = vrot.slane %v455, %v1225
        %v1231 = vunpack.c.l.b16 %v477
        %v1232 = vunpack.c.l.b16 %v478
        %v1233 = vunpack.c.l.b16 %v479
        %v1234 = vunpack.c.l.b16 %v480
        %v1235 = vpack.c.b16 %v1232, %v1231
        %v1236 = vpack.c.b16 %v1234, %v1233
        %v1240 = vsel %vm526, %v1222, 0
        %1242 = vmatprep.subr.bf16.mxu0 0
        %1243 = vmatpush1.bf16.msra.mxu0 %v1235
        %1244 = vmatprep.subr.bf16.mxu0 0
        %1245 = vmatpush1.bf16.msra.mxu0 %v1236
        %1246 = vmatprep.subr.bf16.mxu0 0
        %1247 = vmatpush1.bf16.msra.mxu0 0
        %1248 = vmatprep.subr.bf16.mxu0 0
        %1249 = vmatpush1.bf16.msra.mxu0 0
        %1250 = vmatprep.subr.bf16.mxu0 0
        %1251 = vmatpush1.bf16.msra.mxu0 0
        %1252 = vmatprep.subr.bf16.mxu0 0
        %1253 = vmatpush1.bf16.msra.mxu0 0
        %1254 = vmatprep.subr.bf16.mxu0 0
        %1255 = vmatpush1.bf16.msra.mxu0 0
        %1256 = vmatprep.subr.bf16.mxu0 0
        %1257 = vmatpush1.bf16.msra.mxu0 0
        %1258 = vmatprep.subr.bf16.mxu0 0
        %1259 = vmatpush1.bf16.msra.mxu0 0
        %1260 = vmatprep.subr.bf16.mxu0 0
        %1261 = vmatpush1.bf16.msra.mxu0 0
        %1262 = vmatprep.subr.bf16.mxu0 0
        %1263 = vmatpush1.bf16.msra.mxu0 0
        %1264 = vmatprep.subr.bf16.mxu0 0
        %1265 = vmatpush1.bf16.msra.mxu0 0
        %1266 = vmatprep.subr.bf16.mxu0 0
        %1267 = vmatpush1.bf16.msra.mxu0 0
        %1268 = vmatprep.subr.bf16.mxu0 0
        %1269 = vmatpush1.bf16.msra.mxu0 0
        %1270 = vmatprep.subr.bf16.mxu0 0
        %1271 = vmatpush1.bf16.msra.mxu0 0
        %1272 = vmatprep.subr.bf16.mxu0 0
        %1273 = vmatpush1.bf16.msra.mxu0 0
        %1274 = vmatprep.mubr.bf16.mxu0 0
        %1275 = vmatmul.mubr.bf16.gmra.mrb[0].mxu0 %v1240
        %v1276 = vpop.f32.mrb[0].mxu0
        %v1277 = vadd.f32 %v1226, %v1276
        %v1278 = vpop.f32.mrb[0].mxu0
        %v1279 = vpop.f32.mrb[0].mxu0
        %v1280 = vpop.f32.mrb[0].mxu0
        %1281 = vdwg.mxu0
        %v1286 = vunpack.c.l.b16 %v482
        %v1287 = vunpack.c.l.b16 %v483
        %v1288 = vunpack.c.l.b16 %v484
        %v1289 = vunpack.c.l.b16 %v485
        %v1290 = vpack.c.b16 %v1287, %v1286
        %v1291 = vpack.c.b16 %v1289, %v1288
        %v1295 = vsel %vm526, %v454, 0
        %1297 = vmatprep.subr.bf16.mxu0 0
        %1298 = vmatpush1.bf16.msra.mxu0 %v1290
        %1299 = vmatprep.subr.bf16.mxu0 0
        %1300 = vmatpush1.bf16.msra.mxu0 %v1291
        %1301 = vmatprep.subr.bf16.mxu0 0
        %1302 = vmatpush1.bf16.msra.mxu0 0
        %1303 = vmatprep.subr.bf16.mxu0 0
        %1304 = vmatpush1.bf16.msra.mxu0 0
        %1305 = vmatprep.subr.bf16.mxu0 0
        %1306 = vmatpush1.bf16.msra.mxu0 0
        %1307 = vmatprep.subr.bf16.mxu0 0
        %1308 = vmatpush1.bf16.msra.mxu0 0
        %1309 = vmatprep.subr.bf16.mxu0 0
        %1310 = vmatpush1.bf16.msra.mxu0 0
        %1311 = vmatprep.subr.bf16.mxu0 0
        %1312 = vmatpush1.bf16.msra.mxu0 0
        %1313 = vmatprep.subr.bf16.mxu0 0
        %1314 = vmatpush1.bf16.msra.mxu0 0
        %1315 = vmatprep.subr.bf16.mxu0 0
        %1316 = vmatpush1.bf16.msra.mxu0 0
        %1317 = vmatprep.subr.bf16.mxu0 0
        %1318 = vmatpush1.bf16.msra.mxu0 0
        %1319 = vmatprep.subr.bf16.mxu0 0
        %1320 = vmatpush1.bf16.msra.mxu0 0
        %1321 = vmatprep.subr.bf16.mxu0 0
        %1322 = vmatpush1.bf16.msra.mxu0 0
        %1323 = vmatprep.subr.bf16.mxu0 0
        %1324 = vmatpush1.bf16.msra.mxu0 0
        %1325 = vmatprep.subr.bf16.mxu0 0
        %1326 = vmatpush1.bf16.msra.mxu0 0
        %1327 = vmatprep.subr.bf16.mxu0 0
        %1328 = vmatpush1.bf16.msra.mxu0 0
        %1329 = vmatprep.mubr.bf16.mxu0 0
        %1330 = vmatmul.mubr.bf16.gmra.mrb[0].mxu0 %v1295
        %v1331 = vpop.f32.mrb[0].mxu0
        %v1332 = vadd.f32 0.0, %v1331
        %v1333 = vpop.f32.mrb[0].mxu0
        %v1334 = vpop.f32.mrb[0].mxu0
        %v1335 = vpop.f32.mrb[0].mxu0
        %1336 = vdwg.mxu0
        %v1337 = vlaneseq
        %v1338 = vshrl.u32 %v1337, 7
        %v1339 = vsub.s32 4, %v1338
        %v1340 = vrot.slane %v455, %v1339
        %v1345 = vunpack.c.l.b16 %v487
        %v1346 = vunpack.c.l.b16 %v488
        %v1347 = vunpack.c.l.b16 %v489
        %v1348 = vunpack.c.l.b16 %v490
        %v1349 = vpack.c.b16 %v1346, %v1345
        %v1350 = vpack.c.b16 %v1348, %v1347
        %1353 = vmatprep.subr.bf16.mxu0 0
        %1354 = vmatpush1.bf16.msra.mxu0 %v1349
        %1355 = vmatprep.subr.bf16.mxu0 0
        %1356 = vmatpush1.bf16.msra.mxu0 %v1350
        %1357 = vmatprep.subr.bf16.mxu0 0
        %1358 = vmatpush1.bf16.msra.mxu0 0
        %1359 = vmatprep.subr.bf16.mxu0 0
        %1360 = vmatpush1.bf16.msra.mxu0 0
        %1361 = vmatprep.subr.bf16.mxu0 0
        %1362 = vmatpush1.bf16.msra.mxu0 0
        %1363 = vmatprep.subr.bf16.mxu0 0
        %1364 = vmatpush1.bf16.msra.mxu0 0
        %1365 = vmatprep.subr.bf16.mxu0 0
        %1366 = vmatpush1.bf16.msra.mxu0 0
        %1367 = vmatprep.subr.bf16.mxu0 0
        %1368 = vmatpush1.bf16.msra.mxu0 0
        %1369 = vmatprep.subr.bf16.mxu0 0
        %1370 = vmatpush1.bf16.msra.mxu0 0
        %1371 = vmatprep.subr.bf16.mxu0 0
        %1372 = vmatpush1.bf16.msra.mxu0 0
        %1373 = vmatprep.subr.bf16.mxu0 0
        %1374 = vmatpush1.bf16.msra.mxu0 0
        %1375 = vmatprep.subr.bf16.mxu0 0
        %1376 = vmatpush1.bf16.msra.mxu0 0
        %1377 = vmatprep.subr.bf16.mxu0 0
        %1378 = vmatpush1.bf16.msra.mxu0 0
        %1379 = vmatprep.subr.bf16.mxu0 0
        %1380 = vmatpush1.bf16.msra.mxu0 0
        %1381 = vmatprep.subr.bf16.mxu0 0
        %1382 = vmatpush1.bf16.msra.mxu0 0
        %1383 = vmatprep.subr.bf16.mxu0 0
        %1384 = vmatpush1.bf16.msra.mxu0 0
        %1385 = vmatprep.mubr.bf16.mxu0 0
        %1386 = vmatmul.mubr.bf16.gmra.mrb[0].mxu0 %v1295
        %v1387 = vpop.f32.mrb[0].mxu0
        %v1388 = vadd.f32 %v1340, %v1387
        %v1389 = vpop.f32.mrb[0].mxu0
        %v1390 = vpop.f32.mrb[0].mxu0
        %v1391 = vpop.f32.mrb[0].mxu0
        %1392 = vdwg.mxu0
        %v1393 = vpack.c.bf16 %v1277, %v1277
        %v1394 = vpack.c.bf16 %v1332, %v1332
        %v1395 = vpack.c.bf16 %v1388, %v1388
        %v1397 = vsel %vm681, %v1393, 0
        %v1400 = vsel %vm681, %v1394, 0
        %1402 = vmatprep.subr.bf16.mxu0 0
        %1403 = vmatpush1.bf16.xpose.msra.mxu0 %v1400
        %1404 = vmatprep.subr.bf16.mxu0 0
        %1405 = vmatpush1.bf16.xpose.msra.mxu0 0
        %1406 = vmatprep.subr.bf16.mxu0 0
        %1407 = vmatpush1.bf16.xpose.msra.mxu0 0
        %1408 = vmatprep.subr.bf16.mxu0 0
        %1409 = vmatpush1.bf16.xpose.msra.mxu0 0
        %1410 = vmatprep.subr.bf16.mxu0 0
        %1411 = vmatpush1.bf16.xpose.msra.mxu0 0
        %1412 = vmatprep.subr.bf16.mxu0 0
        %1413 = vmatpush1.bf16.xpose.msra.mxu0 0
        %1414 = vmatprep.subr.bf16.mxu0 0
        %1415 = vmatpush1.bf16.xpose.msra.mxu0 0
        %1416 = vmatprep.subr.bf16.mxu0 0
        %1417 = vmatpush1.bf16.xpose.msra.mxu0 0
        %1418 = vmatprep.subr.bf16.mxu0 0
        %1419 = vmatpush1.bf16.xpose.msra.mxu0 0
        %1420 = vmatprep.subr.bf16.mxu0 0
        %1421 = vmatpush1.bf16.xpose.msra.mxu0 0
        %1422 = vmatprep.subr.bf16.mxu0 0
        %1423 = vmatpush1.bf16.xpose.msra.mxu0 0
        %1424 = vmatprep.subr.bf16.mxu0 0
        %1425 = vmatpush1.bf16.xpose.msra.mxu0 0
        %1426 = vmatprep.subr.bf16.mxu0 0
        %1427 = vmatpush1.bf16.xpose.msra.mxu0 0
        %1428 = vmatprep.subr.bf16.mxu0 0
        %1429 = vmatpush1.bf16.xpose.msra.mxu0 0
        %1430 = vmatprep.subr.bf16.mxu0 0
        %1431 = vmatpush1.bf16.xpose.msra.mxu0 0
        %1432 = vmatprep.subr.bf16.mxu0 0
        %1433 = vmatpush1.bf16.xpose.msra.mxu0 0
        %1434 = vmatprep.mubr.bf16.mxu0 0
        %1435 = vmatmul.mubr.bf16.gmra.mrb[0].mxu0 %v1397
        %v1436 = vpop.f32.mrb[0].mxu0
        %v1437 = vadd.f32 0.0, %v1436
        %v1438 = vpop.f32.mrb[0].mxu0
        %v1439 = vpop.f32.mrb[0].mxu0
        %v1440 = vpop.f32.mrb[0].mxu0
        %1441 = vdwg.mxu0
        %v1442 = vsel %vm681, %v1437, -inf
        %1443 = vmax.xlane.f32.xlu0 %v1442
        %v1444 = vpop.xlane.xlu0 %1443
        %v1445 = vsub.f32 %v1437, %v1444
        %v1446 = vmul.f32 %v1445, 1.442695
        %v1447 = vpow.pop %v1446
        %v1448 = vsel %vm681, %v1447, 0.0
        %1449 = vadd.xlane.f32.xlu0 %v1448
        %v1450 = vpop.xlane.xlu0 %1449
        %v1451 = vrcp.pop %v1450
        %v1452 = vmul.f32 %v1447, %v1451
        %v1453 = vpack.c.bf16 %v1452, %v1452
        %v1455 = vsel %vm681, %v1453, 0
        %v1458 = vsel %vm743, %v1395, 0
        %1460 = vmatprep.subr.bf16.mxu0 0
        %1461 = vmatpush1.bf16.msra.mxu0 %v1458
        %1462 = vmatprep.subr.bf16.mxu0 0
        %1463 = vmatpush1.bf16.msra.mxu0 0
        %1464 = vmatprep.subr.bf16.mxu0 0
        %1465 = vmatpush1.bf16.msra.mxu0 0
        %1466 = vmatprep.subr.bf16.mxu0 0
        %1467 = vmatpush1.bf16.msra.mxu0 0
        %1468 = vmatprep.subr.bf16.mxu0 0
        %1469 = vmatpush1.bf16.msra.mxu0 0
        %1470 = vmatprep.subr.bf16.mxu0 0
        %1471 = vmatpush1.bf16.msra.mxu0 0
        %1472 = vmatprep.subr.bf16.mxu0 0
        %1473 = vmatpush1.bf16.msra.mxu0 0
        %1474 = vmatprep.subr.bf16.mxu0 0
        %1475 = vmatpush1.bf16.msra.mxu0 0
        %1476 = vmatprep.subr.bf16.mxu0 0
        %1477 = vmatpush1.bf16.msra.mxu0 0
        %1478 = vmatprep.subr.bf16.mxu0 0
        %1479 = vmatpush1.bf16.msra.mxu0 0
        %1480 = vmatprep.subr.bf16.mxu0 0
        %1481 = vmatpush1.bf16.msra.mxu0 0
        %1482 = vmatprep.subr.bf16.mxu0 0
        %1483 = vmatpush1.bf16.msra.mxu0 0
        %1484 = vmatprep.subr.bf16.mxu0 0
        %1485 = vmatpush1.bf16.msra.mxu0 0
        %1486 = vmatprep.subr.bf16.mxu0 0
        %1487 = vmatpush1.bf16.msra.mxu0 0
        %1488 = vmatprep.subr.bf16.mxu0 0
        %1489 = vmatpush1.bf16.msra.mxu0 0
        %1490 = vmatprep.subr.bf16.mxu0 0
        %1491 = vmatpush1.bf16.msra.mxu0 0
        %1492 = vmatprep.mubr.bf16.mxu0 0
        %1493 = vmatmul.mubr.bf16.gmra.mrb[0].mxu0 %v1455
        %v1494 = vpop.f32.mrb[0].mxu0
        %v1495 = vadd.f32 0.0, %v1494
        %v1496 = vpop.f32.mrb[0].mxu0
        %v1497 = vpop.f32.mrb[0].mxu0
        %v1498 = vpop.f32.mrb[0].mxu0
        %1499 = vdwg.mxu0
        %1501 = vrot.lane.b32.xlu0 %v1393, 120
        %v1502 = vpop.permute.xlu0 %1501
        %1504 = vrot.lane.b32.xlu0 %v1394, 120
        %v1505 = vpop.permute.xlu0 %1504
        %v1507 = vsel %vm681, %v1502, 0
        %v1510 = vsel %vm681, %v1505, 0
        %1512 = vmatprep.subr.bf16.mxu0 0
        %1513 = vmatpush1.bf16.xpose.msra.mxu0 %v1510
        %1514 = vmatprep.subr.bf16.mxu0 0
        %1515 = vmatpush1.bf16.xpose.msra.mxu0 0
        %1516 = vmatprep.subr.bf16.mxu0 0
        %1517 = vmatpush1.bf16.xpose.msra.mxu0 0
        %1518 = vmatprep.subr.bf16.mxu0 0
        %1519 = vmatpush1.bf16.xpose.msra.mxu0 0
        %1520 = vmatprep.subr.bf16.mxu0 0
        %1521 = vmatpush1.bf16.xpose.msra.mxu0 0
        %1522 = vmatprep.subr.bf16.mxu0 0
        %1523 = vmatpush1.bf16.xpose.msra.mxu0 0
        %1524 = vmatprep.subr.bf16.mxu0 0
        %1525 = vmatpush1.bf16.xpose.msra.mxu0 0
        %1526 = vmatprep.subr.bf16.mxu0 0
        %1527 = vmatpush1.bf16.xpose.msra.mxu0 0
        %1528 = vmatprep.subr.bf16.mxu0 0
        %1529 = vmatpush1.bf16.xpose.msra.mxu0 0
        %1530 = vmatprep.subr.bf16.mxu0 0
        %1531 = vmatpush1.bf16.xpose.msra.mxu0 0
        %1532 = vmatprep.subr.bf16.mxu0 0
        %1533 = vmatpush1.bf16.xpose.msra.mxu0 0
        %1534 = vmatprep.subr.bf16.mxu0 0
        %1535 = vmatpush1.bf16.xpose.msra.mxu0 0
        %1536 = vmatprep.subr.bf16.mxu0 0
        %1537 = vmatpush1.bf16.xpose.msra.mxu0 0
        %1538 = vmatprep.subr.bf16.mxu0 0
        %1539 = vmatpush1.bf16.xpose.msra.mxu0 0
        %1540 = vmatprep.subr.bf16.mxu0 0
        %1541 = vmatpush1.bf16.xpose.msra.mxu0 0
        %1542 = vmatprep.subr.bf16.mxu0 0
        %1543 = vmatpush1.bf16.xpose.msra.mxu0 0
        %1544 = vmatprep.mubr.bf16.mxu0 0
        %1545 = vmatmul.mubr.bf16.gmra.mrb[0].mxu0 %v1507
        %v1546 = vpop.f32.mrb[0].mxu0
        %v1547 = vadd.f32 0.0, %v1546
        %v1548 = vpop.f32.mrb[0].mxu0
        %v1549 = vpop.f32.mrb[0].mxu0
        %v1550 = vpop.f32.mrb[0].mxu0
        %1551 = vdwg.mxu0
        %v1552 = vsel %vm681, %v1547, -inf
        %1553 = vmax.xlane.f32.xlu0 %v1552
        %v1554 = vpop.xlane.xlu0 %1553
        %v1555 = vsub.f32 %v1547, %v1554
        %v1556 = vmul.f32 %v1555, 1.442695
        %v1557 = vpow.pop %v1556
        %v1558 = vsel %vm681, %v1557, 0.0
        %1559 = vadd.xlane.f32.xlu0 %v1558
        %v1560 = vpop.xlane.xlu0 %1559
        %v1561 = vrcp.pop %v1560
        %v1562 = vmul.f32 %v1557, %v1561
        %v1563 = vpack.c.bf16 %v1562, %v1562
        %1565 = vrot.lane.b32.xlu0 %v1395, 120
        %v1566 = vpop.permute.xlu0 %1565
        %v1568 = vsel %vm681, %v1563, 0
        %v1571 = vsel %vm743, %v1566, 0
        %1573 = vmatprep.subr.bf16.mxu0 0
        %1574 = vmatpush1.bf16.msra.mxu0 %v1571
        %1575 = vmatprep.subr.bf16.mxu0 0
        %1576 = vmatpush1.bf16.msra.mxu0 0
        %1577 = vmatprep.subr.bf16.mxu0 0
        %1578 = vmatpush1.bf16.msra.mxu0 0
        %1579 = vmatprep.subr.bf16.mxu0 0
        %1580 = vmatpush1.bf16.msra.mxu0 0
        %1581 = vmatprep.subr.bf16.mxu0 0
        %1582 = vmatpush1.bf16.msra.mxu0 0
        %1583 = vmatprep.subr.bf16.mxu0 0
        %1584 = vmatpush1.bf16.msra.mxu0 0
        %1585 = vmatprep.subr.bf16.mxu0 0
        %1586 = vmatpush1.bf16.msra.mxu0 0
        %1587 = vmatprep.subr.bf16.mxu0 0
        %1588 = vmatpush1.bf16.msra.mxu0 0
        %1589 = vmatprep.subr.bf16.mxu0 0
        %1590 = vmatpush1.bf16.msra.mxu0 0
        %1591 = vmatprep.subr.bf16.mxu0 0
        %1592 = vmatpush1.bf16.msra.mxu0 0
        %1593 = vmatprep.subr.bf16.mxu0 0
        %1594 = vmatpush1.bf16.msra.mxu0 0
        %1595 = vmatprep.subr.bf16.mxu0 0
        %1596 = vmatpush1.bf16.msra.mxu0 0
        %1597 = vmatprep.subr.bf16.mxu0 0
        %1598 = vmatpush1.bf16.msra.mxu0 0
        %1599 = vmatprep.subr.bf16.mxu0 0
        %1600 = vmatpush1.bf16.msra.mxu0 0
        %1601 = vmatprep.subr.bf16.mxu0 0
        %1602 = vmatpush1.bf16.msra.mxu0 0
        %1603 = vmatprep.subr.bf16.mxu0 0
        %1604 = vmatpush1.bf16.msra.mxu0 0
        %1605 = vmatprep.mubr.bf16.mxu0 0
        %1606 = vmatmul.mubr.bf16.gmra.mrb[0].mxu0 %v1568
        %v1607 = vpop.f32.mrb[0].mxu0
        %v1608 = vadd.f32 0.0, %v1607
        %v1609 = vpop.f32.mrb[0].mxu0
        %v1610 = vpop.f32.mrb[0].mxu0
        %v1611 = vpop.f32.mrb[0].mxu0
        %1612 = vdwg.mxu0
        %1613 = vrot.lane.b32.xlu0 %v1393, 112
        %v1614 = vpop.permute.xlu0 %1613
        %1615 = vrot.lane.b32.xlu0 %v1394, 112
        %v1616 = vpop.permute.xlu0 %1615
        %v1618 = vsel %vm681, %v1614, 0
        %v1621 = vsel %vm681, %v1616, 0
        %1623 = vmatprep.subr.bf16.mxu0 0
        %1624 = vmatpush1.bf16.xpose.msra.mxu0 %v1621
        %1625 = vmatprep.subr.bf16.mxu0 0
        %1626 = vmatpush1.bf16.xpose.msra.mxu0 0
        %1627 = vmatprep.subr.bf16.mxu0 0
        %1628 = vmatpush1.bf16.xpose.msra.mxu0 0
        %1629 = vmatprep.subr.bf16.mxu0 0
        %1630 = vmatpush1.bf16.xpose.msra.mxu0 0
        %1631 = vmatprep.subr.bf16.mxu0 0
        %1632 = vmatpush1.bf16.xpose.msra.mxu0 0
        %1633 = vmatprep.subr.bf16.mxu0 0
        %1634 = vmatpush1.bf16.xpose.msra.mxu0 0
        %1635 = vmatprep.subr.bf16.mxu0 0
        %1636 = vmatpush1.bf16.xpose.msra.mxu0 0
        %1637 = vmatprep.subr.bf16.mxu0 0
        %1638 = vmatpush1.bf16.xpose.msra.mxu0 0
        %1639 = vmatprep.subr.bf16.mxu0 0
        %1640 = vmatpush1.bf16.xpose.msra.mxu0 0
        %1641 = vmatprep.subr.bf16.mxu0 0
        %1642 = vmatpush1.bf16.xpose.msra.mxu0 0
        %1643 = vmatprep.subr.bf16.mxu0 0
        %1644 = vmatpush1.bf16.xpose.msra.mxu0 0
        %1645 = vmatprep.subr.bf16.mxu0 0
        %1646 = vmatpush1.bf16.xpose.msra.mxu0 0
        %1647 = vmatprep.subr.bf16.mxu0 0
        %1648 = vmatpush1.bf16.xpose.msra.mxu0 0
        %1649 = vmatprep.subr.bf16.mxu0 0
        %1650 = vmatpush1.bf16.xpose.msra.mxu0 0
        %1651 = vmatprep.subr.bf16.mxu0 0
        %1652 = vmatpush1.bf16.xpose.msra.mxu0 0
        %1653 = vmatprep.subr.bf16.mxu0 0
        %1654 = vmatpush1.bf16.xpose.msra.mxu0 0
        %1655 = vmatprep.mubr.bf16.mxu0 0
        %1656 = vmatmul.mubr.bf16.gmra.mrb[0].mxu0 %v1618
        %v1657 = vpop.f32.mrb[0].mxu0
        %v1658 = vadd.f32 0.0, %v1657
        %v1659 = vpop.f32.mrb[0].mxu0
        %v1660 = vpop.f32.mrb[0].mxu0
        %v1661 = vpop.f32.mrb[0].mxu0
        %1662 = vdwg.mxu0
        %v1663 = vsel %vm681, %v1658, -inf
        %1664 = vmax.xlane.f32.xlu0 %v1663
        %v1665 = vpop.xlane.xlu0 %1664
        %v1666 = vsub.f32 %v1658, %v1665
        %v1667 = vmul.f32 %v1666, 1.442695
        %v1668 = vpow.pop %v1667
        %v1669 = vsel %vm681, %v1668, 0.0
        %1670 = vadd.xlane.f32.xlu0 %v1669
        %v1671 = vpop.xlane.xlu0 %1670
        %v1672 = vrcp.pop %v1671
        %v1673 = vmul.f32 %v1668, %v1672
        %v1674 = vpack.c.bf16 %v1673, %v1673
        %1675 = vrot.lane.b32.xlu0 %v1395, 112
        %v1676 = vpop.permute.xlu0 %1675
        %v1678 = vsel %vm681, %v1674, 0
        %v1681 = vsel %vm743, %v1676, 0
        %1683 = vmatprep.subr.bf16.mxu0 0
        %1684 = vmatpush1.bf16.msra.mxu0 %v1681
        %1685 = vmatprep.subr.bf16.mxu0 0
        %1686 = vmatpush1.bf16.msra.mxu0 0
        %1687 = vmatprep.subr.bf16.mxu0 0
        %1688 = vmatpush1.bf16.msra.mxu0 0
        %1689 = vmatprep.subr.bf16.mxu0 0
        %1690 = vmatpush1.bf16.msra.mxu0 0
        %1691 = vmatprep.subr.bf16.mxu0 0
        %1692 = vmatpush1.bf16.msra.mxu0 0
        %1693 = vmatprep.subr.bf16.mxu0 0
        %1694 = vmatpush1.bf16.msra.mxu0 0
        %1695 = vmatprep.subr.bf16.mxu0 0
        %1696 = vmatpush1.bf16.msra.mxu0 0
        %1697 = vmatprep.subr.bf16.mxu0 0
        %1698 = vmatpush1.bf16.msra.mxu0 0
        %1699 = vmatprep.subr.bf16.mxu0 0
        %1700 = vmatpush1.bf16.msra.mxu0 0
        %1701 = vmatprep.subr.bf16.mxu0 0
        %1702 = vmatpush1.bf16.msra.mxu0 0
        %1703 = vmatprep.subr.bf16.mxu0 0
        %1704 = vmatpush1.bf16.msra.mxu0 0
        %1705 = vmatprep.subr.bf16.mxu0 0
        %1706 = vmatpush1.bf16.msra.mxu0 0
        %1707 = vmatprep.subr.bf16.mxu0 0
        %1708 = vmatpush1.bf16.msra.mxu0 0
        %1709 = vmatprep.subr.bf16.mxu0 0
        %1710 = vmatpush1.bf16.msra.mxu0 0
        %1711 = vmatprep.subr.bf16.mxu0 0
        %1712 = vmatpush1.bf16.msra.mxu0 0
        %1713 = vmatprep.subr.bf16.mxu0 0
        %1714 = vmatpush1.bf16.msra.mxu0 0
        %1715 = vmatprep.mubr.bf16.mxu0 0
        %1716 = vmatmul.mubr.bf16.gmra.mrb[0].mxu0 %v1678
        %v1717 = vpop.f32.mrb[0].mxu0
        %v1718 = vadd.f32 0.0, %v1717
        %v1719 = vpop.f32.mrb[0].mxu0
        %v1720 = vpop.f32.mrb[0].mxu0
        %v1721 = vpop.f32.mrb[0].mxu0
        %1722 = vdwg.mxu0
        %1723 = vrot.lane.b32.xlu0 %v1393, 104
        %v1724 = vpop.permute.xlu0 %1723
        %1725 = vrot.lane.b32.xlu0 %v1394, 104
        %v1726 = vpop.permute.xlu0 %1725
        %v1728 = vsel %vm681, %v1724, 0
        %v1731 = vsel %vm681, %v1726, 0
        %1733 = vmatprep.subr.bf16.mxu0 0
        %1734 = vmatpush1.bf16.xpose.msra.mxu0 %v1731
        %1735 = vmatprep.subr.bf16.mxu0 0
        %1736 = vmatpush1.bf16.xpose.msra.mxu0 0
        %1737 = vmatprep.subr.bf16.mxu0 0
        %1738 = vmatpush1.bf16.xpose.msra.mxu0 0
        %1739 = vmatprep.subr.bf16.mxu0 0
        %1740 = vmatpush1.bf16.xpose.msra.mxu0 0
        %1741 = vmatprep.subr.bf16.mxu0 0
        %1742 = vmatpush1.bf16.xpose.msra.mxu0 0
        %1743 = vmatprep.subr.bf16.mxu0 0
        %1744 = vmatpush1.bf16.xpose.msra.mxu0 0
        %1745 = vmatprep.subr.bf16.mxu0 0
        %1746 = vmatpush1.bf16.xpose.msra.mxu0 0
        %1747 = vmatprep.subr.bf16.mxu0 0
        %1748 = vmatpush1.bf16.xpose.msra.mxu0 0
        %1749 = vmatprep.subr.bf16.mxu0 0
        %1750 = vmatpush1.bf16.xpose.msra.mxu0 0
        %1751 = vmatprep.subr.bf16.mxu0 0
        %1752 = vmatpush1.bf16.xpose.msra.mxu0 0
        %1753 = vmatprep.subr.bf16.mxu0 0
        %1754 = vmatpush1.bf16.xpose.msra.mxu0 0
        %1755 = vmatprep.subr.bf16.mxu0 0
        %1756 = vmatpush1.bf16.xpose.msra.mxu0 0
        %1757 = vmatprep.subr.bf16.mxu0 0
        %1758 = vmatpush1.bf16.xpose.msra.mxu0 0
        %1759 = vmatprep.subr.bf16.mxu0 0
        %1760 = vmatpush1.bf16.xpose.msra.mxu0 0
        %1761 = vmatprep.subr.bf16.mxu0 0
        %1762 = vmatpush1.bf16.xpose.msra.mxu0 0
        %1763 = vmatprep.subr.bf16.mxu0 0
        %1764 = vmatpush1.bf16.xpose.msra.mxu0 0
        %1765 = vmatprep.mubr.bf16.mxu0 0
        %1766 = vmatmul.mubr.bf16.gmra.mrb[0].mxu0 %v1728
        %v1767 = vpop.f32.mrb[0].mxu0
        %v1768 = vadd.f32 0.0, %v1767
        %v1769 = vpop.f32.mrb[0].mxu0
        %v1770 = vpop.f32.mrb[0].mxu0
        %v1771 = vpop.f32.mrb[0].mxu0
        %1772 = vdwg.mxu0
        %v1773 = vsel %vm681, %v1768, -inf
        %1774 = vmax.xlane.f32.xlu0 %v1773
        %v1775 = vpop.xlane.xlu0 %1774
        %v1776 = vsub.f32 %v1768, %v1775
        %v1777 = vmul.f32 %v1776, 1.442695
        %v1778 = vpow.pop %v1777
        %v1779 = vsel %vm681, %v1778, 0.0
        %1780 = vadd.xlane.f32.xlu0 %v1779
        %v1781 = vpop.xlane.xlu0 %1780
        %v1782 = vrcp.pop %v1781
        %v1783 = vmul.f32 %v1778, %v1782
        %v1784 = vpack.c.bf16 %v1783, %v1783
        %1785 = vrot.lane.b32.xlu0 %v1395, 104
        %v1786 = vpop.permute.xlu0 %1785
        %v1788 = vsel %vm681, %v1784, 0
        %v1791 = vsel %vm743, %v1786, 0
        %1793 = vmatprep.subr.bf16.mxu0 0
        %1794 = vmatpush1.bf16.msra.mxu0 %v1791
        %1795 = vmatprep.subr.bf16.mxu0 0
        %1796 = vmatpush1.bf16.msra.mxu0 0
        %1797 = vmatprep.subr.bf16.mxu0 0
        %1798 = vmatpush1.bf16.msra.mxu0 0
        %1799 = vmatprep.subr.bf16.mxu0 0
        %1800 = vmatpush1.bf16.msra.mxu0 0
        %1801 = vmatprep.subr.bf16.mxu0 0
        %1802 = vmatpush1.bf16.msra.mxu0 0
        %1803 = vmatprep.subr.bf16.mxu0 0
        %1804 = vmatpush1.bf16.msra.mxu0 0
        %1805 = vmatprep.subr.bf16.mxu0 0
        %1806 = vmatpush1.bf16.msra.mxu0 0
        %1807 = vmatprep.subr.bf16.mxu0 0
        %1808 = vmatpush1.bf16.msra.mxu0 0
        %1809 = vmatprep.subr.bf16.mxu0 0
        %1810 = vmatpush1.bf16.msra.mxu0 0
        %1811 = vmatprep.subr.bf16.mxu0 0
        %1812 = vmatpush1.bf16.msra.mxu0 0
        %1813 = vmatprep.subr.bf16.mxu0 0
        %1814 = vmatpush1.bf16.msra.mxu0 0
        %1815 = vmatprep.subr.bf16.mxu0 0
        %1816 = vmatpush1.bf16.msra.mxu0 0
        %1817 = vmatprep.subr.bf16.mxu0 0
        %1818 = vmatpush1.bf16.msra.mxu0 0
        %1819 = vmatprep.subr.bf16.mxu0 0
        %1820 = vmatpush1.bf16.msra.mxu0 0
        %1821 = vmatprep.subr.bf16.mxu0 0
        %1822 = vmatpush1.bf16.msra.mxu0 0
        %1823 = vmatprep.subr.bf16.mxu0 0
        %1824 = vmatpush1.bf16.msra.mxu0 0
        %1825 = vmatprep.mubr.bf16.mxu0 0
        %1826 = vmatmul.mubr.bf16.gmra.mrb[0].mxu0 %v1788
        %v1827 = vpop.f32.mrb[0].mxu0
        %v1828 = vadd.f32 0.0, %v1827
        %v1829 = vpop.f32.mrb[0].mxu0
        %v1830 = vpop.f32.mrb[0].mxu0
        %v1831 = vpop.f32.mrb[0].mxu0
        %1832 = vdwg.mxu0
        %1834 = vrot.lane.b32.xlu0 %v1608, 8
        %v1835 = vpop.permute.xlu0 %1834
        %1838 = vrot.lane.b32.xlu0 %v1718, 16
        %v1839 = vpop.permute.xlu0 %1838
        %1842 = vrot.lane.b32.xlu0 %v1828, 24
        %v1843 = vpop.permute.xlu0 %1842
        %v1845 = vsel %vm681, %v1495, %v1835
        %v1846 = vsel %vm1133, %v1845, %v1839
        %v1847 = vsel %vm1135, %v1846, %v1843
        %v1848 = vpack.c.bf16 %v1847, %v1847
        %v1849 = vlaneseq
        %v1850 = vshrl.u32 %v1849, 7
        %v1851 = vsub.s32 5, %v1850
        %v1852 = vrot.slane %v455, %v1851
        %v1857 = vunpack.c.l.b16 %v492
        %v1858 = vunpack.c.l.b16 %v493
        %v1859 = vunpack.c.l.b16 %v494
        %v1860 = vunpack.c.l.b16 %v495
        %v1861 = vpack.c.b16 %v1858, %v1857
        %v1862 = vpack.c.b16 %v1860, %v1859
        %v1866 = vsel %vm526, %v1848, 0
        %1868 = vmatprep.subr.bf16.mxu0 0
        %1869 = vmatpush1.bf16.msra.mxu0 %v1861
        %1870 = vmatprep.subr.bf16.mxu0 0
        %1871 = vmatpush1.bf16.msra.mxu0 %v1862
        %1872 = vmatprep.subr.bf16.mxu0 0
        %1873 = vmatpush1.bf16.msra.mxu0 0
        %1874 = vmatprep.subr.bf16.mxu0 0
        %1875 = vmatpush1.bf16.msra.mxu0 0
        %1876 = vmatprep.subr.bf16.mxu0 0
        %1877 = vmatpush1.bf16.msra.mxu0 0
        %1878 = vmatprep.subr.bf16.mxu0 0
        %1879 = vmatpush1.bf16.msra.mxu0 0
        %1880 = vmatprep.subr.bf16.mxu0 0
        %1881 = vmatpush1.bf16.msra.mxu0 0
        %1882 = vmatprep.subr.bf16.mxu0 0
        %1883 = vmatpush1.bf16.msra.mxu0 0
        %1884 = vmatprep.subr.bf16.mxu0 0
        %1885 = vmatpush1.bf16.msra.mxu0 0
        %1886 = vmatprep.subr.bf16.mxu0 0
        %1887 = vmatpush1.bf16.msra.mxu0 0
        %1888 = vmatprep.subr.bf16.mxu0 0
        %1889 = vmatpush1.bf16.msra.mxu0 0
        %1890 = vmatprep.subr.bf16.mxu0 0
        %1891 = vmatpush1.bf16.msra.mxu0 0
        %1892 = vmatprep.subr.bf16.mxu0 0
        %1893 = vmatpush1.bf16.msra.mxu0 0
        %1894 = vmatprep.subr.bf16.mxu0 0
        %1895 = vmatpush1.bf16.msra.mxu0 0
        %1896 = vmatprep.subr.bf16.mxu0 0
        %1897 = vmatpush1.bf16.msra.mxu0 0
        %1898 = vmatprep.subr.bf16.mxu0 0
        %1899 = vmatpush1.bf16.msra.mxu0 0
        %1900 = vmatprep.mubr.bf16.mxu0 0
        %1901 = vmatmul.mubr.bf16.gmra.mrb[0].mxu0 %v1866
        %v1902 = vpop.f32.mrb[0].mxu0
        %v1903 = vadd.f32 %v1852, %v1902
        %v1904 = vpop.f32.mrb[0].mxu0
        %v1905 = vpop.f32.mrb[0].mxu0
        %v1906 = vpop.f32.mrb[0].mxu0
        %1907 = vdwg.mxu0
        %v1908 = vadd.f32 %v1221, %v1903
        %v1909 = vsel %vm526, %v1908, 0.0
        %1910 = vadd.xlane.f32.xlu0 %v1909
        %v1911 = vpop.xlane.xlu0 %1910
        %v1912 = vmul.f32 %v1911, %v1201
        %v1913 = vsub.f32 %v1908, %v1912
        %v1914 = vmul.f32 %v1913, %v1913
        %v1915 = vsel %vm526, %v1914, 0.0
        %1916 = vadd.xlane.f32.xlu0 %v1915
        %v1917 = vpop.xlane.xlu0 %1916
        %v1918 = vmul.f32 %v1917, %v1201
        %v1919 = vadd.f32 %v1918, 1e-05
        %v1920 = vrsqrt.pop %v1919
        %v1921 = vmul.f32 %v1913, %v1920
        %v1922 = vlaneseq
        %v1923 = vshrl.u32 %v1922, 7
        %v1924 = vsub.s32 1, %v1923
        %v1925 = vrot.slane %v456, %v1924
        %v1926 = vmul.f32 %v1921, %v1925
        %v1927 = vlaneseq
        %v1928 = vshrl.u32 %v1927, 7
        %v1929 = vsub.s32 2, %v1928
        %v1930 = vrot.slane %v456, %v1929
        %v1931 = vadd.f32 %v1926, %v1930
        %v1932 = vpack.c.bf16 %v1931, %v1931
        %v1934 = vlaneseq
        %v1935 = vshrl.u32 %v1934, 7
        %v1936 = vsub.s32 0, %v1935
        %v1937 = vrot.slane %v500, %v1936
        %v1943 = vunpack.c.l.b16 %v496
        %v1944 = vunpack.c.l.b16 %v497
        %v1945 = vunpack.c.l.b16 %v498
        %v1946 = vunpack.c.l.b16 %v499
        %v1947 = vpack.c.b16 %v1944, %v1943
        %v1948 = vpack.c.b16 %v1946, %v1945
        %v1952 = vsel %vm526, %v1932, 0
        %1954 = vmatprep.subr.bf16.mxu0 0
        %1955 = vmatpush1.bf16.msra.mxu0 %v1947
        %1956 = vmatprep.subr.bf16.mxu0 0
        %1957 = vmatpush1.bf16.msra.mxu0 %v1948
        %1958 = vmatprep.subr.bf16.mxu0 0
        %1959 = vmatpush1.bf16.msra.mxu0 0
        %1960 = vmatprep.subr.bf16.mxu0 0
        %1961 = vmatpush1.bf16.msra.mxu0 0
        %1962 = vmatprep.subr.bf16.mxu0 0
        %1963 = vmatpush1.bf16.msra.mxu0 0
        %1964 = vmatprep.subr.bf16.mxu0 0
        %1965 = vmatpush1.bf16.msra.mxu0 0
        %1966 = vmatprep.subr.bf16.mxu0 0
        %1967 = vmatpush1.bf16.msra.mxu0 0
        %1968 = vmatprep.subr.bf16.mxu0 0
        %1969 = vmatpush1.bf16.msra.mxu0 0
        %1970 = vmatprep.subr.bf16.mxu0 0
        %1971 = vmatpush1.bf16.msra.mxu0 0
        %1972 = vmatprep.subr.bf16.mxu0 0
        %1973 = vmatpush1.bf16.msra.mxu0 0
        %1974 = vmatprep.subr.bf16.mxu0 0
        %1975 = vmatpush1.bf16.msra.mxu0 0
        %1976 = vmatprep.subr.bf16.mxu0 0
        %1977 = vmatpush1.bf16.msra.mxu0 0
        %1978 = vmatprep.subr.bf16.mxu0 0
        %1979 = vmatpush1.bf16.msra.mxu0 0
        %1980 = vmatprep.subr.bf16.mxu0 0
        %1981 = vmatpush1.bf16.msra.mxu0 0
        %1982 = vmatprep.subr.bf16.mxu0 0
        %1983 = vmatpush1.bf16.msra.mxu0 0
        %1984 = vmatprep.subr.bf16.mxu0 0
        %1985 = vmatpush1.bf16.msra.mxu0 0
        %1986 = vmatprep.mubr.bf16.mxu0 0
        %1987 = vmatmul.mubr.bf16.gmra.mrb[0].mxu0 %v1952
        %v1988 = vpop.f32.mrb[0].mxu0
        %v1989 = vadd.f32 %v1937, %v1988
        %v1990 = vpop.f32.mrb[0].mxu0
        %v1991 = vpop.f32.mrb[0].mxu0
        %v1992 = vpop.f32.mrb[0].mxu0
        %1993 = vdwg.mxu0
        %v1994 = vmax.f32 %v1989, 0.0
        %v1995 = vpack.c.bf16 %v1994, %v1994
        %v1996 = vlaneseq
        %v1997 = vshrl.u32 %v1996, 7
        %v1998 = vsub.s32 6, %v1997
        %v1999 = vrot.slane %v455, %v1998
        %v2008 = vunpack.c.l.b16 %v501
        %v2009 = vunpack.c.l.b16 %v502
        %v2010 = vunpack.c.l.b16 %v503
        %v2011 = vunpack.c.l.b16 %v504
        %v2012 = vunpack.c.l.b16 %v505
        %v2013 = vunpack.c.l.b16 %v506
        %v2014 = vunpack.c.l.b16 %v507
        %v2015 = vunpack.c.l.b16 %v508
        %v2016 = vpack.c.b16 %v2009, %v2008
        %v2017 = vpack.c.b16 %v2011, %v2010
        %v2018 = vpack.c.b16 %v2013, %v2012
        %v2019 = vpack.c.b16 %v2015, %v2014
        %vm2024 = vcmask 523264
        %v2026 = vsel %vm2024, %v1995, 0
        %2028 = vmatprep.subr.bf16.mxu0 0
        %2029 = vmatpush1.bf16.msra.mxu0 %v2016
        %2030 = vmatprep.subr.bf16.mxu0 0
        %2031 = vmatpush1.bf16.msra.mxu0 %v2017
        %2032 = vmatprep.subr.bf16.mxu0 0
        %2033 = vmatpush1.bf16.msra.mxu0 %v2018
        %2034 = vmatprep.subr.bf16.mxu0 0
        %2035 = vmatpush1.bf16.msra.mxu0 %v2019
        %2036 = vmatprep.subr.bf16.mxu0 0
        %2037 = vmatpush1.bf16.msra.mxu0 0
        %2038 = vmatprep.subr.bf16.mxu0 0
        %2039 = vmatpush1.bf16.msra.mxu0 0
        %2040 = vmatprep.subr.bf16.mxu0 0
        %2041 = vmatpush1.bf16.msra.mxu0 0
        %2042 = vmatprep.subr.bf16.mxu0 0
        %2043 = vmatpush1.bf16.msra.mxu0 0
        %2044 = vmatprep.subr.bf16.mxu0 0
        %2045 = vmatpush1.bf16.msra.mxu0 0
        %2046 = vmatprep.subr.bf16.mxu0 0
        %2047 = vmatpush1.bf16.msra.mxu0 0
        %2048 = vmatprep.subr.bf16.mxu0 0
        %2049 = vmatpush1.bf16.msra.mxu0 0
        %2050 = vmatprep.subr.bf16.mxu0 0
        %2051 = vmatpush1.bf16.msra.mxu0 0
        %2052 = vmatprep.subr.bf16.mxu0 0
        %2053 = vmatpush1.bf16.msra.mxu0 0
        %2054 = vmatprep.subr.bf16.mxu0 0
        %2055 = vmatpush1.bf16.msra.mxu0 0
        %2056 = vmatprep.subr.bf16.mxu0 0
        %2057 = vmatpush1.bf16.msra.mxu0 0
        %2058 = vmatprep.subr.bf16.mxu0 0
        %2059 = vmatpush1.bf16.msra.mxu0 0
        %2060 = vmatprep.mubr.bf16.mxu0 0
        %2061 = vmatmul.mubr.bf16.gmra.mrb[0].mxu0 %v2026
        %v2062 = vpop.f32.mrb[0].mxu0
        %v2063 = vadd.f32 %v1999, %v2062
        %v2064 = vpop.f32.mrb[0].mxu0
        %v2065 = vpop.f32.mrb[0].mxu0
        %v2066 = vpop.f32.mrb[0].mxu0
        %2067 = vdwg.mxu0
        %v2068 = vadd.f32 %v1931, %v2063
        %v2069 = vsel %vm526, %v2068, 0.0
        %2070 = vadd.xlane.f32.xlu0 %v2069
        %v2071 = vpop.xlane.xlu0 %2070
        %v2072 = vmul.f32 %v2071, %v1201
        %v2073 = vsub.f32 %v2068, %v2072
        %v2074 = vmul.f32 %v2073, %v2073
        %v2075 = vsel %vm526, %v2074, 0.0
        %2076 = vadd.xlane.f32.xlu0 %v2075
        %v2077 = vpop.xlane.xlu0 %2076
        %v2078 = vmul.f32 %v2077, %v1201
        %v2079 = vadd.f32 %v2078, 1e-05
        %v2080 = vrsqrt.pop %v2079
        %v2081 = vmul.f32 %v2073, %v2080
        %v2082 = vlaneseq
        %v2083 = vshrl.u32 %v2082, 7
        %v2084 = vsub.s32 3, %v2083
        %v2085 = vrot.slane %v456, %v2084
        %v2086 = vmul.f32 %v2081, %v2085
        %v2087 = vlaneseq
        %v2088 = vshrl.u32 %v2087, 7
        %v2089 = vsub.s32 4, %v2088
        %v2090 = vrot.slane %v456, %v2089
        %v2091 = vadd.f32 %v2086, %v2090
        %p2092 = scmp.lt.s32.totalorder %s30, 1
        // Predicated region
        $region61: #{tpu_custom_call.1} parent=51 // pred_check
          %p2093 = pneg %p2092
        $region62: #{tpu_custom_call.1} parent=51 // pred_check_branch
          %2095 = sbr.rel (%p2093) target = $region64
        $region63: #{tpu_custom_call.1} parent=51 // pred_region
          %2096 = vst.msk [vmem:[#allocation2] sm:$0xff] %vm526, %v2091
        $region64: #{tpu_custom_call.1} parent=51 // pred_fallthru
          _
        %p2097 = scmp.eq.s32.totalorder %s30, 1
        // Predicated region
        $region65: #{tpu_custom_call.1} parent=51 // pred_check
          %p2098 = pneg %p2097
        $region66: #{tpu_custom_call.1} parent=51 // pred_check_branch
          %2100 = sbr.rel (%p2098) target = $region68
        $region67: #{tpu_custom_call.1} parent=51 // pred_region
          %v2101 = vld [vmem:[%s7] sm:$0x1]
          %v2102 = vld [vmem:[%s7 + $0x1] sm:$0x1]
          %v2103 = vsel %vm526, %v2091, 0.0
          %2104 = vadd.xlane.f32.xlu0 %v2103
          %v2105 = vpop.xlane.xlu0 %2104
          %v2106 = vmul.f32 %v2105, %v1201
          %v2107 = vsub.f32 %v2091, %v2106
          %v2108 = vmul.f32 %v2107, %v2107
          %v2109 = vsel %vm526, %v2108, 0.0
          %2110 = vadd.xlane.f32.xlu0 %v2109
          %v2111 = vpop.xlane.xlu0 %2110
          %v2112 = vmul.f32 %v2111, %v1201
          %v2113 = vadd.f32 %v2112, 1e-05
          %v2114 = vrsqrt.pop %v2113
          %v2115 = vmul.f32 %v2107, %v2114
          %v2116 = vlaneseq
          %v2117 = vshrl.u32 %v2116, 7
          %v2118 = vsub.s32 0, %v2117
          %v2119 = vrot.slane %v2101, %v2118
          %v2120 = vmul.f32 %v2115, %v2119
          %v2121 = vlaneseq
          %v2122 = vshrl.u32 %v2121, 7
          %v2123 = vsub.s32 0, %v2122
          %v2124 = vrot.slane %v2102, %v2123
          %v2125 = vadd.f32 %v2120, %v2124
          %2126 = vst.msk [vmem:[%s417] sm:$0xff] %vm526, %v2125
        $region68: #{tpu_custom_call.1} parent=51 // pred_fallthru
          _
        %s2127 = sand.u32 %s248, 1
        %s2128 = scalar_lea.sflag [#allocation5], %s2127
        %s2129 = sand.u32 %s248, 1
        %s2130 = smul.addr %s2129, 8
        %s2131 = scalar_lea.vmem [#allocation6], %s2130
        // Predicated region
        $region69: #{tpu_custom_call.1} parent=51 // pred_check
          %p2132 = pneg %p258
        $region70: #{tpu_custom_call.1} parent=51 // pred_check_branch
          %2134 = sbr.rel (%p2132) target = $region72
        $region71: #{tpu_custom_call.1} parent=51 // pred_region
          %s2136 = ssub.s32 128, 128
          %2137 = vsyncadd %s2128, %s2136
          %s2138 = smul.addr %s29, 128
          %s2139 = scalar_lea.hbm %s8, %s2138
          %s2141 = sshll.u32 %s2131, 4
          %s2142 = int_to_ptr.vmem [resolvable:$true] %s2141
          %2144 = dma.vmem_to_hbm [thread:$0]  %s2142, 128, %s2139, %s2128
        $region72: #{tpu_custom_call.1} parent=51 // pred_fallthru
          _
      $region52: #{tpu_custom_call.1} parent=5 // pred_fallthru
        _
      %p2145 = scmp.le.s32.totalorder 2, %s20
      // Predicated region
      $region73: #{tpu_custom_call.1} parent=5 // pred_check
        %p2146 = pneg %p2145
      $region74: #{tpu_custom_call.1} parent=5 // pred_check_branch
        %2148 = sbr.rel (%p2146) target = $region76
      $region75: #{tpu_custom_call.1} parent=5 // pred_region
        %s2149 = ssub.s32 %s20, 2
        // Predicated region
        $region77: #{tpu_custom_call.1} parent=75 // pred_check
          %p2150 = pneg %p264
        $region78: #{tpu_custom_call.1} parent=75 // pred_check_branch
          %2152 = sbr.rel (%p2150) target = $region80
        $region79: #{tpu_custom_call.1} parent=75 // pred_region
          %s2153 = sand.u32 %s249, 1
          %s2154 = scalar_lea.sflag [#allocation5], %s2153
          %s2155 = sand.u32 %s249, 1
          %s2156 = smul.addr %s2155, 8
          %s2157 = scalar_lea.vmem [#allocation6], %s2156
          %2158 = dma.done %s2154, 128
        $region80: #{tpu_custom_call.1} parent=75 // pred_fallthru
          _
      $region76: #{tpu_custom_call.1} parent=5 // pred_fallthru
        _
    $region6: #{tpu_custom_call.1} parent=1 // loop_footer
      %s24 = sadd.s32 1, %s20
    $region7: #{tpu_custom_call.1} parent=1 // loop_footer_branch
      %19 = sbr.rel target = $region3
    $region8: #{tpu_custom_call.1} parent=1 // loop_exit
      _
    %2159 = vsyncpa [#allocation4], 1
    %s2160 = scalar_lea.sflag [#allocation4], 1
    %2161 = vsyncpa %s2160, 1
    %2162 = vsyncpa [#allocation5], 1
    %s2163 = scalar_lea.sflag [#allocation5], 1
    %2164 = vsyncpa %s2163, 1

</llo_original>
